<compile_context>
chip_gen: v6e
topology: v6e:2x2x1
jax: 0.10.0
libtpu: 0.0.40
codegen_flags: <defaults>
</compile_context>

<pallas_src>
import functools

import jax
import jax.numpy as jnp
from jax.experimental import pallas as pl
from jax.experimental.pallas import tpu as pltpu

LARGE_NUMBER = 1.0e9
EPS = 1e-12  # F.normalize clamp


def _ntxent_tile_kernel(z_tile_ref, zT_ref, zc_tile_ref, zcT_ref,
                        loss_ref, acc_ref, *, n, multiplier, tile_r):
    """Process one (tile_r, n) slab of rows."""
    row0 = pl.program_id(0) * tile_r

    # Masks via broadcast compares -- no (n, n) int32 row_ids materialized.
    col_ids = jax.lax.broadcasted_iota(jnp.int32, (tile_r, n), 1)       # (tile_r, n)
    rows = row0 + jax.lax.broadcasted_iota(jnp.int32, (tile_r, 1), 0)   # (tile_r, 1) global rows
    labels = (rows + n // multiplier) % n                               # (tile_r, 1), m == 2 case
    diag = col_ids == rows                                              # (tile_r, n)
    label_mask = col_ids == labels                                      # (tile_r, n)

    # logits slab = z_tile @ zT_full  (1/sqrt(tau) already folded into z in the wrapper).
    logits = jax.lax.dot_general(
        z_tile_ref[...], zT_ref[...], (((1,), (0,)), ((), ())),
        preferred_element_type=jnp.float32)
    logits = jnp.where(diag, -LARGE_NUMBER, logits)

    # Row-wise log-sum-exp (logprob itself is never materialized).
    row_max = jnp.max(logits, axis=1, keepdims=True)
    lse = row_max + jnp.log(jnp.sum(jnp.exp(logits - row_max), axis=1, keepdims=True))

    # sim_clip slab with diagonal and label column masked to -1.
    sim = jax.lax.dot_general(
        zc_tile_ref[...], zcT_ref[...], (((1,), (0,)), ((), ())),
        preferred_element_type=jnp.float32)
    sim = jnp.where(diag | label_mask, -1.0, sim)
    sim_max = jnp.max(sim, axis=1, keepdims=True)
    new_index = jnp.min(
        jnp.where(sim == sim_max, col_ids, jnp.int32(n)), axis=1, keepdims=True)  # first argmax
    newidx_mask = col_ids == new_index

    # Fused loss gathers without materializing logprob:
    #   -sum(w * (logits - lse)) = 2*sum(lse) - sum(w * logits)   (sum_j w_ij == 2 per row).
    weights = label_mask.astype(jnp.float32) + newidx_mask.astype(jnp.float32)
    loss_part = 2.0 * jnp.sum(lse) - jnp.sum(weights * logits)   # wrapper divides total by 2n
    loss_ref[...] = jnp.full((1, 1, 1), loss_part, dtype=jnp.float32)

    # Accuracy: argmax(logprob) == argmax(logits); reuse row_max (diag already ~ -1e9).
    pred_arg = jnp.min(
        jnp.where(logits == row_max, col_ids, jnp.int32(n)), axis=1, keepdims=True)
    acc_ref[...] = (pred_arg == labels).astype(jnp.float32)


def _l2_normalize(x, scale=1.0):
    x = x.astype(jnp.float32)
    inv = jax.lax.rsqrt(jnp.maximum(jnp.sum(x * x, axis=1, keepdims=True), EPS * EPS))
    return x * (inv * jnp.float32(scale))


def _pick_tile(n, min_tile, d_max):
    # Prefer 256-row tiles only when the contraction is wide enough for the 256-wide MXU
    # (v6e/v7x) to matter; 128 otherwise (optimal on v5e, smaller live slabs).
    candidates = (256, 128, 64, 32, 16, 8) if d_max >= 256 else (128, 64, 32, 16, 8)
    for t in candidates:
        if t >= min_tile and n % t == 0:
            return t
    # TODO(synk): pad n (with masked rows/columns) instead of failing for awkward sizes.
    raise ValueError(f"no legal row tile for n={n} with min sublane tile {min_tile}")


def _resident_spec(shape, pipeline_mode):
    idx = lambda i: (0, 0)
    if pipeline_mode is None:
        return pl.BlockSpec(shape, idx)
    return pl.BlockSpec(shape, idx, pipeline_mode=pipeline_mode)


def ntxent_newp(z, z_clip, *, tau=1.0, multiplier=2, tile_r=None,
                use_bf16_matmul=True, single_buffer_residents=True):
    assert multiplier == 2, "only multiplier=2 (module default) is supported"
    n, d = z.shape
    assert n % multiplier == 0
    d2 = z_clip.shape[1]

    # Hoisted normalization (rsqrt, once) with 1/sqrt(tau) folded into the same scale,
    # then cast for the MXU and pre-transpose the resident operands to lane-dense (d, n).
    in_dtype = jnp.bfloat16 if use_bf16_matmul else jnp.float32
    zn = _l2_normalize(z, scale=1.0 / (float(tau) ** 0.5)).astype(in_dtype)
    zcn = _l2_normalize(z_clip).astype(in_dtype)
    znT = zn.T     # (d, n)  -- n (multiple of the row tile) on the lane axis
    zcnT = zcn.T   # (d2, n)

    min_tile = 16 if in_dtype == jnp.bfloat16 else 8
    if tile_r is None:
        tile_r = _pick_tile(n, min_tile, max(d, d2))
    assert n % tile_r == 0 and tile_r >= min_tile, (n, tile_r, min_tile)
    num_tiles = n // tile_r

    kernel = functools.partial(
        _ntxent_tile_kernel, n=n, multiplier=multiplier, tile_r=tile_r)

    # Explicit VMEM budget: residents (worst case double-buffered) + pipelined row tiles
    # + live f32 slab intermediates; clamped to [32 MiB, 64 MiB] so it is valid on every
    # generation (v7x has 64 MiB/TC) and never below the compiler's real need here.
    itemsize = jnp.dtype(in_dtype).itemsize
    est = (2 * (n * d + n * d2) * itemsize            # resident Gram operands
           + 2 * (tile_r * d + tile_r * d2) * itemsize  # double-buffered row tiles
           + 8 * tile_r * n * 4                         # live f32 slabs (logits/exp/sim/masks)
           + 2 * (tile_r + 1) * 4)                      # outputs
    vmem_limit = int(min(64 * 2 ** 20, max(32 * 2 ** 20, 2 * est)))

    def _build(pipeline_mode):
        return pl.pallas_call(
            kernel,
            out_shape=(
                jax.ShapeDtypeStruct((num_tiles, 1, 1), jnp.float32),  # per-tile partial loss
                jax.ShapeDtypeStruct((n, 1), jnp.float32),             # per-row accuracy
            ),
            grid_spec=pltpu.PrefetchScalarGridSpec(
                num_scalar_prefetch=0,
                grid=(num_tiles,),
                in_specs=[
                    pl.BlockSpec((tile_r, d), lambda i: (i, 0)),    # pipelined row tile of zn
                    _resident_spec((d, n), pipeline_mode),          # full zn^T, VMEM-resident
                    pl.BlockSpec((tile_r, d2), lambda i: (i, 0)),   # pipelined row tile of zcn
                    _resident_spec((d2, n), pipeline_mode),         # full zcn^T, VMEM-resident
                ],
                out_specs=[
                    pl.BlockSpec((1, 1, 1), lambda i: (i, 0, 0)),
                    pl.BlockSpec((tile_r, 1), lambda i: (i, 0)),
                ],
            ),
            compiler_params=pltpu.CompilerParams(
                dimension_semantics=("parallel",),   # row-tile axis shards across TCs on v7x
                vmem_limit_bytes=vmem_limit),
        )

    buffered = getattr(pl, "Buffered", None)
    if single_buffer_residents and buffered is not None:
        try:
            # Constant index_map => single-buffer the residents (halves their VMEM footprint).
            loss_parts, acc = _build(buffered(1))(zn, znT, zcn, zcnT)
        except Exception:
            # TODO(synk): this Pallas build rejected pipeline_mode; fall back to defaults.
            loss_parts, acc = _build(None)(zn, znT, zcn, zcnT)
    else:
        loss_parts, acc = _build(None)(zn, znT, zcn, zcnT)

    loss = jnp.sum(loss_parts) / jnp.float32(2 * n)
    return loss, acc[:, 0]


def _reference(z, z_clip, tau=1.0):
    """Pure-JAX reference mirroring the PyTorch forward (m=2, f32)."""
    n = z.shape[0]
    zn = z / jnp.maximum(jnp.linalg.norm(z, axis=1, keepdims=True), EPS)
    zn = zn / jnp.sqrt(tau)
    logits = zn @ zn.T
    idx = jnp.arange(n)
    logits = logits.at[idx, idx].set(-LARGE_NUMBER)
    labels = (idx + n // 2) % n
    logprob = jax.nn.log_softmax(logits, axis=1)
    loss1 = -logprob[idx, labels].sum() / n
    zcn = z_clip / jnp.maximum(jnp.linalg.norm(z_clip, axis=1, keepdims=True), EPS)
    sim = zcn @ zcn.T
    sim = sim.at[idx, idx].set(-1.0).at[idx, labels].set(-1.0)
    new_index = jnp.argmax(sim, axis=1)
    loss2 = -logprob[idx, new_index].sum() / n
    pred = logprob.at[idx, idx].set(-LARGE_NUMBER)
    acc = (jnp.argmax(pred, axis=1) == labels).astype(jnp.float32)
    return (loss1 + loss2) / 2, acc


if __name__ == "__main__":
    key = jax.random.PRNGKey(0)
    kb1, kn1, kn2, kb2, km1, km2, kr1, kr2 = jax.random.split(key, 8)

    # Case 1: contrastive-style paired data (row i pairs with row i + n/2), multi-tile grid.
    n, d, d2 = 256, 32, 64
    half = n // 2
    base_z = jax.random.normal(kb1, (half, d), dtype=jnp.float32)
    z = jnp.concatenate(
        [base_z + 0.05 * jax.random.normal(kn1, (half, d), dtype=jnp.float32),
         base_z + 0.05 * jax.random.normal(kn2, (half, d), dtype=jnp.float32)], axis=0)
    base_c = jax.random.normal(kb2, (half, d2), dtype=jnp.float32)
    z_clip = jnp.concatenate(
        [base_c + 0.05 * jax.random.normal(km1, (half, d2), dtype=jnp.float32),
         base_c + 0.05 * jax.random.normal(km2, (half, d2), dtype=jnp.float32)], axis=0)

    tau = 0.5
    ref_loss, ref_acc = _reference(z, z_clip, tau=tau)

    # f32 matmul path: tight comparison.
    loss32, acc32 = ntxent_newp(z, z_clip, tau=tau, use_bf16_matmul=False)
    jax.block_until_ready((loss32, acc32))
    assert jnp.allclose(loss32, ref_loss, atol=1e-4, rtol=1e-4), (loss32, ref_loss)
    assert jnp.array_equal(acc32, ref_acc), "f32 acc mismatch (case 1)"

    # bf16-matmul path (default, higher MXU throughput): looser loss tolerance.
    loss16, acc16 = ntxent_newp(z, z_clip, tau=tau)
    jax.block_until_ready((loss16, acc16))
    assert jnp.allclose(loss16, ref_loss, atol=5e-2, rtol=5e-2), (loss16, ref_loss)
    assert jnp.array_equal(acc16, ref_acc), "bf16 acc mismatch (case 1)"

    # Case 2: fully random inputs, single-tile path, f32 tight comparison.
    n2, d_2, d2_2 = 64, 32, 32
    z_b = jax.random.normal(kr1, (n2, d_2), dtype=jnp.float32)
    zc_b = jax.random.normal(kr2, (n2, d2_2), dtype=jnp.float32)
    ref_loss2, ref_acc2 = _reference(z_b, zc_b, tau=1.0)
    loss_b, acc_b = ntxent_newp(z_b, zc_b, tau=1.0, use_bf16_matmul=False)
    jax.block_until_ready((loss_b, acc_b))
    assert jnp.allclose(loss_b, ref_loss2, atol=1e-4, rtol=1e-4), (loss_b, ref_loss2)
    assert jnp.array_equal(acc_b, ref_acc2), "f32 acc mismatch (case 2)"

    print("KERNEL_OK")
</pallas_src>

<mosaic_0001>
module attributes {stable_mosaic.version = 11 : i64} {
  func.func @_ntxent_tile_kernel(%arg0: i32, %arg1: memref<128x32xf32, #tpu.memory_space<vmem>>, %arg2: memref<32x256xf32, #tpu.memory_space<vmem>>, %arg3: memref<128x64xf32, #tpu.memory_space<vmem>>, %arg4: memref<64x256xf32, #tpu.memory_space<vmem>>, %arg5: memref<1x1x1xf32, #tpu.memory_space<vmem>>, %arg6: memref<128x1xf32, #tpu.memory_space<vmem>>) attributes {dimension_semantics = [#tpu.dimension_semantics<parallel>], iteration_bounds = array<i64: 2>, scalar_prefetch = 0 : i64, scratch_operands = 0 : i64, tpu.core_type = #tpu.core_type<tc>, window_params = [{transform_indices = @transform_0, window_bounds = array<i64: 128, 32>}, {pipeline_mode = #tpu.pipeline_mode<synchronous>, transform_indices = @transform_1, window_bounds = array<i64: 32, 256>}, {transform_indices = @transform_2, window_bounds = array<i64: 128, 64>}, {pipeline_mode = #tpu.pipeline_mode<synchronous>, transform_indices = @transform_3, window_bounds = array<i64: 64, 256>}, {transform_indices = @transform_4, window_bounds = array<i64: 1, 1, 1>}, {transform_indices = @transform_5, window_bounds = array<i64: 128, 1>}]} {
    %c128_i32 = arith.constant 128 : i32
    %0 = arith.muli %arg0, %c128_i32 : i32
    %1 = tpu.iota {dimensions = array<i32: 1>} : vector<128x256xi32>
    %2 = tpu.iota {dimensions = array<i32: 0>} : vector<128x1xi32>
    %3 = vector.broadcast %0 : i32 to vector<128x1xi32>
    %4 = arith.addi %3, %2 : vector<128x1xi32>
    %c128_i32_0 = arith.constant 128 : i32
    %5 = vector.broadcast %c128_i32_0 : i32 to vector<128x1xi32>
    %6 = arith.addi %4, %5 : vector<128x1xi32>
    %c256_i32 = arith.constant 256 : i32
    %c0_i32 = arith.constant 0 : i32
    %7 = arith.cmpi eq, %c256_i32, %c0_i32 : i32
    %c1_i32 = arith.constant 1 : i32
    %8 = arith.select %7, %c1_i32, %c256_i32 : i32
    %9 = vector.broadcast %8 : i32 to vector<128x1xi32>
    %10 = arith.remsi %6, %9 : vector<128x1xi32>
    %c0_i32_1 = arith.constant 0 : i32
    %11 = vector.broadcast %c0_i32_1 : i32 to vector<128x1xi32>
    %12 = arith.cmpi ne, %10, %11 : vector<128x1xi32>
    %c0_i32_2 = arith.constant 0 : i32
    %13 = vector.broadcast %c0_i32_2 : i32 to vector<128x1xi32>
    %14 = arith.cmpi slt, %10, %13 : vector<128x1xi32>
    %c0_i32_3 = arith.constant 0 : i32
    %15 = arith.cmpi slt, %8, %c0_i32_3 : i32
    %16 = vector.broadcast %15 : i1 to vector<128x1xi1>
    %17 = vector.broadcast %16 : vector<128x1xi1> to vector<128x1xi1>
    %18 = arith.xori %14, %17 : vector<128x1xi1>
    %19 = arith.andi %18, %12 : vector<128x1xi1>
    %20 = vector.broadcast %8 : i32 to vector<128x1xi32>
    %21 = arith.addi %10, %20 : vector<128x1xi32>
    %22 = arith.select %19, %21, %10 : vector<128x1xi1>, vector<128x1xi32>
    %23 = vector.broadcast %4 : vector<128x1xi32> to vector<128x256xi32>
    %24 = arith.cmpi eq, %1, %23 : vector<128x256xi32>
    %25 = vector.broadcast %22 : vector<128x1xi32> to vector<128x256xi32>
    %26 = arith.cmpi eq, %1, %25 : vector<128x256xi32>
    %c0 = arith.constant 0 : index
    %c0_4 = arith.constant 0 : index
    %27 = vector.load %arg1[%c0, %c0_4] : memref<128x32xf32, #tpu.memory_space<vmem>>, vector<128x32xf32>
    %c0_5 = arith.constant 0 : index
    %c0_6 = arith.constant 0 : index
    %28 = vector.load %arg2[%c0_5, %c0_6] : memref<32x256xf32, #tpu.memory_space<vmem>>, vector<32x256xf32>
    %cst = arith.constant dense<0.000000e+00> : vector<128x256xf32>
    %29 = tpu.matmul %27, %28, %cst {dimension_numbers = #tpu.dot_dimension_numbers<[1], [0], [0], [1], [0, 0, 1, 1], [], []>} : vector<128x32xf32>, vector<32x256xf32>, vector<128x256xf32> -> vector<128x256xf32>
    %cst_7 = arith.constant -1.000000e+09 : f32
    %30 = vector.broadcast %cst_7 : f32 to vector<128x256xf32>
    %31 = arith.select %24, %30, %29 : vector<128x256xi1>, vector<128x256xf32>
    %cst_8 = arith.constant dense<0xFF800000> : vector<128xf32>
    %32 = vector.multi_reduction <maximumf>, %31, %cst_8 [1] : vector<128x256xf32> to vector<128xf32>
    %33 = vector.shape_cast %32 : vector<128xf32> to vector<128x1xf32>
    %34 = vector.broadcast %33 : vector<128x1xf32> to vector<128x256xf32>
    %35 = arith.subf %31, %34 : vector<128x256xf32>
    %36 = math.exp %35 : vector<128x256xf32>
    %cst_9 = arith.constant dense<0.000000e+00> : vector<128xf32>
    %37 = vector.multi_reduction <add>, %36, %cst_9 [1] : vector<128x256xf32> to vector<128xf32>
    %38 = vector.shape_cast %37 : vector<128xf32> to vector<128x1xf32>
    %39 = math.log %38 : vector<128x1xf32>
    %40 = arith.addf %33, %39 : vector<128x1xf32>
    %c0_10 = arith.constant 0 : index
    %c0_11 = arith.constant 0 : index
    %41 = vector.load %arg3[%c0_10, %c0_11] : memref<128x64xf32, #tpu.memory_space<vmem>>, vector<128x64xf32>
    %c0_12 = arith.constant 0 : index
    %c0_13 = arith.constant 0 : index
    %42 = vector.load %arg4[%c0_12, %c0_13] : memref<64x256xf32, #tpu.memory_space<vmem>>, vector<64x256xf32>
    %cst_14 = arith.constant dense<0.000000e+00> : vector<128x256xf32>
    %43 = tpu.matmul %41, %42, %cst_14 {dimension_numbers = #tpu.dot_dimension_numbers<[1], [0], [0], [1], [0, 0, 1, 1], [], []>} : vector<128x64xf32>, vector<64x256xf32>, vector<128x256xf32> -> vector<128x256xf32>
    %44 = arith.ori %24, %26 : vector<128x256xi1>
    %cst_15 = arith.constant -1.000000e+00 : f32
    %45 = vector.broadcast %cst_15 : f32 to vector<128x256xf32>
    %46 = arith.select %44, %45, %43 : vector<128x256xi1>, vector<128x256xf32>
    %cst_16 = arith.constant dense<0xFF800000> : vector<128xf32>
    %47 = vector.multi_reduction <maximumf>, %46, %cst_16 [1] : vector<128x256xf32> to vector<128xf32>
    %48 = vector.shape_cast %47 : vector<128xf32> to vector<128x1xf32>
    %49 = vector.broadcast %48 : vector<128x1xf32> to vector<128x256xf32>
    %50 = arith.cmpf oeq, %46, %49 : vector<128x256xf32>
    %c256_i32_17 = arith.constant 256 : i32
    %51 = vector.broadcast %c256_i32_17 : i32 to vector<128x256xi32>
    %52 = arith.select %50, %1, %51 : vector<128x256xi1>, vector<128x256xi32>
    %cst_18 = arith.constant dense<2147483647> : vector<128xi32>
    %53 = vector.multi_reduction <minsi>, %52, %cst_18 [1] : vector<128x256xi32> to vector<128xi32>
    %54 = vector.shape_cast %53 : vector<128xi32> to vector<128x1xi32>
    %55 = vector.broadcast %54 : vector<128x1xi32> to vector<128x256xi32>
    %56 = arith.cmpi eq, %1, %55 : vector<128x256xi32>
    %57 = arith.extui %26 : vector<128x256xi1> to vector<128x256xi32>
    %58 = arith.sitofp %57 : vector<128x256xi32> to vector<128x256xf32>
    %59 = arith.extui %56 : vector<128x256xi1> to vector<128x256xi32>
    %60 = arith.sitofp %59 : vector<128x256xi32> to vector<128x256xf32>
    %61 = arith.addf %58, %60 : vector<128x256xf32>
    %62 = vector.shape_cast %40 : vector<128x1xf32> to vector<1x128x1xf32>
    %cst_19 = arith.constant dense<0.000000e+00> : vector<1xf32>
    %63 = vector.multi_reduction <add>, %62, %cst_19 [1, 2] : vector<1x128x1xf32> to vector<1xf32>
    %64 = vector.shape_cast %63 : vector<1xf32> to vector<1x1x1xf32>
    %65 = vector.extract %64[0, 0, 0] : f32 from vector<1x1x1xf32>
    %cst_20 = arith.constant 2.000000e+00 : f32
    %66 = arith.mulf %cst_20, %65 : f32
    %67 = arith.mulf %61, %31 : vector<128x256xf32>
    %68 = vector.shape_cast %67 : vector<128x256xf32> to vector<1x128x256xf32>
    %cst_21 = arith.constant dense<0.000000e+00> : vector<1xf32>
    %69 = vector.multi_reduction <add>, %68, %cst_21 [1, 2] : vector<1x128x256xf32> to vector<1xf32>
    %70 = vector.shape_cast %69 : vector<1xf32> to vector<1x1x1xf32>
    %71 = vector.extract %70[0, 0, 0] : f32 from vector<1x1x1xf32>
    %72 = arith.subf %66, %71 : f32
    %73 = vector.broadcast %72 : f32 to vector<1x1x1xf32>
    %c0_22 = arith.constant 0 : index
    %c0_23 = arith.constant 0 : index
    %c0_24 = arith.constant 0 : index
    %74 = vector.load %arg5[%c0_22, %c0_23, %c0_24] : memref<1x1x1xf32, #tpu.memory_space<vmem>>, vector<1x1x1xf32>
    tpu.vector_store %arg5[%c0_22, %c0_23, %c0_24], %73 {strides = array<i32>} : memref<1x1x1xf32, #tpu.memory_space<vmem>>, vector<1x1x1xf32>,
    %75 = vector.broadcast %33 : vector<128x1xf32> to vector<128x256xf32>
    %76 = arith.cmpf oeq, %31, %75 : vector<128x256xf32>
    %c256_i32_25 = arith.constant 256 : i32
    %77 = vector.broadcast %c256_i32_25 : i32 to vector<128x256xi32>
    %78 = arith.select %76, %1, %77 : vector<128x256xi1>, vector<128x256xi32>
    %cst_26 = arith.constant dense<2147483647> : vector<128xi32>
    %79 = vector.multi_reduction <minsi>, %78, %cst_26 [1] : vector<128x256xi32> to vector<128xi32>
    %80 = vector.shape_cast %79 : vector<128xi32> to vector<128x1xi32>
    %81 = arith.cmpi eq, %80, %22 : vector<128x1xi32>
    %82 = arith.extui %81 : vector<128x1xi1> to vector<128x1xi32>
    %83 = arith.sitofp %82 : vector<128x1xi32> to vector<128x1xf32>
    %c0_27 = arith.constant 0 : index
    %c0_28 = arith.constant 0 : index
    %84 = vector.load %arg6[%c0_27, %c0_28] : memref<128x1xf32, #tpu.memory_space<vmem>>, vector<128x1xf32>
    tpu.vector_store %arg6[%c0_27, %c0_28], %83 {strides = array<i32>} : memref<128x1xf32, #tpu.memory_space<vmem>>, vector<128x1xf32>,
    return
  }
  func.func @transform_0(%arg0: i32) -> (i32, i32) {
    %c0_i32 = arith.constant 0 : i32
    %c0_i32_0 = arith.constant 0 : i32
    return %arg0, %c0_i32 : i32, i32
  }
  func.func @transform_1(%arg0: i32) -> (i32, i32) {
    %c0_i32 = arith.constant 0 : i32
    %c0_i32_0 = arith.constant 0 : i32
    %c0_i32_1 = arith.constant 0 : i32
    return %c0_i32, %c0_i32_0 : i32, i32
  }
  func.func @transform_2(%arg0: i32) -> (i32, i32) {
    %c0_i32 = arith.constant 0 : i32
    %c0_i32_0 = arith.constant 0 : i32
    return %arg0, %c0_i32 : i32, i32
  }
  func.func @transform_3(%arg0: i32) -> (i32, i32) {
    %c0_i32 = arith.constant 0 : i32
    %c0_i32_0 = arith.constant 0 : i32
    %c0_i32_1 = arith.constant 0 : i32
    return %c0_i32, %c0_i32_0 : i32, i32
  }
  func.func @transform_4(%arg0: i32) -> (i32, i32, i32) {
    %c0_i32 = arith.constant 0 : i32
    %c0_i32_0 = arith.constant 0 : i32
    %c0_i32_1 = arith.constant 0 : i32
    return %arg0, %c0_i32, %c0_i32_0 : i32, i32, i32
  }
  func.func @transform_5(%arg0: i32) -> (i32, i32) {
    %c0_i32 = arith.constant 0 : i32
    %c0_i32_0 = arith.constant 0 : i32
    return %arg0, %c0_i32 : i32, i32
  }
}

module attributes {stable_mosaic.version = 11 : i64} {
  func.func @_ntxent_tile_kernel(%arg0: i32, %arg1: memref<128x32xf32, #tpu.memory_space<vmem>>, %arg2: memref<32x256xf32, #tpu.memory_space<vmem>>, %arg3: memref<128x64xf32, #tpu.memory_space<vmem>>, %arg4: memref<64x256xf32, #tpu.memory_space<vmem>>, %arg5: memref<1x1x1xf32, #tpu.memory_space<vmem>>, %arg6: memref<128x1xf32, #tpu.memory_space<vmem>>) attributes {dimension_semantics = [#tpu.dimension_semantics<parallel>], iteration_bounds = array<i64: 2>, scalar_prefetch = 0 : i64, scratch_operands = 0 : i64, tpu.core_type = #tpu.core_type<tc>, window_params = [{transform_indices = @transform_0, window_bounds = array<i64: 128, 32>}, {pipeline_mode = #tpu.pipeline_mode<synchronous>, transform_indices = @transform_1, window_bounds = array<i64: 32, 256>}, {transform_indices = @transform_2, window_bounds = array<i64: 128, 64>}, {pipeline_mode = #tpu.pipeline_mode<synchronous>, transform_indices = @transform_3, window_bounds = array<i64: 64, 256>}, {transform_indices = @transform_4, window_bounds = array<i64: 1, 1, 1>}, {transform_indices = @transform_5, window_bounds = array<i64: 128, 1>}]} {
    %c128_i32 = arith.constant 128 : i32
    %0 = arith.muli %arg0, %c128_i32 : i32
    %1 = tpu.iota {dimensions = array<i32: 1>} : vector<128x256xi32>
    %2 = tpu.iota {dimensions = array<i32: 0>} : vector<128x1xi32>
    %3 = vector.broadcast %0 : i32 to vector<128x1xi32>
    %4 = arith.addi %3, %2 : vector<128x1xi32>
    %c128_i32_0 = arith.constant 128 : i32
    %5 = vector.broadcast %c128_i32_0 : i32 to vector<128x1xi32>
    %6 = arith.addi %4, %5 : vector<128x1xi32>
    %c256_i32 = arith.constant 256 : i32
    %c0_i32 = arith.constant 0 : i32
    %7 = arith.cmpi eq, %c256_i32, %c0_i32 : i32
    %c1_i32 = arith.constant 1 : i32
    %8 = arith.select %7, %c1_i32, %c256_i32 : i32
    %9 = vector.broadcast %8 : i32 to vector<128x1xi32>
    %10 = arith.remsi %6, %9 : vector<128x1xi32>
    %c0_i32_1 = arith.constant 0 : i32
    %11 = vector.broadcast %c0_i32_1 : i32 to vector<128x1xi32>
    %12 = arith.cmpi ne, %10, %11 : vector<128x1xi32>
    %c0_i32_2 = arith.constant 0 : i32
    %13 = vector.broadcast %c0_i32_2 : i32 to vector<128x1xi32>
    %14 = arith.cmpi slt, %10, %13 : vector<128x1xi32>
    %c0_i32_3 = arith.constant 0 : i32
    %15 = arith.cmpi slt, %8, %c0_i32_3 : i32
    %16 = vector.broadcast %15 : i1 to vector<128x1xi1>
    %17 = vector.broadcast %16 : vector<128x1xi1> to vector<128x1xi1>
    %18 = arith.xori %14, %17 : vector<128x1xi1>
    %19 = arith.andi %18, %12 : vector<128x1xi1>
    %20 = vector.broadcast %8 : i32 to vector<128x1xi32>
    %21 = arith.addi %10, %20 : vector<128x1xi32>
    %22 = arith.select %19, %21, %10 : vector<128x1xi1>, vector<128x1xi32>
    %23 = vector.broadcast %4 : vector<128x1xi32> to vector<128x256xi32>
    %24 = arith.cmpi eq, %1, %23 : vector<128x256xi32>
    %25 = vector.broadcast %22 : vector<128x1xi32> to vector<128x256xi32>
    %26 = arith.cmpi eq, %1, %25 : vector<128x256xi32>
    %c0 = arith.constant 0 : index
    %c0_4 = arith.constant 0 : index
    %27 = vector.load %arg1[%c0, %c0_4] : memref<128x32xf32, #tpu.memory_space<vmem>>, vector<128x32xf32>
    %c0_5 = arith.constant 0 : index
    %c0_6 = arith.constant 0 : index
    %28 = vector.load %arg2[%c0_5, %c0_6] : memref<32x256xf32, #tpu.memory_space<vmem>>, vector<32x256xf32>
    %cst = arith.constant dense<0.000000e+00> : vector<128x256xf32>
    %29 = tpu.matmul %27, %28, %cst {dimension_numbers = #tpu.dot_dimension_numbers<[1], [0], [0], [1], [0, 0, 1, 1], [], []>} : vector<128x32xf32>, vector<32x256xf32>, vector<128x256xf32> -> vector<128x256xf32>
    %cst_7 = arith.constant -1.000000e+09 : f32
    %30 = vector.broadcast %cst_7 : f32 to vector<128x256xf32>
    %31 = arith.select %24, %30, %29 : vector<128x256xi1>, vector<128x256xf32>
    %cst_8 = arith.constant dense<0xFF800000> : vector<128xf32>
    %32 = vector.multi_reduction <maximumf>, %31, %cst_8 [1] : vector<128x256xf32> to vector<128xf32>
    %33 = vector.shape_cast %32 : vector<128xf32> to vector<128x1xf32>
    %34 = vector.broadcast %33 : vector<128x1xf32> to vector<128x256xf32>
    %35 = arith.subf %31, %34 : vector<128x256xf32>
    %36 = math.exp %35 : vector<128x256xf32>
    %cst_9 = arith.constant dense<0.000000e+00> : vector<128xf32>
    %37 = vector.multi_reduction <add>, %36, %cst_9 [1] : vector<128x256xf32> to vector<128xf32>
    %38 = vector.shape_cast %37 : vector<128xf32> to vector<128x1xf32>
    %39 = math.log %38 : vector<128x1xf32>
    %40 = arith.addf %33, %39 : vector<128x1xf32>
    %c0_10 = arith.constant 0 : index
    %c0_11 = arith.constant 0 : index
    %41 = vector.load %arg3[%c0_10, %c0_11] : memref<128x64xf32, #tpu.memory_space<vmem>>, vector<128x64xf32>
    %c0_12 = arith.constant 0 : index
    %c0_13 = arith.constant 0 : index
    %42 = vector.load %arg4[%c0_12, %c0_13] : memref<64x256xf32, #tpu.memory_space<vmem>>, vector<64x256xf32>
    %cst_14 = arith.constant dense<0.000000e+00> : vector<128x256xf32>
    %43 = tpu.matmul %41, %42, %cst_14 {dimension_numbers = #tpu.dot_dimension_numbers<[1], [0], [0], [1], [0, 0, 1, 1], [], []>} : vector<128x64xf32>, vector<64x256xf32>, vector<128x256xf32> -> vector<128x256xf32>
    %44 = arith.ori %24, %26 : vector<128x256xi1>
    %cst_15 = arith.constant -1.000000e+00 : f32
    %45 = vector.broadcast %cst_15 : f32 to vector<128x256xf32>
    %46 = arith.select %44, %45, %43 : vector<128x256xi1>, vector<128x256xf32>
    %cst_16 = arith.constant dense<0xFF800000> : vector<128xf32>
    %47 = vector.multi_reduction <maximumf>, %46, %cst_16 [1] : vector<128x256xf32> to vector<128xf32>
    %48 = vector.shape_cast %47 : vector<128xf32> to vector<128x1xf32>
    %49 = vector.broadcast %48 : vector<128x1xf32> to vector<128x256xf32>
    %50 = arith.cmpf oeq, %46, %49 : vector<128x256xf32>
    %c256_i32_17 = arith.constant 256 : i32
    %51 = vector.broadcast %c256_i32_17 : i32 to vector<128x256xi32>
    %52 = arith.select %50, %1, %51 : vector<128x256xi1>, vector<128x256xi32>
    %cst_18 = arith.constant dense<2147483647> : vector<128xi32>
    %53 = vector.multi_reduction <minsi>, %52, %cst_18 [1] : vector<128x256xi32> to vector<128xi32>
    %54 = vector.shape_cast %53 : vector<128xi32> to vector<128x1xi32>
    %55 = vector.broadcast %54 : vector<128x1xi32> to vector<128x256xi32>
    %56 = arith.cmpi eq, %1, %55 : vector<128x256xi32>
    %57 = arith.extui %26 : vector<128x256xi1> to vector<128x256xi32>
    %58 = arith.sitofp %57 : vector<128x256xi32> to vector<128x256xf32>
    %59 = arith.extui %56 : vector<128x256xi1> to vector<128x256xi32>
    %60 = arith.sitofp %59 : vector<128x256xi32> to vector<128x256xf32>
    %61 = arith.addf %58, %60 : vector<128x256xf32>
    %62 = vector.shape_cast %40 : vector<128x1xf32> to vector<1x128x1xf32>
    %cst_19 = arith.constant dense<0.000000e+00> : vector<1xf32>
    %63 = vector.multi_reduction <add>, %62, %cst_19 [1, 2] : vector<1x128x1xf32> to vector<1xf32>
    %64 = vector.shape_cast %63 : vector<1xf32> to vector<1x1x1xf32>
    %65 = vector.extract %64[0, 0, 0] : f32 from vector<1x1x1xf32>
    %cst_20 = arith.constant 2.000000e+00 : f32
    %66 = arith.mulf %cst_20, %65 : f32
    %67 = arith.mulf %61, %31 : vector<128x256xf32>
    %68 = vector.shape_cast %67 : vector<128x256xf32> to vector<1x128x256xf32>
    %cst_21 = arith.constant dense<0.000000e+00> : vector<1xf32>
    %69 = vector.multi_reduction <add>, %68, %cst_21 [1, 2] : vector<1x128x256xf32> to vector<1xf32>
    %70 = vector.shape_cast %69 : vector<1xf32> to vector<1x1x1xf32>
    %71 = vector.extract %70[0, 0, 0] : f32 from vector<1x1x1xf32>
    %72 = arith.subf %66, %71 : f32
    %73 = vector.broadcast %72 : f32 to vector<1x1x1xf32>
    %c0_22 = arith.constant 0 : index
    %c0_23 = arith.constant 0 : index
    %c0_24 = arith.constant 0 : index
    %74 = vector.load %arg5[%c0_22, %c0_23, %c0_24] : memref<1x1x1xf32, #tpu.memory_space<vmem>>, vector<1x1x1xf32>
    tpu.vector_store %arg5[%c0_22, %c0_23, %c0_24], %73 {strides = array<i32>} : memref<1x1x1xf32, #tpu.memory_space<vmem>>, vector<1x1x1xf32>,
    %75 = vector.broadcast %33 : vector<128x1xf32> to vector<128x256xf32>
    %76 = arith.cmpf oeq, %31, %75 : vector<128x256xf32>
    %c256_i32_25 = arith.constant 256 : i32
    %77 = vector.broadcast %c256_i32_25 : i32 to vector<128x256xi32>
    %78 = arith.select %76, %1, %77 : vector<128x256xi1>, vector<128x256xi32>
    %cst_26 = arith.constant dense<2147483647> : vector<128xi32>
    %79 = vector.multi_reduction <minsi>, %78, %cst_26 [1] : vector<128x256xi32> to vector<128xi32>
    %80 = vector.shape_cast %79 : vector<128xi32> to vector<128x1xi32>
    %81 = arith.cmpi eq, %80, %22 : vector<128x1xi32>
    %82 = arith.extui %81 : vector<128x1xi1> to vector<128x1xi32>
    %83 = arith.sitofp %82 : vector<128x1xi32> to vector<128x1xf32>
    %c0_27 = arith.constant 0 : index
    %c0_28 = arith.constant 0 : index
    %84 = vector.load %arg6[%c0_27, %c0_28] : memref<128x1xf32, #tpu.memory_space<vmem>>, vector<128x1xf32>
    tpu.vector_store %arg6[%c0_27, %c0_28], %83 {strides = array<i32>} : memref<128x1xf32, #tpu.memory_space<vmem>>, vector<128x1xf32>,
    return
  }
  func.func @transform_0(%arg0: i32) -> (i32, i32) {
    %c0_i32 = arith.constant 0 : i32
    %c0_i32_0 = arith.constant 0 : i32
    return %arg0, %c0_i32 : i32, i32
  }
  func.func @transform_1(%arg0: i32) -> (i32, i32) {
    %c0_i32 = arith.constant 0 : i32
    %c0_i32_0 = arith.constant 0 : i32
    %c0_i32_1 = arith.constant 0 : i32
    return %c0_i32, %c0_i32_0 : i32, i32
  }
  func.func @transform_2(%arg0: i32) -> (i32, i32) {
    %c0_i32 = arith.constant 0 : i32
    %c0_i32_0 = arith.constant 0 : i32
    return %arg0, %c0_i32 : i32, i32
  }
  func.func @transform_3(%arg0: i32) -> (i32, i32) {
    %c0_i32 = arith.constant 0 : i32
    %c0_i32_0 = arith.constant 0 : i32
    %c0_i32_1 = arith.constant 0 : i32
    return %c0_i32, %c0_i32_0 : i32, i32
  }
  func.func @transform_4(%arg0: i32) -> (i32, i32, i32) {
    %c0_i32 = arith.constant 0 : i32
    %c0_i32_0 = arith.constant 0 : i32
    %c0_i32_1 = arith.constant 0 : i32
    return %arg0, %c0_i32, %c0_i32_0 : i32, i32, i32
  }
  func.func @transform_5(%arg0: i32) -> (i32, i32) {
    %c0_i32 = arith.constant 0 : i32
    %c0_i32_0 = arith.constant 0 : i32
    return %arg0, %c0_i32 : i32, i32
  }
}

</mosaic_0001>

<llo_original>
// kernel: tpu_custom_call.1
$region0: #{tpu_custom_call.1}
  #allocation0 [shape = 'u32[]', space=smem, size = 0x4, offset = 0x4, fixed_abs, tag = 'smem constant byte address 0x4 - core index']
  #allocation1 [shape = 'u32[144,128]{1,0:T(1,128)}', space=vmem, size = 0x12000, scoped, tag = 'internal scratch']
  %s0 = inlined_call_operand.vmem [shape: f32[256,32], index: 0, kind: input, shape index: {}]
  %s1 = inlined_call_operand.vmem [shape: f32[32,256], index: 1, kind: input, shape index: {}]
  %s2 = inlined_call_operand.vmem [shape: f32[256,64], index: 2, kind: input, shape index: {}]
  %s3 = inlined_call_operand.vmem [shape: f32[64,256], index: 3, kind: input, shape index: {}]
  %s4 = inlined_call_operand.vmem [shape: f32[2,1,1], index: 4, kind: output, shape index: {0}]
  %s5 = inlined_call_operand.vmem [shape: f32[256,1], index: 5, kind: output, shape index: {1}]
  %6 = xla_tuple %s4, %s5
  %s7 = sld [smem:[#allocation0]]
  $region57: #{tpu_custom_call.1} parent=0
    _
  %s9 = ssub.s32 1, %s7
  %s10 = scalar_select 0, %s9, %s7
  loop: start=0, step=1, limit=4
  $region2: #{tpu_custom_call.1} parent=0 // loop_pre_header
    _
  $region3: #{tpu_custom_call.1} parent=0 // loop_header
    %s12 = sphi 0, %s16
    %p13 = scmp.ge.s32.totalorder %s12, 4
    %s22 = sphi 0, %s24
    %s25 = sphi 0, %s22
    %s26 = sphi 0, %s25
    %s42 = sphi 0, %s26
    %s46 = sphi 0, %s46
    %s48 = sphi 0, %s46
    %s49 = sphi 0, %s48
    %s63 = sphi 0, %s49
    %s69 = sphi 0, %s71
    %s72 = sphi 0, %s69
    %s73 = sphi 0, %s72
    %s89 = sphi 0, %s73
    %s93 = sphi 0, %s93
    %s95 = sphi 0, %s93
    %s96 = sphi 0, %s95
    %s110 = sphi 0, %s96
    %s116 = sphi 0, %s118
    %s119 = sphi 0, %s116
    %s120 = sphi 0, %s119
    %s136 = sphi 0, %s120
    %s142 = sphi 0, %s144
    %s145 = sphi 0, %s142
    %s146 = sphi 0, %s145
    %s162 = sphi 0, %s146
  $region4: #{tpu_custom_call.1} parent=0 // loop_header_branch
    %15 = sbr.rel (%p13) target = $region8
  $region5: #{tpu_custom_call.1} parent=0 // loop_body
    %s17 = ssub.s32 %s12, 1
    %s18 = ssub.s32 %s12, 2
    %s19 = sadd.s32 %s12, 1
    %s20 = ssub.s32 %s12, %s19
    %p21 = scmp.eq.s32.totalorder %s20, 0
    %s23 = sadd.s32 %s22, 1
    %s24 = scalar_select %p21, %s22, %s23
    %p27 = pneg %p21
    %p28 = scmp.eq.s32.totalorder %s12, 1
    %p29 = por %p27, %p28
    %p30 = scmp.ne.s32.totalorder %s22, %s25
    %p31 = scmp.eq.s32.totalorder %s12, 0
    %p32 = por %p30, %p31
    %p33 = scmp.ne.s32.totalorder %s22, %s25
    %p34 = scmp.eq.s32.totalorder %s17, 1
    %p35 = por %p33, %p34
    %p36 = scmp.ne.s32.totalorder %s25, %s26
    %p37 = scmp.eq.s32.totalorder %s17, 0
    %p38 = por %p36, %p37
    %p39 = scmp.ne.s32.totalorder %s25, %s26
    %p40 = scmp.eq.s32.totalorder %s18, 1
    %p41 = por %p39, %p40
    %p43 = scmp.ne.s32.totalorder %s26, %s42
    %p44 = scmp.eq.s32.totalorder %s18, 0
    %p45 = por %p43, %p44
    %s47 = sadd.s32 %s46, 1
    %p50 = scmp.eq.s32.totalorder %s12, 1
    %p51 = scmp.ne.s32.totalorder %s46, %s48
    %p52 = scmp.eq.s32.totalorder %s12, 0
    %p53 = por %p51, %p52
    %p54 = scmp.ne.s32.totalorder %s46, %s48
    %p55 = scmp.eq.s32.totalorder %s17, 1
    %p56 = por %p54, %p55
    %p57 = scmp.ne.s32.totalorder %s48, %s49
    %p58 = scmp.eq.s32.totalorder %s17, 0
    %p59 = por %p57, %p58
    %p60 = scmp.ne.s32.totalorder %s48, %s49
    %p61 = scmp.eq.s32.totalorder %s18, 1
    %p62 = por %p60, %p61
    %p64 = scmp.ne.s32.totalorder %s49, %s63
    %p65 = scmp.eq.s32.totalorder %s18, 0
    %p66 = por %p64, %p65
    %s67 = ssub.s32 %s12, %s19
    %p68 = scmp.eq.s32.totalorder %s67, 0
    %s70 = sadd.s32 %s69, 1
    %s71 = scalar_select %p68, %s69, %s70
    %p74 = pneg %p68
    %p75 = scmp.eq.s32.totalorder %s12, 1
    %p76 = por %p74, %p75
    %p77 = scmp.ne.s32.totalorder %s69, %s72
    %p78 = scmp.eq.s32.totalorder %s12, 0
    %p79 = por %p77, %p78
    %p80 = scmp.ne.s32.totalorder %s69, %s72
    %p81 = scmp.eq.s32.totalorder %s17, 1
    %p82 = por %p80, %p81
    %p83 = scmp.ne.s32.totalorder %s72, %s73
    %p84 = scmp.eq.s32.totalorder %s17, 0
    %p85 = por %p83, %p84
    %p86 = scmp.ne.s32.totalorder %s72, %s73
    %p87 = scmp.eq.s32.totalorder %s18, 1
    %p88 = por %p86, %p87
    %p90 = scmp.ne.s32.totalorder %s73, %s89
    %p91 = scmp.eq.s32.totalorder %s18, 0
    %p92 = por %p90, %p91
    %s94 = sadd.s32 %s93, 1
    %p97 = scmp.eq.s32.totalorder %s12, 1
    %p98 = scmp.ne.s32.totalorder %s93, %s95
    %p99 = scmp.eq.s32.totalorder %s12, 0
    %p100 = por %p98, %p99
    %p101 = scmp.ne.s32.totalorder %s93, %s95
    %p102 = scmp.eq.s32.totalorder %s17, 1
    %p103 = por %p101, %p102
    %p104 = scmp.ne.s32.totalorder %s95, %s96
    %p105 = scmp.eq.s32.totalorder %s17, 0
    %p106 = por %p104, %p105
    %p107 = scmp.ne.s32.totalorder %s95, %s96
    %p108 = scmp.eq.s32.totalorder %s18, 1
    %p109 = por %p107, %p108
    %p111 = scmp.ne.s32.totalorder %s96, %s110
    %p112 = scmp.eq.s32.totalorder %s18, 0
    %p113 = por %p111, %p112
    %s114 = ssub.s32 %s12, %s19
    %p115 = scmp.eq.s32.totalorder %s114, 0
    %s117 = sadd.s32 %s116, 1
    %s118 = scalar_select %p115, %s116, %s117
    %p121 = pneg %p115
    %p122 = scmp.eq.s32.totalorder %s12, 1
    %p123 = por %p121, %p122
    %p124 = scmp.ne.s32.totalorder %s116, %s119
    %p125 = scmp.eq.s32.totalorder %s12, 0
    %p126 = por %p124, %p125
    %p127 = scmp.ne.s32.totalorder %s116, %s119
    %p128 = scmp.eq.s32.totalorder %s17, 1
    %p129 = por %p127, %p128
    %p130 = scmp.ne.s32.totalorder %s119, %s120
    %p131 = scmp.eq.s32.totalorder %s17, 0
    %p132 = por %p130, %p131
    %p133 = scmp.ne.s32.totalorder %s119, %s120
    %p134 = scmp.eq.s32.totalorder %s18, 1
    %p135 = por %p133, %p134
    %p137 = scmp.ne.s32.totalorder %s120, %s136
    %p138 = scmp.eq.s32.totalorder %s18, 0
    %p139 = por %p137, %p138
    %s140 = ssub.s32 %s12, %s19
    %p141 = scmp.eq.s32.totalorder %s140, 0
    %s143 = sadd.s32 %s142, 1
    %s144 = scalar_select %p141, %s142, %s143
    %p147 = pneg %p141
    %p148 = scmp.eq.s32.totalorder %s12, 1
    %p149 = por %p147, %p148
    %p150 = scmp.ne.s32.totalorder %s142, %s145
    %p151 = scmp.eq.s32.totalorder %s12, 0
    %p152 = por %p150, %p151
    %p153 = scmp.ne.s32.totalorder %s142, %s145
    %p154 = scmp.eq.s32.totalorder %s17, 1
    %p155 = por %p153, %p154
    %p156 = scmp.ne.s32.totalorder %s145, %s146
    %p157 = scmp.eq.s32.totalorder %s17, 0
    %p158 = por %p156, %p157
    %p159 = scmp.ne.s32.totalorder %s145, %s146
    %p160 = scmp.eq.s32.totalorder %s18, 1
    %p161 = por %p159, %p160
    %p163 = scmp.ne.s32.totalorder %s146, %s162
    %p164 = scmp.eq.s32.totalorder %s18, 0
    %p165 = por %p163, %p164
    %p166 = scmp.le.s32.totalorder 1, %s12
    %p167 = scmp.lt.s32.totalorder %s12, 3
    %p168 = pnand %p166, %p167
    %p169 = pneg %p168
    // Predicated region
    $region9: #{tpu_custom_call.1} parent=5 // pred_check
      _
    $region10: #{tpu_custom_call.1} parent=5 // pred_check_branch
      %171 = sbr.rel (%p168) target = $region12
    $region11: #{tpu_custom_call.1} parent=5 // pred_region
      %s172 = ssub.s32 %s12, 1
      // Predicated region
      $region13: #{tpu_custom_call.1} parent=11 // pred_check
        %p173 = pneg %p59
      $region14: #{tpu_custom_call.1} parent=11 // pred_check_branch
        %175 = sbr.rel (%p173) target = $region16
      $region15: #{tpu_custom_call.1} parent=11 // pred_region
        _
      $region16: #{tpu_custom_call.1} parent=11 // pred_fallthru
        _
      // Predicated region
      $region17: #{tpu_custom_call.1} parent=11 // pred_check
        %p176 = pneg %p106
      $region18: #{tpu_custom_call.1} parent=11 // pred_check_branch
        %178 = sbr.rel (%p176) target = $region20
      $region19: #{tpu_custom_call.1} parent=11 // pred_region
        _
      $region20: #{tpu_custom_call.1} parent=11 // pred_fallthru
        _
    $region12: #{tpu_custom_call.1} parent=5 // pred_fallthru
      _
    %p179 = scmp.lt.s32.totalorder %s12, 2
    // Predicated region
    $region21: #{tpu_custom_call.1} parent=5 // pred_check
      %p180 = pneg %p179
    $region22: #{tpu_custom_call.1} parent=5 // pred_check_branch
      %182 = sbr.rel (%p180) target = $region24
    $region23: #{tpu_custom_call.1} parent=5 // pred_region
      // Predicated region
      $region25: #{tpu_custom_call.1} parent=23 // pred_check
        %p183 = pneg %p32
      $region26: #{tpu_custom_call.1} parent=23 // pred_check_branch
        %185 = sbr.rel (%p183) target = $region28
      $region27: #{tpu_custom_call.1} parent=23 // pred_region
        %s186 = smul.u32 16, %s12
        %p187 = scmp.lt.s32.totalorder %s186, 31
        %s188 = scalar_select %p187, %s186, 31
        %s189 = smul.addr %s188, 8
        %s190 = scalar_lea.vmem %s0, %s189
        %s191 = smul.u32 16, %s12
      $region28: #{tpu_custom_call.1} parent=23 // pred_fallthru
        _
      // Predicated region
      $region29: #{tpu_custom_call.1} parent=23 // pred_check
        %p192 = pneg %p79
      $region30: #{tpu_custom_call.1} parent=23 // pred_check_branch
        %194 = sbr.rel (%p192) target = $region32
      $region31: #{tpu_custom_call.1} parent=23 // pred_region
        %s195 = smul.u32 16, %s12
        %p196 = scmp.lt.s32.totalorder %s195, 31
        %s197 = scalar_select %p196, %s195, 31
        %s198 = smul.addr %s197, 8
        %s199 = scalar_lea.vmem %s2, %s198
        %s200 = smul.u32 16, %s12
      $region32: #{tpu_custom_call.1} parent=23 // pred_fallthru
        _
    $region24: #{tpu_custom_call.1} parent=5 // pred_fallthru
      _
    %p201 = scmp.le.s32.totalorder 1, %s12
    %p202 = scmp.lt.s32.totalorder %s12, 3
    %p203 = pnand %p201, %p202
    %p204 = pneg %p203
    // Predicated region
    $region33: #{tpu_custom_call.1} parent=5 // pred_check
      _
    $region34: #{tpu_custom_call.1} parent=5 // pred_check_branch
      %206 = sbr.rel (%p203) target = $region36
    $region35: #{tpu_custom_call.1} parent=5 // pred_region
      %s207 = ssub.s32 %s12, 1
      %s208 = smul.u32 16, %s17
      %p209 = scmp.lt.s32.totalorder %s208, 31
      %s210 = scalar_select %p209, %s208, 31
      %s211 = smul.addr %s210, 8
      %s212 = scalar_lea.vmem %s0, %s211
      %p213 = pneg %p38
      %p214 = pneg %p35
      %p215 = pneg %p59
      %p216 = pneg %p56
      %s217 = smul.u32 16, %s17
      %p218 = scmp.lt.s32.totalorder %s217, 31
      %s219 = scalar_select %p218, %s217, 31
      %s220 = smul.addr %s219, 8
      %s221 = scalar_lea.vmem %s2, %s220
      %p222 = pneg %p85
      %p223 = pneg %p82
      %p224 = pneg %p106
      %p225 = pneg %p103
      %p226 = pneg %p132
      %p227 = pneg %p129
      %p228 = scmp.lt.s32.totalorder %s17, 1
      %s229 = scalar_select %p228, %s17, 1
      %s230 = scalar_lea.vmem %s4, %s229
      %p231 = pneg %p158
      %p232 = pneg %p155
      %s233 = smul.u32 16, %s17
      %p234 = scmp.lt.s32.totalorder %s233, 31
      %s235 = scalar_select %p234, %s233, 31
      %s236 = smul.addr %s235, 8
      %s237 = scalar_lea.vmem %s5, %s236
      %s238 = smul.u32 16, %s17
      %p239 = scmp.lt.s32.totalorder %s238, 31
      %s240 = scalar_select %p239, %s238, 31
      %s241 = smul.addr %s240, 8
      %s242 = scalar_lea.vmem %s0, %s241
      %s243 = smul.u32 16, %s17
      %s244 = smul.u32 16, %s17
      %p245 = scmp.lt.s32.totalorder %s244, 31
      %s246 = scalar_select %p245, %s244, 31
      %s247 = smul.addr %s246, 8
      %s248 = scalar_lea.vmem %s2, %s247
      %s249 = smul.u32 16, %s17
      %p250 = scmp.lt.s32.totalorder %s17, 1
      %s251 = scalar_select %p250, %s17, 1
      %s252 = scalar_lea.vmem %s4, %s251
      %s253 = smul.u32 16, %s17
      %p254 = scmp.lt.s32.totalorder %s253, 31
      %s255 = scalar_select %p254, %s253, 31
      %s256 = smul.addr %s255, 8
      %s257 = scalar_lea.vmem %s5, %s256
      %s258 = smul.u32 16, %s17
      %s259 = smul.u32 %s17, 128
      %v260 = vlaneseq
      %v261 = vand.u32 %v260, 127
      %v262 = vadd.s32 %v261, 128
      %v263 = vlaneseq
      %v264 = vshrl.u32 %v263, 7
      %v265 = vadd.s32 %v264, 8
      %v266 = vadd.s32 %v264, 16
      %v267 = vadd.s32 %v264, 24
      %v268 = vadd.s32 %v264, 32
      %v269 = vadd.s32 %v264, 40
      %v270 = vadd.s32 %v264, 48
      %v271 = vadd.s32 %v264, 56
      %v272 = vadd.s32 %v264, 64
      %v273 = vadd.s32 %v264, 72
      %v274 = vadd.s32 %v264, 80
      %v275 = vadd.s32 %v264, 88
      %v276 = vadd.s32 %v264, 96
      %v277 = vadd.s32 %v264, 104
      %v278 = vadd.s32 %v264, 112
      %v279 = vadd.s32 %v264, 120
      %v280 = vstv %s259
      %v281 = vadd.s32 %v280, %v264
      %v282 = vadd.s32 %v280, %v265
      %v283 = vadd.s32 %v280, %v266
      %v284 = vadd.s32 %v280, %v267
      %v285 = vadd.s32 %v280, %v268
      %v286 = vadd.s32 %v280, %v269
      %v287 = vadd.s32 %v280, %v270
      %v288 = vadd.s32 %v280, %v271
      %v289 = vadd.s32 %v280, %v272
      %v290 = vadd.s32 %v280, %v273
      %v291 = vadd.s32 %v280, %v274
      %v292 = vadd.s32 %v280, %v275
      %v293 = vadd.s32 %v280, %v276
      %v294 = vadd.s32 %v280, %v277
      %v295 = vadd.s32 %v280, %v278
      %v296 = vadd.s32 %v280, %v279
      %v297 = vadd.s32 %v281, 128
      %v298 = vadd.s32 %v282, 128
      %v299 = vadd.s32 %v283, 128
      %v300 = vadd.s32 %v284, 128
      %v301 = vadd.s32 %v285, 128
      %v302 = vadd.s32 %v286, 128
      %v303 = vadd.s32 %v287, 128
      %v304 = vadd.s32 %v288, 128
      %v305 = vadd.s32 %v289, 128
      %v306 = vadd.s32 %v290, 128
      %v307 = vadd.s32 %v291, 128
      %v308 = vadd.s32 %v292, 128
      %v309 = vadd.s32 %v293, 128
      %v310 = vadd.s32 %v294, 128
      %v311 = vadd.s32 %v295, 128
      %v312 = vadd.s32 %v296, 128
      %vm313 = vcmp.lt.s32.totalorder %v297, 0
      %v314 = vsub.s32 0, %v297
      %v315 = vsel %vm313, %v314, %v297
      %v316 = vshrl.u32 %v315, 8
      %v317 = vand.u32 %v315, 255
      %v318 = vsub.s32 0, %v317
      %v319 = vsel %vm313, %v318, %v317
      %vm320 = vcmp.lt.s32.totalorder %v298, 0
      %v321 = vsub.s32 0, %v298
      %v322 = vsel %vm320, %v321, %v298
      %v323 = vshrl.u32 %v322, 8
      %v324 = vand.u32 %v322, 255
      %v325 = vsub.s32 0, %v324
      %v326 = vsel %vm320, %v325, %v324
      %vm327 = vcmp.lt.s32.totalorder %v299, 0
      %v328 = vsub.s32 0, %v299
      %v329 = vsel %vm327, %v328, %v299
      %v330 = vshrl.u32 %v329, 8
      %v331 = vand.u32 %v329, 255
      %v332 = vsub.s32 0, %v331
      %v333 = vsel %vm327, %v332, %v331
      %vm334 = vcmp.lt.s32.totalorder %v300, 0
      %v335 = vsub.s32 0, %v300
      %v336 = vsel %vm334, %v335, %v300
      %v337 = vshrl.u32 %v336, 8
      %v338 = vand.u32 %v336, 255
      %v339 = vsub.s32 0, %v338
      %v340 = vsel %vm334, %v339, %v338
      %vm341 = vcmp.lt.s32.totalorder %v301, 0
      %v342 = vsub.s32 0, %v301
      %v343 = vsel %vm341, %v342, %v301
      %v344 = vshrl.u32 %v343, 8
      %v345 = vand.u32 %v343, 255
      %v346 = vsub.s32 0, %v345
      %v347 = vsel %vm341, %v346, %v345
      %vm348 = vcmp.lt.s32.totalorder %v302, 0
      %v349 = vsub.s32 0, %v302
      %v350 = vsel %vm348, %v349, %v302
      %v351 = vshrl.u32 %v350, 8
      %v352 = vand.u32 %v350, 255
      %v353 = vsub.s32 0, %v352
      %v354 = vsel %vm348, %v353, %v352
      %vm355 = vcmp.lt.s32.totalorder %v303, 0
      %v356 = vsub.s32 0, %v303
      %v357 = vsel %vm355, %v356, %v303
      %v358 = vshrl.u32 %v357, 8
      %v359 = vand.u32 %v357, 255
      %v360 = vsub.s32 0, %v359
      %v361 = vsel %vm355, %v360, %v359
      %vm362 = vcmp.lt.s32.totalorder %v304, 0
      %v363 = vsub.s32 0, %v304
      %v364 = vsel %vm362, %v363, %v304
      %v365 = vshrl.u32 %v364, 8
      %v366 = vand.u32 %v364, 255
      %v367 = vsub.s32 0, %v366
      %v368 = vsel %vm362, %v367, %v366
      %vm369 = vcmp.lt.s32.totalorder %v305, 0
      %v370 = vsub.s32 0, %v305
      %v371 = vsel %vm369, %v370, %v305
      %v372 = vshrl.u32 %v371, 8
      %v373 = vand.u32 %v371, 255
      %v374 = vsub.s32 0, %v373
      %v375 = vsel %vm369, %v374, %v373
      %vm376 = vcmp.lt.s32.totalorder %v306, 0
      %v377 = vsub.s32 0, %v306
      %v378 = vsel %vm376, %v377, %v306
      %v379 = vshrl.u32 %v378, 8
      %v380 = vand.u32 %v378, 255
      %v381 = vsub.s32 0, %v380
      %v382 = vsel %vm376, %v381, %v380
      %vm383 = vcmp.lt.s32.totalorder %v307, 0
      %v384 = vsub.s32 0, %v307
      %v385 = vsel %vm383, %v384, %v307
      %v386 = vshrl.u32 %v385, 8
      %v387 = vand.u32 %v385, 255
      %v388 = vsub.s32 0, %v387
      %v389 = vsel %vm383, %v388, %v387
      %vm390 = vcmp.lt.s32.totalorder %v308, 0
      %v391 = vsub.s32 0, %v308
      %v392 = vsel %vm390, %v391, %v308
      %v393 = vshrl.u32 %v392, 8
      %v394 = vand.u32 %v392, 255
      %v395 = vsub.s32 0, %v394
      %v396 = vsel %vm390, %v395, %v394
      %vm397 = vcmp.lt.s32.totalorder %v309, 0
      %v398 = vsub.s32 0, %v309
      %v399 = vsel %vm397, %v398, %v309
      %v400 = vshrl.u32 %v399, 8
      %v401 = vand.u32 %v399, 255
      %v402 = vsub.s32 0, %v401
      %v403 = vsel %vm397, %v402, %v401
      %vm404 = vcmp.lt.s32.totalorder %v310, 0
      %v405 = vsub.s32 0, %v310
      %v406 = vsel %vm404, %v405, %v310
      %v407 = vshrl.u32 %v406, 8
      %v408 = vand.u32 %v406, 255
      %v409 = vsub.s32 0, %v408
      %v410 = vsel %vm404, %v409, %v408
      %vm411 = vcmp.lt.s32.totalorder %v311, 0
      %v412 = vsub.s32 0, %v311
      %v413 = vsel %vm411, %v412, %v311
      %v414 = vshrl.u32 %v413, 8
      %v415 = vand.u32 %v413, 255
      %v416 = vsub.s32 0, %v415
      %v417 = vsel %vm411, %v416, %v415
      %vm418 = vcmp.lt.s32.totalorder %v312, 0
      %v419 = vsub.s32 0, %v312
      %v420 = vsel %vm418, %v419, %v312
      %v421 = vshrl.u32 %v420, 8
      %v422 = vand.u32 %v420, 255
      %v423 = vsub.s32 0, %v422
      %v424 = vsel %vm418, %v423, %v422
      %vm425 = vcmp.ne.s32.totalorder %v319, 0
      %vm426 = vcmp.ne.s32.totalorder %v326, 0
      %vm427 = vcmp.ne.s32.totalorder %v333, 0
      %vm428 = vcmp.ne.s32.totalorder %v340, 0
      %vm429 = vcmp.ne.s32.totalorder %v347, 0
      %vm430 = vcmp.ne.s32.totalorder %v354, 0
      %vm431 = vcmp.ne.s32.totalorder %v361, 0
      %vm432 = vcmp.ne.s32.totalorder %v368, 0
      %vm433 = vcmp.ne.s32.totalorder %v375, 0
      %vm434 = vcmp.ne.s32.totalorder %v382, 0
      %vm435 = vcmp.ne.s32.totalorder %v389, 0
      %vm436 = vcmp.ne.s32.totalorder %v396, 0
      %vm437 = vcmp.ne.s32.totalorder %v403, 0
      %vm438 = vcmp.ne.s32.totalorder %v410, 0
      %vm439 = vcmp.ne.s32.totalorder %v417, 0
      %vm440 = vcmp.ne.s32.totalorder %v424, 0
      %vm441 = vcmp.lt.s32.totalorder %v319, 0
      %vm442 = vcmp.lt.s32.totalorder %v326, 0
      %vm443 = vcmp.lt.s32.totalorder %v333, 0
      %vm444 = vcmp.lt.s32.totalorder %v340, 0
      %vm445 = vcmp.lt.s32.totalorder %v347, 0
      %vm446 = vcmp.lt.s32.totalorder %v354, 0
      %vm447 = vcmp.lt.s32.totalorder %v361, 0
      %vm448 = vcmp.lt.s32.totalorder %v368, 0
      %vm449 = vcmp.lt.s32.totalorder %v375, 0
      %vm450 = vcmp.lt.s32.totalorder %v382, 0
      %vm451 = vcmp.lt.s32.totalorder %v389, 0
      %vm452 = vcmp.lt.s32.totalorder %v396, 0
      %vm453 = vcmp.lt.s32.totalorder %v403, 0
      %vm454 = vcmp.lt.s32.totalorder %v410, 0
      %vm455 = vcmp.lt.s32.totalorder %v417, 0
      %vm456 = vcmp.lt.s32.totalorder %v424, 0
      %vm457 = vmand %vm441, %vm425
      %vm458 = vmand %vm442, %vm426
      %vm459 = vmand %vm443, %vm427
      %vm460 = vmand %vm444, %vm428
      %vm461 = vmand %vm445, %vm429
      %vm462 = vmand %vm446, %vm430
      %vm463 = vmand %vm447, %vm431
      %vm464 = vmand %vm448, %vm432
      %vm465 = vmand %vm449, %vm433
      %vm466 = vmand %vm450, %vm434
      %vm467 = vmand %vm451, %vm435
      %vm468 = vmand %vm452, %vm436
      %vm469 = vmand %vm453, %vm437
      %vm470 = vmand %vm454, %vm438
      %vm471 = vmand %vm455, %vm439
      %vm472 = vmand %vm456, %vm440
      %v473 = vadd.s32 %v319, 256
      %v474 = vadd.s32 %v326, 256
      %v475 = vadd.s32 %v333, 256
      %v476 = vadd.s32 %v340, 256
      %v477 = vadd.s32 %v347, 256
      %v478 = vadd.s32 %v354, 256
      %v479 = vadd.s32 %v361, 256
      %v480 = vadd.s32 %v368, 256
      %v481 = vadd.s32 %v375, 256
      %v482 = vadd.s32 %v382, 256
      %v483 = vadd.s32 %v389, 256
      %v484 = vadd.s32 %v396, 256
      %v485 = vadd.s32 %v403, 256
      %v486 = vadd.s32 %v410, 256
      %v487 = vadd.s32 %v417, 256
      %v488 = vadd.s32 %v424, 256
      %v489 = vsel %vm457, %v473, %v319
      %v490 = vsel %vm458, %v474, %v326
      %v491 = vsel %vm459, %v475, %v333
      %v492 = vsel %vm460, %v476, %v340
      %v493 = vsel %vm461, %v477, %v347
      %v494 = vsel %vm462, %v478, %v354
      %v495 = vsel %vm463, %v479, %v361
      %v496 = vsel %vm464, %v480, %v368
      %v497 = vsel %vm465, %v481, %v375
      %v498 = vsel %vm466, %v482, %v382
      %v499 = vsel %vm467, %v483, %v389
      %v500 = vsel %vm468, %v484, %v396
      %v501 = vsel %vm469, %v485, %v403
      %v502 = vsel %vm470, %v486, %v410
      %v503 = vsel %vm471, %v487, %v417
      %v504 = vsel %vm472, %v488, %v424
      %vm505 = vcmp.eq.s32.totalorder %v261, %v281
      %vm506 = vcmp.eq.s32.totalorder %v262, %v281
      %vm507 = vcmp.eq.s32.totalorder %v261, %v282
      %vm508 = vcmp.eq.s32.totalorder %v262, %v282
      %vm509 = vcmp.eq.s32.totalorder %v261, %v283
      %vm510 = vcmp.eq.s32.totalorder %v262, %v283
      %vm511 = vcmp.eq.s32.totalorder %v261, %v284
      %vm512 = vcmp.eq.s32.totalorder %v262, %v284
      %vm513 = vcmp.eq.s32.totalorder %v261, %v285
      %vm514 = vcmp.eq.s32.totalorder %v262, %v285
      %vm515 = vcmp.eq.s32.totalorder %v261, %v286
      %vm516 = vcmp.eq.s32.totalorder %v262, %v286
      %vm517 = vcmp.eq.s32.totalorder %v261, %v287
      %vm518 = vcmp.eq.s32.totalorder %v262, %v287
      %vm519 = vcmp.eq.s32.totalorder %v261, %v288
      %vm520 = vcmp.eq.s32.totalorder %v262, %v288
      %vm521 = vcmp.eq.s32.totalorder %v261, %v289
      %vm522 = vcmp.eq.s32.totalorder %v262, %v289
      %vm523 = vcmp.eq.s32.totalorder %v261, %v290
      %vm524 = vcmp.eq.s32.totalorder %v262, %v290
      %vm525 = vcmp.eq.s32.totalorder %v261, %v291
      %vm526 = vcmp.eq.s32.totalorder %v262, %v291
      %vm527 = vcmp.eq.s32.totalorder %v261, %v292
      %vm528 = vcmp.eq.s32.totalorder %v262, %v292
      %vm529 = vcmp.eq.s32.totalorder %v261, %v293
      %vm530 = vcmp.eq.s32.totalorder %v262, %v293
      %vm531 = vcmp.eq.s32.totalorder %v261, %v294
      %vm532 = vcmp.eq.s32.totalorder %v262, %v294
      %vm533 = vcmp.eq.s32.totalorder %v261, %v295
      %vm534 = vcmp.eq.s32.totalorder %v262, %v295
      %vm535 = vcmp.eq.s32.totalorder %v261, %v296
      %vm536 = vcmp.eq.s32.totalorder %v262, %v296
      %vm537 = vcmp.eq.s32.totalorder %v261, %v489
      %vm538 = vcmp.eq.s32.totalorder %v262, %v489
      %vm539 = vcmp.eq.s32.totalorder %v261, %v490
      %vm540 = vcmp.eq.s32.totalorder %v262, %v490
      %vm541 = vcmp.eq.s32.totalorder %v261, %v491
      %vm542 = vcmp.eq.s32.totalorder %v262, %v491
      %vm543 = vcmp.eq.s32.totalorder %v261, %v492
      %vm544 = vcmp.eq.s32.totalorder %v262, %v492
      %vm545 = vcmp.eq.s32.totalorder %v261, %v493
      %vm546 = vcmp.eq.s32.totalorder %v262, %v493
      %vm547 = vcmp.eq.s32.totalorder %v261, %v494
      %vm548 = vcmp.eq.s32.totalorder %v262, %v494
      %vm549 = vcmp.eq.s32.totalorder %v261, %v495
      %vm550 = vcmp.eq.s32.totalorder %v262, %v495
      %vm551 = vcmp.eq.s32.totalorder %v261, %v496
      %vm552 = vcmp.eq.s32.totalorder %v262, %v496
      %vm553 = vcmp.eq.s32.totalorder %v261, %v497
      %vm554 = vcmp.eq.s32.totalorder %v262, %v497
      %vm555 = vcmp.eq.s32.totalorder %v261, %v498
      %vm556 = vcmp.eq.s32.totalorder %v262, %v498
      %vm557 = vcmp.eq.s32.totalorder %v261, %v499
      %vm558 = vcmp.eq.s32.totalorder %v262, %v499
      %vm559 = vcmp.eq.s32.totalorder %v261, %v500
      %vm560 = vcmp.eq.s32.totalorder %v262, %v500
      %vm561 = vcmp.eq.s32.totalorder %v261, %v501
      %vm562 = vcmp.eq.s32.totalorder %v262, %v501
      %vm563 = vcmp.eq.s32.totalorder %v261, %v502
      %vm564 = vcmp.eq.s32.totalorder %v262, %v502
      %vm565 = vcmp.eq.s32.totalorder %v261, %v503
      %vm566 = vcmp.eq.s32.totalorder %v262, %v503
      %vm567 = vcmp.eq.s32.totalorder %v261, %v504
      %vm568 = vcmp.eq.s32.totalorder %v262, %v504
      %v569 = vld [vmem:[%s242] sm:$0xff]
      %v570 = vld [vmem:[%s242 + $0x8] sm:$0xff]
      %v571 = vld [vmem:[%s242 + $0x10] sm:$0xff]
      %v572 = vld [vmem:[%s242 + $0x18] sm:$0xff]
      %v573 = vld [vmem:[%s242 + $0x20] sm:$0xff]
      %v574 = vld [vmem:[%s242 + $0x28] sm:$0xff]
      %v575 = vld [vmem:[%s242 + $0x30] sm:$0xff]
      %v576 = vld [vmem:[%s242 + $0x38] sm:$0xff]
      %v577 = vld [vmem:[%s242 + $0x40] sm:$0xff]
      %v578 = vld [vmem:[%s242 + $0x48] sm:$0xff]
      %v579 = vld [vmem:[%s242 + $0x50] sm:$0xff]
      %v580 = vld [vmem:[%s242 + $0x58] sm:$0xff]
      %v581 = vld [vmem:[%s242 + $0x60] sm:$0xff]
      %v582 = vld [vmem:[%s242 + $0x68] sm:$0xff]
      %v583 = vld [vmem:[%s242 + $0x70] sm:$0xff]
      %v584 = vld [vmem:[%s242 + $0x78] sm:$0xff]
      %v585 = vld [vmem:[%s1] sm:$0xff]
      %v586 = vld [vmem:[%s1 + $0x8] sm:$0xff]
      %v587 = vld [vmem:[%s1 + $0x10] sm:$0xff]
      %v588 = vld [vmem:[%s1 + $0x18] sm:$0xff]
      %v589 = vld [vmem:[%s1 + $0x20] sm:$0xff]
      %v590 = vld [vmem:[%s1 + $0x28] sm:$0xff]
      %v591 = vld [vmem:[%s1 + $0x30] sm:$0xff]
      %v592 = vld [vmem:[%s1 + $0x38] sm:$0xff]
      %vm593 = vcmask 261120
      %v595 = vsel %vm593, %v569, 0
      %v598 = vsel %vm593, %v570, 0
      %v601 = vsel %vm593, %v571, 0
      %v604 = vsel %vm593, %v572, 0
      %v607 = vsel %vm593, %v573, 0
      %v610 = vsel %vm593, %v574, 0
      %v613 = vsel %vm593, %v575, 0
      %v616 = vsel %vm593, %v576, 0
      %v619 = vsel %vm593, %v577, 0
      %v622 = vsel %vm593, %v578, 0
      %v625 = vsel %vm593, %v579, 0
      %v628 = vsel %vm593, %v580, 0
      %v631 = vsel %vm593, %v581, 0
      %v634 = vsel %vm593, %v582, 0
      %v637 = vsel %vm593, %v583, 0
      %v640 = vsel %vm593, %v584, 0
      %642 = vmatprep.subr.mxu0 0.0
      %643 = vmatpush1.msra.mxu0 0.0
      %644 = vmatprep.subr.mxu0 0.0
      %645 = vmatpush1.msra.mxu0 0.0
      %646 = vmatprep.subr.mxu0 0.0
      %647 = vmatpush1.msra.mxu0 0.0
      %648 = vmatprep.subr.mxu0 0.0
      %649 = vmatpush1.msra.mxu0 0.0
      %650 = vmatprep.subr.mxu0 0.0
      %651 = vmatpush1.msra.mxu0 0.0
      %652 = vmatprep.subr.mxu0 0.0
      %653 = vmatpush1.msra.mxu0 0.0
      %654 = vmatprep.subr.mxu0 0.0
      %655 = vmatpush1.msra.mxu0 0.0
      %656 = vmatprep.subr.mxu0 0.0
      %657 = vmatpush1.msra.mxu0 0.0
      %658 = vmatprep.subr.mxu0 0.0
      %659 = vmatpush1.msra.mxu0 0.0
      %660 = vmatprep.subr.mxu0 0.0
      %661 = vmatpush1.msra.mxu0 0.0
      %662 = vmatprep.subr.mxu0 0.0
      %663 = vmatpush1.msra.mxu0 0.0
      %664 = vmatprep.subr.mxu0 0.0
      %665 = vmatpush1.msra.mxu0 0.0
      %666 = vmatprep.subr.mxu0 %v592
      %667 = vmatpush1.msra.mxu0 %v591
      %668 = vmatprep.subr.mxu0 %v590
      %669 = vmatpush1.msra.mxu0 %v589
      %670 = vmatprep.subr.mxu0 %v588
      %671 = vmatpush1.msra.mxu0 %v587
      %672 = vmatprep.subr.mxu0 %v586
      %673 = vmatpush1.msra.mxu0 %v585
      %674 = vmatprep.subr.mxu0 0.0
      %675 = vmatpush2.msra.mxu0 0.0
      %676 = vmatprep.subr.mxu0 0.0
      %677 = vmatpush2.msra.mxu0 0.0
      %678 = vmatprep.subr.mxu0 0.0
      %679 = vmatpush2.msra.mxu0 0.0
      %680 = vmatprep.subr.mxu0 0.0
      %681 = vmatpush2.msra.mxu0 0.0
      %682 = vmatprep.subr.mxu0 0.0
      %683 = vmatpush2.msra.mxu0 0.0
      %684 = vmatprep.subr.mxu0 0.0
      %685 = vmatpush2.msra.mxu0 0.0
      %686 = vmatprep.subr.mxu0 0.0
      %687 = vmatpush2.msra.mxu0 0.0
      %688 = vmatprep.subr.mxu0 0.0
      %689 = vmatpush2.msra.mxu0 0.0
      %690 = vmatprep.subr.mxu0 0.0
      %691 = vmatpush2.msra.mxu0 0.0
      %692 = vmatprep.subr.mxu0 0.0
      %693 = vmatpush2.msra.mxu0 0.0
      %694 = vmatprep.subr.mxu0 0.0
      %695 = vmatpush2.msra.mxu0 0.0
      %696 = vmatprep.subr.mxu0 0.0
      %697 = vmatpush2.msra.mxu0 0.0
      %698 = vmatprep.subr.mxu0 0.0
      %699 = vmatpush2.msra.mxu0 0.0
      %700 = vmatprep.subr.mxu0 0.0
      %701 = vmatpush2.msra.mxu0 0.0
      %702 = vmatprep.subr.mxu0 0.0
      %703 = vmatpush2.msra.mxu0 0.0
      %704 = vmatprep.subr.mxu0 0.0
      %705 = vmatpush2.msra.mxu0 0.0
      %706 = vmatprep.mubr.f32.mxu0 0.0
      %707 = vmatmul.mubr.f32.gmra.mxu0 %v595
      %v708 = vpop.f32.mrf.mxu0
      %v709 = vadd.f32 0.0, %v708
      %v710 = vpop.f32.mrf.mxu0
      %v711 = vadd.f32 0.0, %v710
      %712 = vmatprep.mubr.f32.mxu0 0.0
      %713 = vmatmul.mubr.f32.gmra.mxu0 %v598
      %v714 = vpop.f32.mrf.mxu0
      %v715 = vadd.f32 0.0, %v714
      %v716 = vpop.f32.mrf.mxu0
      %v717 = vadd.f32 0.0, %v716
      %718 = vmatprep.mubr.f32.mxu0 0.0
      %719 = vmatmul.mubr.f32.gmra.mxu0 %v601
      %v720 = vpop.f32.mrf.mxu0
      %v721 = vadd.f32 0.0, %v720
      %v722 = vpop.f32.mrf.mxu0
      %v723 = vadd.f32 0.0, %v722
      %724 = vmatprep.mubr.f32.mxu0 0.0
      %725 = vmatmul.mubr.f32.gmra.mxu0 %v604
      %v726 = vpop.f32.mrf.mxu0
      %v727 = vadd.f32 0.0, %v726
      %v728 = vpop.f32.mrf.mxu0
      %v729 = vadd.f32 0.0, %v728
      %730 = vmatprep.mubr.f32.mxu0 0.0
      %731 = vmatmul.mubr.f32.gmra.mxu0 %v607
      %v732 = vpop.f32.mrf.mxu0
      %v733 = vadd.f32 0.0, %v732
      %v734 = vpop.f32.mrf.mxu0
      %v735 = vadd.f32 0.0, %v734
      %736 = vmatprep.mubr.f32.mxu0 0.0
      %737 = vmatmul.mubr.f32.gmra.mxu0 %v610
      %v738 = vpop.f32.mrf.mxu0
      %v739 = vadd.f32 0.0, %v738
      %v740 = vpop.f32.mrf.mxu0
      %v741 = vadd.f32 0.0, %v740
      %742 = vmatprep.mubr.f32.mxu0 0.0
      %743 = vmatmul.mubr.f32.gmra.mxu0 %v613
      %v744 = vpop.f32.mrf.mxu0
      %v745 = vadd.f32 0.0, %v744
      %v746 = vpop.f32.mrf.mxu0
      %v747 = vadd.f32 0.0, %v746
      %748 = vmatprep.mubr.f32.mxu0 0.0
      %749 = vmatmul.mubr.f32.gmra.mxu0 %v616
      %v750 = vpop.f32.mrf.mxu0
      %v751 = vadd.f32 0.0, %v750
      %v752 = vpop.f32.mrf.mxu0
      %v753 = vadd.f32 0.0, %v752
      %754 = vmatprep.mubr.f32.mxu0 0.0
      %755 = vmatmul.mubr.f32.gmra.mxu0 %v619
      %v756 = vpop.f32.mrf.mxu0
      %v757 = vadd.f32 0.0, %v756
      %v758 = vpop.f32.mrf.mxu0
      %v759 = vadd.f32 0.0, %v758
      %760 = vmatprep.mubr.f32.mxu0 0.0
      %761 = vmatmul.mubr.f32.gmra.mxu0 %v622
      %v762 = vpop.f32.mrf.mxu0
      %v763 = vadd.f32 0.0, %v762
      %v764 = vpop.f32.mrf.mxu0
      %v765 = vadd.f32 0.0, %v764
      %766 = vmatprep.mubr.f32.mxu0 0.0
      %767 = vmatmul.mubr.f32.gmra.mxu0 %v625
      %v768 = vpop.f32.mrf.mxu0
      %v769 = vadd.f32 0.0, %v768
      %v770 = vpop.f32.mrf.mxu0
      %v771 = vadd.f32 0.0, %v770
      %772 = vmatprep.mubr.f32.mxu0 0.0
      %773 = vmatmul.mubr.f32.gmra.mxu0 %v628
      %v774 = vpop.f32.mrf.mxu0
      %v775 = vadd.f32 0.0, %v774
      %v776 = vpop.f32.mrf.mxu0
      %v777 = vadd.f32 0.0, %v776
      %778 = vmatprep.mubr.f32.mxu0 0.0
      %779 = vmatmul.mubr.f32.gmra.mxu0 %v631
      %v780 = vpop.f32.mrf.mxu0
      %v781 = vadd.f32 0.0, %v780
      %v782 = vpop.f32.mrf.mxu0
      %v783 = vadd.f32 0.0, %v782
      %784 = vmatprep.mubr.f32.mxu0 0.0
      %785 = vmatmul.mubr.f32.gmra.mxu0 %v634
      %v786 = vpop.f32.mrf.mxu0
      %v787 = vadd.f32 0.0, %v786
      %v788 = vpop.f32.mrf.mxu0
      %v789 = vadd.f32 0.0, %v788
      %790 = vmatprep.mubr.f32.mxu0 0.0
      %791 = vmatmul.mubr.f32.gmra.mxu0 %v637
      %v792 = vpop.f32.mrf.mxu0
      %v793 = vadd.f32 0.0, %v792
      %v794 = vpop.f32.mrf.mxu0
      %v795 = vadd.f32 0.0, %v794
      %796 = vmatprep.mubr.f32.mxu0 0.0
      %797 = vmatmul.mubr.f32.gmra.mxu0 %v640
      %v798 = vpop.f32.mrf.mxu0
      %v799 = vadd.f32 0.0, %v798
      %v800 = vpop.f32.mrf.mxu0
      %v801 = vadd.f32 0.0, %v800
      %802 = vdwg.mxu0
      %v803 = vsel %vm505, -1e+09, %v709
      %v804 = vsel %vm506, -1e+09, %v711
      %v805 = vsel %vm507, -1e+09, %v715
      %v806 = vsel %vm508, -1e+09, %v717
      %v807 = vsel %vm509, -1e+09, %v721
      %v808 = vsel %vm510, -1e+09, %v723
      %v809 = vsel %vm511, -1e+09, %v727
      %v810 = vsel %vm512, -1e+09, %v729
      %v811 = vsel %vm513, -1e+09, %v733
      %v812 = vsel %vm514, -1e+09, %v735
      %v813 = vsel %vm515, -1e+09, %v739
      %v814 = vsel %vm516, -1e+09, %v741
      %v815 = vsel %vm517, -1e+09, %v745
      %v816 = vsel %vm518, -1e+09, %v747
      %v817 = vsel %vm519, -1e+09, %v751
      %v818 = vsel %vm520, -1e+09, %v753
      %v819 = vsel %vm521, -1e+09, %v757
      %v820 = vsel %vm522, -1e+09, %v759
      %v821 = vsel %vm523, -1e+09, %v763
      %v822 = vsel %vm524, -1e+09, %v765
      %v823 = vsel %vm525, -1e+09, %v769
      %v824 = vsel %vm526, -1e+09, %v771
      %v825 = vsel %vm527, -1e+09, %v775
      %v826 = vsel %vm528, -1e+09, %v777
      %v827 = vsel %vm529, -1e+09, %v781
      %v828 = vsel %vm530, -1e+09, %v783
      %v829 = vsel %vm531, -1e+09, %v787
      %v830 = vsel %vm532, -1e+09, %v789
      %v831 = vsel %vm533, -1e+09, %v793
      %v832 = vsel %vm534, -1e+09, %v795
      %v833 = vsel %vm535, -1e+09, %v799
      %v834 = vsel %vm536, -1e+09, %v801
      %v835 = vmax.f32 %v803, %v804
      %836 = vmax.xlane.f32.xlu0 %v835
      %v837 = vpop.xlane.xlu0 %836
      %v838 = vmax.f32 %v805, %v806
      %839 = vmax.xlane.f32.xlu0 %v838
      %v840 = vpop.xlane.xlu0 %839
      %v841 = vmax.f32 %v807, %v808
      %842 = vmax.xlane.f32.xlu0 %v841
      %v843 = vpop.xlane.xlu0 %842
      %v844 = vmax.f32 %v809, %v810
      %845 = vmax.xlane.f32.xlu0 %v844
      %v846 = vpop.xlane.xlu0 %845
      %v847 = vmax.f32 %v811, %v812
      %848 = vmax.xlane.f32.xlu0 %v847
      %v849 = vpop.xlane.xlu0 %848
      %v850 = vmax.f32 %v813, %v814
      %851 = vmax.xlane.f32.xlu0 %v850
      %v852 = vpop.xlane.xlu0 %851
      %v853 = vmax.f32 %v815, %v816
      %854 = vmax.xlane.f32.xlu0 %v853
      %v855 = vpop.xlane.xlu0 %854
      %v856 = vmax.f32 %v817, %v818
      %857 = vmax.xlane.f32.xlu0 %v856
      %v858 = vpop.xlane.xlu0 %857
      %v859 = vmax.f32 %v819, %v820
      %860 = vmax.xlane.f32.xlu0 %v859
      %v861 = vpop.xlane.xlu0 %860
      %v862 = vmax.f32 %v821, %v822
      %863 = vmax.xlane.f32.xlu0 %v862
      %v864 = vpop.xlane.xlu0 %863
      %v865 = vmax.f32 %v823, %v824
      %866 = vmax.xlane.f32.xlu0 %v865
      %v867 = vpop.xlane.xlu0 %866
      %v868 = vmax.f32 %v825, %v826
      %869 = vmax.xlane.f32.xlu0 %v868
      %v870 = vpop.xlane.xlu0 %869
      %v871 = vmax.f32 %v827, %v828
      %872 = vmax.xlane.f32.xlu0 %v871
      %v873 = vpop.xlane.xlu0 %872
      %v874 = vmax.f32 %v829, %v830
      %875 = vmax.xlane.f32.xlu0 %v874
      %v876 = vpop.xlane.xlu0 %875
      %v877 = vmax.f32 %v831, %v832
      %878 = vmax.xlane.f32.xlu0 %v877
      %v879 = vpop.xlane.xlu0 %878
      %v880 = vmax.f32 %v833, %v834
      %881 = vmax.xlane.f32.xlu0 %v880
      %v882 = vpop.xlane.xlu0 %881
      %v883 = vsub.f32 %v803, %v837
      %v884 = vsub.f32 %v804, %v837
      %v885 = vsub.f32 %v805, %v840
      %v886 = vsub.f32 %v806, %v840
      %v887 = vsub.f32 %v807, %v843
      %v888 = vsub.f32 %v808, %v843
      %v889 = vsub.f32 %v809, %v846
      %v890 = vsub.f32 %v810, %v846
      %v891 = vsub.f32 %v811, %v849
      %v892 = vsub.f32 %v812, %v849
      %v893 = vsub.f32 %v813, %v852
      %v894 = vsub.f32 %v814, %v852
      %v895 = vsub.f32 %v815, %v855
      %v896 = vsub.f32 %v816, %v855
      %v897 = vsub.f32 %v817, %v858
      %v898 = vsub.f32 %v818, %v858
      %v899 = vsub.f32 %v819, %v861
      %v900 = vsub.f32 %v820, %v861
      %v901 = vsub.f32 %v821, %v864
      %v902 = vsub.f32 %v822, %v864
      %v903 = vsub.f32 %v823, %v867
      %v904 = vsub.f32 %v824, %v867
      %v905 = vsub.f32 %v825, %v870
      %v906 = vsub.f32 %v826, %v870
      %v907 = vsub.f32 %v827, %v873
      %v908 = vsub.f32 %v828, %v873
      %v909 = vsub.f32 %v829, %v876
      %v910 = vsub.f32 %v830, %v876
      %v911 = vsub.f32 %v831, %v879
      %v912 = vsub.f32 %v832, %v879
      %v913 = vsub.f32 %v833, %v882
      %v914 = vsub.f32 %v834, %v882
      %v915 = vmul.f32 %v883, 1.442695
      %v916 = vpow.pop %v915
      %v917 = vmul.f32 %v884, 1.442695
      %v918 = vpow.pop %v917
      %v919 = vmul.f32 %v885, 1.442695
      %v920 = vpow.pop %v919
      %v921 = vmul.f32 %v886, 1.442695
      %v922 = vpow.pop %v921
      %v923 = vmul.f32 %v887, 1.442695
      %v924 = vpow.pop %v923
      %v925 = vmul.f32 %v888, 1.442695
      %v926 = vpow.pop %v925
      %v927 = vmul.f32 %v889, 1.442695
      %v928 = vpow.pop %v927
      %v929 = vmul.f32 %v890, 1.442695
      %v930 = vpow.pop %v929
      %v931 = vmul.f32 %v891, 1.442695
      %v932 = vpow.pop %v931
      %v933 = vmul.f32 %v892, 1.442695
      %v934 = vpow.pop %v933
      %v935 = vmul.f32 %v893, 1.442695
      %v936 = vpow.pop %v935
      %v937 = vmul.f32 %v894, 1.442695
      %v938 = vpow.pop %v937
      %v939 = vmul.f32 %v895, 1.442695
      %v940 = vpow.pop %v939
      %v941 = vmul.f32 %v896, 1.442695
      %v942 = vpow.pop %v941
      %v943 = vmul.f32 %v897, 1.442695
      %v944 = vpow.pop %v943
      %v945 = vmul.f32 %v898, 1.442695
      %v946 = vpow.pop %v945
      %v947 = vmul.f32 %v899, 1.442695
      %v948 = vpow.pop %v947
      %v949 = vmul.f32 %v900, 1.442695
      %v950 = vpow.pop %v949
      %v951 = vmul.f32 %v901, 1.442695
      %v952 = vpow.pop %v951
      %v953 = vmul.f32 %v902, 1.442695
      %v954 = vpow.pop %v953
      %v955 = vmul.f32 %v903, 1.442695
      %v956 = vpow.pop %v955
      %v957 = vmul.f32 %v904, 1.442695
      %v958 = vpow.pop %v957
      %v959 = vmul.f32 %v905, 1.442695
      %v960 = vpow.pop %v959
      %v961 = vmul.f32 %v906, 1.442695
      %v962 = vpow.pop %v961
      %v963 = vmul.f32 %v907, 1.442695
      %v964 = vpow.pop %v963
      %v965 = vmul.f32 %v908, 1.442695
      %v966 = vpow.pop %v965
      %v967 = vmul.f32 %v909, 1.442695
      %v968 = vpow.pop %v967
      %v969 = vmul.f32 %v910, 1.442695
      %v970 = vpow.pop %v969
      %v971 = vmul.f32 %v911, 1.442695
      %v972 = vpow.pop %v971
      %v973 = vmul.f32 %v912, 1.442695
      %v974 = vpow.pop %v973
      %v975 = vmul.f32 %v913, 1.442695
      %v976 = vpow.pop %v975
      %v977 = vmul.f32 %v914, 1.442695
      %v978 = vpow.pop %v977
      %v979 = vadd.f32 %v916, %v918
      %980 = vadd.xlane.f32.xlu0 %v979
      %v981 = vpop.xlane.xlu0 %980
      %v982 = vadd.f32 %v920, %v922
      %983 = vadd.xlane.f32.xlu0 %v982
      %v984 = vpop.xlane.xlu0 %983
      %v985 = vadd.f32 %v924, %v926
      %986 = vadd.xlane.f32.xlu0 %v985
      %v987 = vpop.xlane.xlu0 %986
      %v988 = vadd.f32 %v928, %v930
      %989 = vadd.xlane.f32.xlu0 %v988
      %v990 = vpop.xlane.xlu0 %989
      %v991 = vadd.f32 %v932, %v934
      %992 = vadd.xlane.f32.xlu0 %v991
      %v993 = vpop.xlane.xlu0 %992
      %v994 = vadd.f32 %v936, %v938
      %995 = vadd.xlane.f32.xlu0 %v994
      %v996 = vpop.xlane.xlu0 %995
      %v997 = vadd.f32 %v940, %v942
      %998 = vadd.xlane.f32.xlu0 %v997
      %v999 = vpop.xlane.xlu0 %998
      %v1000 = vadd.f32 %v944, %v946
      %1001 = vadd.xlane.f32.xlu0 %v1000
      %v1002 = vpop.xlane.xlu0 %1001
      %v1003 = vadd.f32 %v948, %v950
      %1004 = vadd.xlane.f32.xlu0 %v1003
      %v1005 = vpop.xlane.xlu0 %1004
      %v1006 = vadd.f32 %v952, %v954
      %1007 = vadd.xlane.f32.xlu0 %v1006
      %v1008 = vpop.xlane.xlu0 %1007
      %v1009 = vadd.f32 %v956, %v958
      %1010 = vadd.xlane.f32.xlu0 %v1009
      %v1011 = vpop.xlane.xlu0 %1010
      %v1012 = vadd.f32 %v960, %v962
      %1013 = vadd.xlane.f32.xlu0 %v1012
      %v1014 = vpop.xlane.xlu0 %1013
      %v1015 = vadd.f32 %v964, %v966
      %1016 = vadd.xlane.f32.xlu0 %v1015
      %v1017 = vpop.xlane.xlu0 %1016
      %v1018 = vadd.f32 %v968, %v970
      %1019 = vadd.xlane.f32.xlu0 %v1018
      %v1020 = vpop.xlane.xlu0 %1019
      %v1021 = vadd.f32 %v972, %v974
      %1022 = vadd.xlane.f32.xlu0 %v1021
      %v1023 = vpop.xlane.xlu0 %1022
      %v1024 = vadd.f32 %v976, %v978
      %1025 = vadd.xlane.f32.xlu0 %v1024
      %v1026 = vpop.xlane.xlu0 %1025
      %v1027 = vlog2.pop %v981
      %v1028 = vmul.f32 %v1027, 0.6931472
      %v1029 = vlog2.pop %v984
      %v1030 = vmul.f32 %v1029, 0.6931472
      %v1031 = vlog2.pop %v987
      %v1032 = vmul.f32 %v1031, 0.6931472
      %v1033 = vlog2.pop %v990
      %v1034 = vmul.f32 %v1033, 0.6931472
      %v1035 = vlog2.pop %v993
      %v1036 = vmul.f32 %v1035, 0.6931472
      %v1037 = vlog2.pop %v996
      %v1038 = vmul.f32 %v1037, 0.6931472
      %v1039 = vlog2.pop %v999
      %v1040 = vmul.f32 %v1039, 0.6931472
      %v1041 = vlog2.pop %v1002
      %v1042 = vmul.f32 %v1041, 0.6931472
      %v1043 = vlog2.pop %v1005
      %v1044 = vmul.f32 %v1043, 0.6931472
      %v1045 = vlog2.pop %v1008
      %v1046 = vmul.f32 %v1045, 0.6931472
      %v1047 = vlog2.pop %v1011
      %v1048 = vmul.f32 %v1047, 0.6931472
      %v1049 = vlog2.pop %v1014
      %v1050 = vmul.f32 %v1049, 0.6931472
      %v1051 = vlog2.pop %v1017
      %v1052 = vmul.f32 %v1051, 0.6931472
      %v1053 = vlog2.pop %v1020
      %v1054 = vmul.f32 %v1053, 0.6931472
      %v1055 = vlog2.pop %v1023
      %v1056 = vmul.f32 %v1055, 0.6931472
      %v1057 = vlog2.pop %v1026
      %v1058 = vmul.f32 %v1057, 0.6931472
      %v1059 = vadd.f32 %v837, %v1028
      %v1060 = vadd.f32 %v840, %v1030
      %v1061 = vadd.f32 %v843, %v1032
      %v1062 = vadd.f32 %v846, %v1034
      %v1063 = vadd.f32 %v849, %v1036
      %v1064 = vadd.f32 %v852, %v1038
      %v1065 = vadd.f32 %v855, %v1040
      %v1066 = vadd.f32 %v858, %v1042
      %v1067 = vadd.f32 %v861, %v1044
      %v1068 = vadd.f32 %v864, %v1046
      %v1069 = vadd.f32 %v867, %v1048
      %v1070 = vadd.f32 %v870, %v1050
      %v1071 = vadd.f32 %v873, %v1052
      %v1072 = vadd.f32 %v876, %v1054
      %v1073 = vadd.f32 %v879, %v1056
      %v1074 = vadd.f32 %v882, %v1058
      %v1075 = vld [vmem:[%s248] sm:$0xff]
      %v1076 = vld [vmem:[%s248 + $0x8] sm:$0xff]
      %v1077 = vld [vmem:[%s248 + $0x10] sm:$0xff]
      %v1078 = vld [vmem:[%s248 + $0x18] sm:$0xff]
      %v1079 = vld [vmem:[%s248 + $0x20] sm:$0xff]
      %v1080 = vld [vmem:[%s248 + $0x28] sm:$0xff]
      %v1081 = vld [vmem:[%s248 + $0x30] sm:$0xff]
      %v1082 = vld [vmem:[%s248 + $0x38] sm:$0xff]
      %v1083 = vld [vmem:[%s248 + $0x40] sm:$0xff]
      %v1084 = vld [vmem:[%s248 + $0x48] sm:$0xff]
      %v1085 = vld [vmem:[%s248 + $0x50] sm:$0xff]
      %v1086 = vld [vmem:[%s248 + $0x58] sm:$0xff]
      %v1087 = vld [vmem:[%s248 + $0x60] sm:$0xff]
      %v1088 = vld [vmem:[%s248 + $0x68] sm:$0xff]
      %v1089 = vld [vmem:[%s248 + $0x70] sm:$0xff]
      %v1090 = vld [vmem:[%s248 + $0x78] sm:$0xff]
      %v1091 = vld [vmem:[%s3] sm:$0xff]
      %v1092 = vld [vmem:[%s3 + $0x8] sm:$0xff]
      %v1093 = vld [vmem:[%s3 + $0x10] sm:$0xff]
      %v1094 = vld [vmem:[%s3 + $0x18] sm:$0xff]
      %v1095 = vld [vmem:[%s3 + $0x20] sm:$0xff]
      %v1096 = vld [vmem:[%s3 + $0x28] sm:$0xff]
      %v1097 = vld [vmem:[%s3 + $0x30] sm:$0xff]
      %v1098 = vld [vmem:[%s3 + $0x38] sm:$0xff]
      %v1099 = vld [vmem:[%s3 + $0x40] sm:$0xff]
      %v1100 = vld [vmem:[%s3 + $0x48] sm:$0xff]
      %v1101 = vld [vmem:[%s3 + $0x50] sm:$0xff]
      %v1102 = vld [vmem:[%s3 + $0x58] sm:$0xff]
      %v1103 = vld [vmem:[%s3 + $0x60] sm:$0xff]
      %v1104 = vld [vmem:[%s3 + $0x68] sm:$0xff]
      %v1105 = vld [vmem:[%s3 + $0x70] sm:$0xff]
      %v1106 = vld [vmem:[%s3 + $0x78] sm:$0xff]
      %vm1107 = vcmask 523264
      %v1109 = vsel %vm1107, %v1075, 0
      %v1112 = vsel %vm1107, %v1076, 0
      %v1115 = vsel %vm1107, %v1077, 0
      %v1118 = vsel %vm1107, %v1078, 0
      %v1121 = vsel %vm1107, %v1079, 0
      %v1124 = vsel %vm1107, %v1080, 0
      %v1127 = vsel %vm1107, %v1081, 0
      %v1130 = vsel %vm1107, %v1082, 0
      %v1133 = vsel %vm1107, %v1083, 0
      %v1136 = vsel %vm1107, %v1084, 0
      %v1139 = vsel %vm1107, %v1085, 0
      %v1142 = vsel %vm1107, %v1086, 0
      %v1145 = vsel %vm1107, %v1087, 0
      %v1148 = vsel %vm1107, %v1088, 0
      %v1151 = vsel %vm1107, %v1089, 0
      %v1154 = vsel %vm1107, %v1090, 0
      %1156 = vmatprep.subr.mxu0 0.0
      %1157 = vmatpush1.msra.mxu0 0.0
      %1158 = vmatprep.subr.mxu0 0.0
      %1159 = vmatpush1.msra.mxu0 0.0
      %1160 = vmatprep.subr.mxu0 0.0
      %1161 = vmatpush1.msra.mxu0 0.0
      %1162 = vmatprep.subr.mxu0 0.0
      %1163 = vmatpush1.msra.mxu0 0.0
      %1164 = vmatprep.subr.mxu0 0.0
      %1165 = vmatpush1.msra.mxu0 0.0
      %1166 = vmatprep.subr.mxu0 0.0
      %1167 = vmatpush1.msra.mxu0 0.0
      %1168 = vmatprep.subr.mxu0 0.0
      %1169 = vmatpush1.msra.mxu0 0.0
      %1170 = vmatprep.subr.mxu0 0.0
      %1171 = vmatpush1.msra.mxu0 0.0
      %1172 = vmatprep.subr.mxu0 %v1106
      %1173 = vmatpush1.msra.mxu0 %v1105
      %1174 = vmatprep.subr.mxu0 %v1104
      %1175 = vmatpush1.msra.mxu0 %v1103
      %1176 = vmatprep.subr.mxu0 %v1102
      %1177 = vmatpush1.msra.mxu0 %v1101
      %1178 = vmatprep.subr.mxu0 %v1100
      %1179 = vmatpush1.msra.mxu0 %v1099
      %1180 = vmatprep.subr.mxu0 %v1098
      %1181 = vmatpush1.msra.mxu0 %v1097
      %1182 = vmatprep.subr.mxu0 %v1096
      %1183 = vmatpush1.msra.mxu0 %v1095
      %1184 = vmatprep.subr.mxu0 %v1094
      %1185 = vmatpush1.msra.mxu0 %v1093
      %1186 = vmatprep.subr.mxu0 %v1092
      %1187 = vmatpush1.msra.mxu0 %v1091
      %1188 = vmatprep.subr.mxu0 0.0
      %1189 = vmatpush2.msra.mxu0 0.0
      %1190 = vmatprep.subr.mxu0 0.0
      %1191 = vmatpush2.msra.mxu0 0.0
      %1192 = vmatprep.subr.mxu0 0.0
      %1193 = vmatpush2.msra.mxu0 0.0
      %1194 = vmatprep.subr.mxu0 0.0
      %1195 = vmatpush2.msra.mxu0 0.0
      %1196 = vmatprep.subr.mxu0 0.0
      %1197 = vmatpush2.msra.mxu0 0.0
      %1198 = vmatprep.subr.mxu0 0.0
      %1199 = vmatpush2.msra.mxu0 0.0
      %1200 = vmatprep.subr.mxu0 0.0
      %1201 = vmatpush2.msra.mxu0 0.0
      %1202 = vmatprep.subr.mxu0 0.0
      %1203 = vmatpush2.msra.mxu0 0.0
      %1204 = vmatprep.subr.mxu0 0.0
      %1205 = vmatpush2.msra.mxu0 0.0
      %1206 = vmatprep.subr.mxu0 0.0
      %1207 = vmatpush2.msra.mxu0 0.0
      %1208 = vmatprep.subr.mxu0 0.0
      %1209 = vmatpush2.msra.mxu0 0.0
      %1210 = vmatprep.subr.mxu0 0.0
      %1211 = vmatpush2.msra.mxu0 0.0
      %1212 = vmatprep.subr.mxu0 0.0
      %1213 = vmatpush2.msra.mxu0 0.0
      %1214 = vmatprep.subr.mxu0 0.0
      %1215 = vmatpush2.msra.mxu0 0.0
      %1216 = vmatprep.subr.mxu0 0.0
      %1217 = vmatpush2.msra.mxu0 0.0
      %1218 = vmatprep.subr.mxu0 0.0
      %1219 = vmatpush2.msra.mxu0 0.0
      %1220 = vmatprep.mubr.f32.mxu0 0.0
      %1221 = vmatmul.mubr.f32.gmra.mxu0 %v1109
      %v1222 = vpop.f32.mrf.mxu0
      %v1223 = vadd.f32 0.0, %v1222
      %v1224 = vpop.f32.mrf.mxu0
      %v1225 = vadd.f32 0.0, %v1224
      %1226 = vmatprep.mubr.f32.mxu0 0.0
      %1227 = vmatmul.mubr.f32.gmra.mxu0 %v1112
      %v1228 = vpop.f32.mrf.mxu0
      %v1229 = vadd.f32 0.0, %v1228
      %v1230 = vpop.f32.mrf.mxu0
      %v1231 = vadd.f32 0.0, %v1230
      %1232 = vmatprep.mubr.f32.mxu0 0.0
      %1233 = vmatmul.mubr.f32.gmra.mxu0 %v1115
      %v1234 = vpop.f32.mrf.mxu0
      %v1235 = vadd.f32 0.0, %v1234
      %v1236 = vpop.f32.mrf.mxu0
      %v1237 = vadd.f32 0.0, %v1236
      %1238 = vmatprep.mubr.f32.mxu0 0.0
      %1239 = vmatmul.mubr.f32.gmra.mxu0 %v1118
      %v1240 = vpop.f32.mrf.mxu0
      %v1241 = vadd.f32 0.0, %v1240
      %v1242 = vpop.f32.mrf.mxu0
      %v1243 = vadd.f32 0.0, %v1242
      %1244 = vmatprep.mubr.f32.mxu0 0.0
      %1245 = vmatmul.mubr.f32.gmra.mxu0 %v1121
      %v1246 = vpop.f32.mrf.mxu0
      %v1247 = vadd.f32 0.0, %v1246
      %v1248 = vpop.f32.mrf.mxu0
      %v1249 = vadd.f32 0.0, %v1248
      %1250 = vmatprep.mubr.f32.mxu0 0.0
      %1251 = vmatmul.mubr.f32.gmra.mxu0 %v1124
      %v1252 = vpop.f32.mrf.mxu0
      %v1253 = vadd.f32 0.0, %v1252
      %v1254 = vpop.f32.mrf.mxu0
      %v1255 = vadd.f32 0.0, %v1254
      %1256 = vmatprep.mubr.f32.mxu0 0.0
      %1257 = vmatmul.mubr.f32.gmra.mxu0 %v1127
      %v1258 = vpop.f32.mrf.mxu0
      %v1259 = vadd.f32 0.0, %v1258
      %v1260 = vpop.f32.mrf.mxu0
      %v1261 = vadd.f32 0.0, %v1260
      %1262 = vmatprep.mubr.f32.mxu0 0.0
      %1263 = vmatmul.mubr.f32.gmra.mxu0 %v1130
      %v1264 = vpop.f32.mrf.mxu0
      %v1265 = vadd.f32 0.0, %v1264
      %v1266 = vpop.f32.mrf.mxu0
      %v1267 = vadd.f32 0.0, %v1266
      %1268 = vmatprep.mubr.f32.mxu0 0.0
      %1269 = vmatmul.mubr.f32.gmra.mxu0 %v1133
      %v1270 = vpop.f32.mrf.mxu0
      %v1271 = vadd.f32 0.0, %v1270
      %v1272 = vpop.f32.mrf.mxu0
      %v1273 = vadd.f32 0.0, %v1272
      %1274 = vmatprep.mubr.f32.mxu0 0.0
      %1275 = vmatmul.mubr.f32.gmra.mxu0 %v1136
      %v1276 = vpop.f32.mrf.mxu0
      %v1277 = vadd.f32 0.0, %v1276
      %v1278 = vpop.f32.mrf.mxu0
      %v1279 = vadd.f32 0.0, %v1278
      %1280 = vmatprep.mubr.f32.mxu0 0.0
      %1281 = vmatmul.mubr.f32.gmra.mxu0 %v1139
      %v1282 = vpop.f32.mrf.mxu0
      %v1283 = vadd.f32 0.0, %v1282
      %v1284 = vpop.f32.mrf.mxu0
      %v1285 = vadd.f32 0.0, %v1284
      %1286 = vmatprep.mubr.f32.mxu0 0.0
      %1287 = vmatmul.mubr.f32.gmra.mxu0 %v1142
      %v1288 = vpop.f32.mrf.mxu0
      %v1289 = vadd.f32 0.0, %v1288
      %v1290 = vpop.f32.mrf.mxu0
      %v1291 = vadd.f32 0.0, %v1290
      %1292 = vmatprep.mubr.f32.mxu0 0.0
      %1293 = vmatmul.mubr.f32.gmra.mxu0 %v1145
      %v1294 = vpop.f32.mrf.mxu0
      %v1295 = vadd.f32 0.0, %v1294
      %v1296 = vpop.f32.mrf.mxu0
      %v1297 = vadd.f32 0.0, %v1296
      %1298 = vmatprep.mubr.f32.mxu0 0.0
      %1299 = vmatmul.mubr.f32.gmra.mxu0 %v1148
      %v1300 = vpop.f32.mrf.mxu0
      %v1301 = vadd.f32 0.0, %v1300
      %v1302 = vpop.f32.mrf.mxu0
      %v1303 = vadd.f32 0.0, %v1302
      %1304 = vmatprep.mubr.f32.mxu0 0.0
      %1305 = vmatmul.mubr.f32.gmra.mxu0 %v1151
      %v1306 = vpop.f32.mrf.mxu0
      %v1307 = vadd.f32 0.0, %v1306
      %v1308 = vpop.f32.mrf.mxu0
      %v1309 = vadd.f32 0.0, %v1308
      %1310 = vmatprep.mubr.f32.mxu0 0.0
      %1311 = vmatmul.mubr.f32.gmra.mxu0 %v1154
      %v1312 = vpop.f32.mrf.mxu0
      %v1313 = vadd.f32 0.0, %v1312
      %v1314 = vpop.f32.mrf.mxu0
      %v1315 = vadd.f32 0.0, %v1314
      %1316 = vdwg.mxu0
      %vm1317 = vmor %vm505, %vm537
      %vm1318 = vmor %vm506, %vm538
      %vm1319 = vmor %vm507, %vm539
      %vm1320 = vmor %vm508, %vm540
      %vm1321 = vmor %vm509, %vm541
      %vm1322 = vmor %vm510, %vm542
      %vm1323 = vmor %vm511, %vm543
      %vm1324 = vmor %vm512, %vm544
      %vm1325 = vmor %vm513, %vm545
      %vm1326 = vmor %vm514, %vm546
      %vm1327 = vmor %vm515, %vm547
      %vm1328 = vmor %vm516, %vm548
      %vm1329 = vmor %vm517, %vm549
      %vm1330 = vmor %vm518, %vm550
      %vm1331 = vmor %vm519, %vm551
      %vm1332 = vmor %vm520, %vm552
      %vm1333 = vmor %vm521, %vm553
      %vm1334 = vmor %vm522, %vm554
      %vm1335 = vmor %vm523, %vm555
      %vm1336 = vmor %vm524, %vm556
      %vm1337 = vmor %vm525, %vm557
      %vm1338 = vmor %vm526, %vm558
      %vm1339 = vmor %vm527, %vm559
      %vm1340 = vmor %vm528, %vm560
      %vm1341 = vmor %vm529, %vm561
      %vm1342 = vmor %vm530, %vm562
      %vm1343 = vmor %vm531, %vm563
      %vm1344 = vmor %vm532, %vm564
      %vm1345 = vmor %vm533, %vm565
      %vm1346 = vmor %vm534, %vm566
      %vm1347 = vmor %vm535, %vm567
      %vm1348 = vmor %vm536, %vm568
      %v1349 = vsel %vm1317, -1.0, %v1223
      %v1350 = vsel %vm1318, -1.0, %v1225
      %v1351 = vsel %vm1319, -1.0, %v1229
      %v1352 = vsel %vm1320, -1.0, %v1231
      %v1353 = vsel %vm1321, -1.0, %v1235
      %v1354 = vsel %vm1322, -1.0, %v1237
      %v1355 = vsel %vm1323, -1.0, %v1241
      %v1356 = vsel %vm1324, -1.0, %v1243
      %v1357 = vsel %vm1325, -1.0, %v1247
      %v1358 = vsel %vm1326, -1.0, %v1249
      %v1359 = vsel %vm1327, -1.0, %v1253
      %v1360 = vsel %vm1328, -1.0, %v1255
      %v1361 = vsel %vm1329, -1.0, %v1259
      %v1362 = vsel %vm1330, -1.0, %v1261
      %v1363 = vsel %vm1331, -1.0, %v1265
      %v1364 = vsel %vm1332, -1.0, %v1267
      %v1365 = vsel %vm1333, -1.0, %v1271
      %v1366 = vsel %vm1334, -1.0, %v1273
      %v1367 = vsel %vm1335, -1.0, %v1277
      %v1368 = vsel %vm1336, -1.0, %v1279
      %v1369 = vsel %vm1337, -1.0, %v1283
      %v1370 = vsel %vm1338, -1.0, %v1285
      %v1371 = vsel %vm1339, -1.0, %v1289
      %v1372 = vsel %vm1340, -1.0, %v1291
      %v1373 = vsel %vm1341, -1.0, %v1295
      %v1374 = vsel %vm1342, -1.0, %v1297
      %v1375 = vsel %vm1343, -1.0, %v1301
      %v1376 = vsel %vm1344, -1.0, %v1303
      %v1377 = vsel %vm1345, -1.0, %v1307
      %v1378 = vsel %vm1346, -1.0, %v1309
      %v1379 = vsel %vm1347, -1.0, %v1313
      %v1380 = vsel %vm1348, -1.0, %v1315
      %v1381 = vmax.f32 %v1349, %v1350
      %1382 = vmax.xlane.f32.xlu0 %v1381
      %v1383 = vpop.xlane.xlu0 %1382
      %v1384 = vmax.f32 %v1351, %v1352
      %1385 = vmax.xlane.f32.xlu0 %v1384
      %v1386 = vpop.xlane.xlu0 %1385
      %v1387 = vmax.f32 %v1353, %v1354
      %1388 = vmax.xlane.f32.xlu0 %v1387
      %v1389 = vpop.xlane.xlu0 %1388
      %v1390 = vmax.f32 %v1355, %v1356
      %1391 = vmax.xlane.f32.xlu0 %v1390
      %v1392 = vpop.xlane.xlu0 %1391
      %v1393 = vmax.f32 %v1357, %v1358
      %1394 = vmax.xlane.f32.xlu0 %v1393
      %v1395 = vpop.xlane.xlu0 %1394
      %v1396 = vmax.f32 %v1359, %v1360
      %1397 = vmax.xlane.f32.xlu0 %v1396
      %v1398 = vpop.xlane.xlu0 %1397
      %v1399 = vmax.f32 %v1361, %v1362
      %1400 = vmax.xlane.f32.xlu0 %v1399
      %v1401 = vpop.xlane.xlu0 %1400
      %v1402 = vmax.f32 %v1363, %v1364
      %1403 = vmax.xlane.f32.xlu0 %v1402
      %v1404 = vpop.xlane.xlu0 %1403
      %v1405 = vmax.f32 %v1365, %v1366
      %1406 = vmax.xlane.f32.xlu0 %v1405
      %v1407 = vpop.xlane.xlu0 %1406
      %v1408 = vmax.f32 %v1367, %v1368
      %1409 = vmax.xlane.f32.xlu0 %v1408
      %v1410 = vpop.xlane.xlu0 %1409
      %v1411 = vmax.f32 %v1369, %v1370
      %1412 = vmax.xlane.f32.xlu0 %v1411
      %v1413 = vpop.xlane.xlu0 %1412
      %v1414 = vmax.f32 %v1371, %v1372
      %1415 = vmax.xlane.f32.xlu0 %v1414
      %v1416 = vpop.xlane.xlu0 %1415
      %v1417 = vmax.f32 %v1373, %v1374
      %1418 = vmax.xlane.f32.xlu0 %v1417
      %v1419 = vpop.xlane.xlu0 %1418
      %v1420 = vmax.f32 %v1375, %v1376
      %1421 = vmax.xlane.f32.xlu0 %v1420
      %v1422 = vpop.xlane.xlu0 %1421
      %v1423 = vmax.f32 %v1377, %v1378
      %1424 = vmax.xlane.f32.xlu0 %v1423
      %v1425 = vpop.xlane.xlu0 %1424
      %v1426 = vmax.f32 %v1379, %v1380
      %1427 = vmax.xlane.f32.xlu0 %v1426
      %v1428 = vpop.xlane.xlu0 %1427
      %vm1429 = vcmp.eq.f32.partialorder %v1349, %v1383
      %vm1430 = vcmp.eq.f32.partialorder %v1350, %v1383
      %vm1431 = vcmp.eq.f32.partialorder %v1351, %v1386
      %vm1432 = vcmp.eq.f32.partialorder %v1352, %v1386
      %vm1433 = vcmp.eq.f32.partialorder %v1353, %v1389
      %vm1434 = vcmp.eq.f32.partialorder %v1354, %v1389
      %vm1435 = vcmp.eq.f32.partialorder %v1355, %v1392
      %vm1436 = vcmp.eq.f32.partialorder %v1356, %v1392
      %vm1437 = vcmp.eq.f32.partialorder %v1357, %v1395
      %vm1438 = vcmp.eq.f32.partialorder %v1358, %v1395
      %vm1439 = vcmp.eq.f32.partialorder %v1359, %v1398
      %vm1440 = vcmp.eq.f32.partialorder %v1360, %v1398
      %vm1441 = vcmp.eq.f32.partialorder %v1361, %v1401
      %vm1442 = vcmp.eq.f32.partialorder %v1362, %v1401
      %vm1443 = vcmp.eq.f32.partialorder %v1363, %v1404
      %vm1444 = vcmp.eq.f32.partialorder %v1364, %v1404
      %vm1445 = vcmp.eq.f32.partialorder %v1365, %v1407
      %vm1446 = vcmp.eq.f32.partialorder %v1366, %v1407
      %vm1447 = vcmp.eq.f32.partialorder %v1367, %v1410
      %vm1448 = vcmp.eq.f32.partialorder %v1368, %v1410
      %vm1449 = vcmp.eq.f32.partialorder %v1369, %v1413
      %vm1450 = vcmp.eq.f32.partialorder %v1370, %v1413
      %vm1451 = vcmp.eq.f32.partialorder %v1371, %v1416
      %vm1452 = vcmp.eq.f32.partialorder %v1372, %v1416
      %vm1453 = vcmp.eq.f32.partialorder %v1373, %v1419
      %vm1454 = vcmp.eq.f32.partialorder %v1374, %v1419
      %vm1455 = vcmp.eq.f32.partialorder %v1375, %v1422
      %vm1456 = vcmp.eq.f32.partialorder %v1376, %v1422
      %vm1457 = vcmp.eq.f32.partialorder %v1377, %v1425
      %vm1458 = vcmp.eq.f32.partialorder %v1378, %v1425
      %vm1459 = vcmp.eq.f32.partialorder %v1379, %v1428
      %vm1460 = vcmp.eq.f32.partialorder %v1380, %v1428
      %v1461 = vsel %vm1429, %v261, 256
      %v1462 = vsel %vm1430, %v262, 256
      %v1463 = vsel %vm1431, %v261, 256
      %v1464 = vsel %vm1432, %v262, 256
      %v1465 = vsel %vm1433, %v261, 256
      %v1466 = vsel %vm1434, %v262, 256
      %v1467 = vsel %vm1435, %v261, 256
      %v1468 = vsel %vm1436, %v262, 256
      %v1469 = vsel %vm1437, %v261, 256
      %v1470 = vsel %vm1438, %v262, 256
      %v1471 = vsel %vm1439, %v261, 256
      %v1472 = vsel %vm1440, %v262, 256
      %v1473 = vsel %vm1441, %v261, 256
      %v1474 = vsel %vm1442, %v262, 256
      %v1475 = vsel %vm1443, %v261, 256
      %v1476 = vsel %vm1444, %v262, 256
      %v1477 = vsel %vm1445, %v261, 256
      %v1478 = vsel %vm1446, %v262, 256
      %v1479 = vsel %vm1447, %v261, 256
      %v1480 = vsel %vm1448, %v262, 256
      %v1481 = vsel %vm1449, %v261, 256
      %v1482 = vsel %vm1450, %v262, 256
      %v1483 = vsel %vm1451, %v261, 256
      %v1484 = vsel %vm1452, %v262, 256
      %v1485 = vsel %vm1453, %v261, 256
      %v1486 = vsel %vm1454, %v262, 256
      %v1487 = vsel %vm1455, %v261, 256
      %v1488 = vsel %vm1456, %v262, 256
      %v1489 = vsel %vm1457, %v261, 256
      %v1490 = vsel %vm1458, %v262, 256
      %v1491 = vsel %vm1459, %v261, 256
      %v1492 = vsel %vm1460, %v262, 256
      %vm1493 = vcmp.lt.s32.totalorder %v1461, %v1462
      %v1494 = vsel %vm1493, %v1461, %v1462
      %v1495 = vand.u32 %v1494, 65535
      %v1496 = vshra.s32 %v1494, 16
      %v1497 = vcvt.s32.f32 %v1495
      %v1498 = vcvt.s32.f32 %v1496
      %1499 = vmin.xlane.f32.xlu0 %v1498
      %v1500 = vpop.xlane.xlu0 %1499
      %vm1501 = vcmp.eq.f32.partialorder %v1498, %v1500
      %v1502 = vsel %vm1501, %v1497, inf
      %1503 = vmin.xlane.f32.xlu0 %v1502
      %v1504 = vpop.xlane.xlu0 %1503
      %v1505 = vcvt.f32.s32 %v1504
      %v1506 = vcvt.f32.s32 %v1500
      %v1507 = vshll.u32 %v1506, 16
      %v1508 = vadd.s32 %v1507, %v1505
      %vm1509 = vcmp.lt.s32.totalorder %v1463, %v1464
      %v1510 = vsel %vm1509, %v1463, %v1464
      %v1511 = vand.u32 %v1510, 65535
      %v1512 = vshra.s32 %v1510, 16
      %v1513 = vcvt.s32.f32 %v1511
      %v1514 = vcvt.s32.f32 %v1512
      %1515 = vmin.xlane.f32.xlu0 %v1514
      %v1516 = vpop.xlane.xlu0 %1515
      %vm1517 = vcmp.eq.f32.partialorder %v1514, %v1516
      %v1518 = vsel %vm1517, %v1513, inf
      %1519 = vmin.xlane.f32.xlu0 %v1518
      %v1520 = vpop.xlane.xlu0 %1519
      %v1521 = vcvt.f32.s32 %v1520
      %v1522 = vcvt.f32.s32 %v1516
      %v1523 = vshll.u32 %v1522, 16
      %v1524 = vadd.s32 %v1523, %v1521
      %vm1525 = vcmp.lt.s32.totalorder %v1465, %v1466
      %v1526 = vsel %vm1525, %v1465, %v1466
      %v1527 = vand.u32 %v1526, 65535
      %v1528 = vshra.s32 %v1526, 16
      %v1529 = vcvt.s32.f32 %v1527
      %v1530 = vcvt.s32.f32 %v1528
      %1531 = vmin.xlane.f32.xlu0 %v1530
      %v1532 = vpop.xlane.xlu0 %1531
      %vm1533 = vcmp.eq.f32.partialorder %v1530, %v1532
      %v1534 = vsel %vm1533, %v1529, inf
      %1535 = vmin.xlane.f32.xlu0 %v1534
      %v1536 = vpop.xlane.xlu0 %1535
      %v1537 = vcvt.f32.s32 %v1536
      %v1538 = vcvt.f32.s32 %v1532
      %v1539 = vshll.u32 %v1538, 16
      %v1540 = vadd.s32 %v1539, %v1537
      %vm1541 = vcmp.lt.s32.totalorder %v1467, %v1468
      %v1542 = vsel %vm1541, %v1467, %v1468
      %v1543 = vand.u32 %v1542, 65535
      %v1544 = vshra.s32 %v1542, 16
      %v1545 = vcvt.s32.f32 %v1543
      %v1546 = vcvt.s32.f32 %v1544
      %1547 = vmin.xlane.f32.xlu0 %v1546
      %v1548 = vpop.xlane.xlu0 %1547
      %vm1549 = vcmp.eq.f32.partialorder %v1546, %v1548
      %v1550 = vsel %vm1549, %v1545, inf
      %1551 = vmin.xlane.f32.xlu0 %v1550
      %v1552 = vpop.xlane.xlu0 %1551
      %v1553 = vcvt.f32.s32 %v1552
      %v1554 = vcvt.f32.s32 %v1548
      %v1555 = vshll.u32 %v1554, 16
      %v1556 = vadd.s32 %v1555, %v1553
      %vm1557 = vcmp.lt.s32.totalorder %v1469, %v1470
      %v1558 = vsel %vm1557, %v1469, %v1470
      %v1559 = vand.u32 %v1558, 65535
      %v1560 = vshra.s32 %v1558, 16
      %v1561 = vcvt.s32.f32 %v1559
      %v1562 = vcvt.s32.f32 %v1560
      %1563 = vmin.xlane.f32.xlu0 %v1562
      %v1564 = vpop.xlane.xlu0 %1563
      %vm1565 = vcmp.eq.f32.partialorder %v1562, %v1564
      %v1566 = vsel %vm1565, %v1561, inf
      %1567 = vmin.xlane.f32.xlu0 %v1566
      %v1568 = vpop.xlane.xlu0 %1567
      %v1569 = vcvt.f32.s32 %v1568
      %v1570 = vcvt.f32.s32 %v1564
      %v1571 = vshll.u32 %v1570, 16
      %v1572 = vadd.s32 %v1571, %v1569
      %vm1573 = vcmp.lt.s32.totalorder %v1471, %v1472
      %v1574 = vsel %vm1573, %v1471, %v1472
      %v1575 = vand.u32 %v1574, 65535
      %v1576 = vshra.s32 %v1574, 16
      %v1577 = vcvt.s32.f32 %v1575
      %v1578 = vcvt.s32.f32 %v1576
      %1579 = vmin.xlane.f32.xlu0 %v1578
      %v1580 = vpop.xlane.xlu0 %1579
      %vm1581 = vcmp.eq.f32.partialorder %v1578, %v1580
      %v1582 = vsel %vm1581, %v1577, inf
      %1583 = vmin.xlane.f32.xlu0 %v1582
      %v1584 = vpop.xlane.xlu0 %1583
      %v1585 = vcvt.f32.s32 %v1584
      %v1586 = vcvt.f32.s32 %v1580
      %v1587 = vshll.u32 %v1586, 16
      %v1588 = vadd.s32 %v1587, %v1585
      %vm1589 = vcmp.lt.s32.totalorder %v1473, %v1474
      %v1590 = vsel %vm1589, %v1473, %v1474
      %v1591 = vand.u32 %v1590, 65535
      %v1592 = vshra.s32 %v1590, 16
      %v1593 = vcvt.s32.f32 %v1591
      %v1594 = vcvt.s32.f32 %v1592
      %1595 = vmin.xlane.f32.xlu0 %v1594
      %v1596 = vpop.xlane.xlu0 %1595
      %vm1597 = vcmp.eq.f32.partialorder %v1594, %v1596
      %v1598 = vsel %vm1597, %v1593, inf
      %1599 = vmin.xlane.f32.xlu0 %v1598
      %v1600 = vpop.xlane.xlu0 %1599
      %v1601 = vcvt.f32.s32 %v1600
      %v1602 = vcvt.f32.s32 %v1596
      %v1603 = vshll.u32 %v1602, 16
      %v1604 = vadd.s32 %v1603, %v1601
      %vm1605 = vcmp.lt.s32.totalorder %v1475, %v1476
      %v1606 = vsel %vm1605, %v1475, %v1476
      %v1607 = vand.u32 %v1606, 65535
      %v1608 = vshra.s32 %v1606, 16
      %v1609 = vcvt.s32.f32 %v1607
      %v1610 = vcvt.s32.f32 %v1608
      %1611 = vmin.xlane.f32.xlu0 %v1610
      %v1612 = vpop.xlane.xlu0 %1611
      %vm1613 = vcmp.eq.f32.partialorder %v1610, %v1612
      %v1614 = vsel %vm1613, %v1609, inf
      %1615 = vmin.xlane.f32.xlu0 %v1614
      %v1616 = vpop.xlane.xlu0 %1615
      %v1617 = vcvt.f32.s32 %v1616
      %v1618 = vcvt.f32.s32 %v1612
      %v1619 = vshll.u32 %v1618, 16
      %v1620 = vadd.s32 %v1619, %v1617
      %vm1621 = vcmp.lt.s32.totalorder %v1477, %v1478
      %v1622 = vsel %vm1621, %v1477, %v1478
      %v1623 = vand.u32 %v1622, 65535
      %v1624 = vshra.s32 %v1622, 16
      %v1625 = vcvt.s32.f32 %v1623
      %v1626 = vcvt.s32.f32 %v1624
      %1627 = vmin.xlane.f32.xlu0 %v1626
      %v1628 = vpop.xlane.xlu0 %1627
      %vm1629 = vcmp.eq.f32.partialorder %v1626, %v1628
      %v1630 = vsel %vm1629, %v1625, inf
      %1631 = vmin.xlane.f32.xlu0 %v1630
      %v1632 = vpop.xlane.xlu0 %1631
      %v1633 = vcvt.f32.s32 %v1632
      %v1634 = vcvt.f32.s32 %v1628
      %v1635 = vshll.u32 %v1634, 16
      %v1636 = vadd.s32 %v1635, %v1633
      %vm1637 = vcmp.lt.s32.totalorder %v1479, %v1480
      %v1638 = vsel %vm1637, %v1479, %v1480
      %v1639 = vand.u32 %v1638, 65535
      %v1640 = vshra.s32 %v1638, 16
      %v1641 = vcvt.s32.f32 %v1639
      %v1642 = vcvt.s32.f32 %v1640
      %1643 = vmin.xlane.f32.xlu0 %v1642
      %v1644 = vpop.xlane.xlu0 %1643
      %vm1645 = vcmp.eq.f32.partialorder %v1642, %v1644
      %v1646 = vsel %vm1645, %v1641, inf
      %1647 = vmin.xlane.f32.xlu0 %v1646
      %v1648 = vpop.xlane.xlu0 %1647
      %v1649 = vcvt.f32.s32 %v1648
      %v1650 = vcvt.f32.s32 %v1644
      %v1651 = vshll.u32 %v1650, 16
      %v1652 = vadd.s32 %v1651, %v1649
      %vm1653 = vcmp.lt.s32.totalorder %v1481, %v1482
      %v1654 = vsel %vm1653, %v1481, %v1482
      %v1655 = vand.u32 %v1654, 65535
      %v1656 = vshra.s32 %v1654, 16
      %v1657 = vcvt.s32.f32 %v1655
      %v1658 = vcvt.s32.f32 %v1656
      %1659 = vmin.xlane.f32.xlu0 %v1658
      %v1660 = vpop.xlane.xlu0 %1659
      %vm1661 = vcmp.eq.f32.partialorder %v1658, %v1660
      %v1662 = vsel %vm1661, %v1657, inf
      %1663 = vmin.xlane.f32.xlu0 %v1662
      %v1664 = vpop.xlane.xlu0 %1663
      %v1665 = vcvt.f32.s32 %v1664
      %v1666 = vcvt.f32.s32 %v1660
      %v1667 = vshll.u32 %v1666, 16
      %v1668 = vadd.s32 %v1667, %v1665
      %vm1669 = vcmp.lt.s32.totalorder %v1483, %v1484
      %v1670 = vsel %vm1669, %v1483, %v1484
      %v1671 = vand.u32 %v1670, 65535
      %v1672 = vshra.s32 %v1670, 16
      %v1673 = vcvt.s32.f32 %v1671
      %v1674 = vcvt.s32.f32 %v1672
      %1675 = vmin.xlane.f32.xlu0 %v1674
      %v1676 = vpop.xlane.xlu0 %1675
      %vm1677 = vcmp.eq.f32.partialorder %v1674, %v1676
      %v1678 = vsel %vm1677, %v1673, inf
      %1679 = vmin.xlane.f32.xlu0 %v1678
      %v1680 = vpop.xlane.xlu0 %1679
      %v1681 = vcvt.f32.s32 %v1680
      %v1682 = vcvt.f32.s32 %v1676
      %v1683 = vshll.u32 %v1682, 16
      %v1684 = vadd.s32 %v1683, %v1681
      %vm1685 = vcmp.lt.s32.totalorder %v1485, %v1486
      %v1686 = vsel %vm1685, %v1485, %v1486
      %v1687 = vand.u32 %v1686, 65535
      %v1688 = vshra.s32 %v1686, 16
      %v1689 = vcvt.s32.f32 %v1687
      %v1690 = vcvt.s32.f32 %v1688
      %1691 = vmin.xlane.f32.xlu0 %v1690
      %v1692 = vpop.xlane.xlu0 %1691
      %vm1693 = vcmp.eq.f32.partialorder %v1690, %v1692
      %v1694 = vsel %vm1693, %v1689, inf
      %1695 = vmin.xlane.f32.xlu0 %v1694
      %v1696 = vpop.xlane.xlu0 %1695
      %v1697 = vcvt.f32.s32 %v1696
      %v1698 = vcvt.f32.s32 %v1692
      %v1699 = vshll.u32 %v1698, 16
      %v1700 = vadd.s32 %v1699, %v1697
      %vm1701 = vcmp.lt.s32.totalorder %v1487, %v1488
      %v1702 = vsel %vm1701, %v1487, %v1488
      %v1703 = vand.u32 %v1702, 65535
      %v1704 = vshra.s32 %v1702, 16
      %v1705 = vcvt.s32.f32 %v1703
      %v1706 = vcvt.s32.f32 %v1704
      %1707 = vmin.xlane.f32.xlu0 %v1706
      %v1708 = vpop.xlane.xlu0 %1707
      %vm1709 = vcmp.eq.f32.partialorder %v1706, %v1708
      %v1710 = vsel %vm1709, %v1705, inf
      %1711 = vmin.xlane.f32.xlu0 %v1710
      %v1712 = vpop.xlane.xlu0 %1711
      %v1713 = vcvt.f32.s32 %v1712
      %v1714 = vcvt.f32.s32 %v1708
      %v1715 = vshll.u32 %v1714, 16
      %v1716 = vadd.s32 %v1715, %v1713
      %vm1717 = vcmp.lt.s32.totalorder %v1489, %v1490
      %v1718 = vsel %vm1717, %v1489, %v1490
      %v1719 = vand.u32 %v1718, 65535
      %v1720 = vshra.s32 %v1718, 16
      %v1721 = vcvt.s32.f32 %v1719
      %v1722 = vcvt.s32.f32 %v1720
      %1723 = vmin.xlane.f32.xlu0 %v1722
      %v1724 = vpop.xlane.xlu0 %1723
      %vm1725 = vcmp.eq.f32.partialorder %v1722, %v1724
      %v1726 = vsel %vm1725, %v1721, inf
      %1727 = vmin.xlane.f32.xlu0 %v1726
      %v1728 = vpop.xlane.xlu0 %1727
      %v1729 = vcvt.f32.s32 %v1728
      %v1730 = vcvt.f32.s32 %v1724
      %v1731 = vshll.u32 %v1730, 16
      %v1732 = vadd.s32 %v1731, %v1729
      %vm1733 = vcmp.lt.s32.totalorder %v1491, %v1492
      %v1734 = vsel %vm1733, %v1491, %v1492
      %v1735 = vand.u32 %v1734, 65535
      %v1736 = vshra.s32 %v1734, 16
      %v1737 = vcvt.s32.f32 %v1735
      %v1738 = vcvt.s32.f32 %v1736
      %1739 = vmin.xlane.f32.xlu0 %v1738
      %v1740 = vpop.xlane.xlu0 %1739
      %vm1741 = vcmp.eq.f32.partialorder %v1738, %v1740
      %v1742 = vsel %vm1741, %v1737, inf
      %1743 = vmin.xlane.f32.xlu0 %v1742
      %v1744 = vpop.xlane.xlu0 %1743
      %v1745 = vcvt.f32.s32 %v1744
      %v1746 = vcvt.f32.s32 %v1740
      %v1747 = vshll.u32 %v1746, 16
      %v1748 = vadd.s32 %v1747, %v1745
      %vm1749 = vcmp.eq.s32.totalorder %v261, %v1508
      %vm1750 = vcmp.eq.s32.totalorder %v262, %v1508
      %vm1751 = vcmp.eq.s32.totalorder %v261, %v1524
      %vm1752 = vcmp.eq.s32.totalorder %v262, %v1524
      %vm1753 = vcmp.eq.s32.totalorder %v261, %v1540
      %vm1754 = vcmp.eq.s32.totalorder %v262, %v1540
      %vm1755 = vcmp.eq.s32.totalorder %v261, %v1556
      %vm1756 = vcmp.eq.s32.totalorder %v262, %v1556
      %vm1757 = vcmp.eq.s32.totalorder %v261, %v1572
      %vm1758 = vcmp.eq.s32.totalorder %v262, %v1572
      %vm1759 = vcmp.eq.s32.totalorder %v261, %v1588
      %vm1760 = vcmp.eq.s32.totalorder %v262, %v1588
      %vm1761 = vcmp.eq.s32.totalorder %v261, %v1604
      %vm1762 = vcmp.eq.s32.totalorder %v262, %v1604
      %vm1763 = vcmp.eq.s32.totalorder %v261, %v1620
      %vm1764 = vcmp.eq.s32.totalorder %v262, %v1620
      %vm1765 = vcmp.eq.s32.totalorder %v261, %v1636
      %vm1766 = vcmp.eq.s32.totalorder %v262, %v1636
      %vm1767 = vcmp.eq.s32.totalorder %v261, %v1652
      %vm1768 = vcmp.eq.s32.totalorder %v262, %v1652
      %vm1769 = vcmp.eq.s32.totalorder %v261, %v1668
      %vm1770 = vcmp.eq.s32.totalorder %v262, %v1668
      %vm1771 = vcmp.eq.s32.totalorder %v261, %v1684
      %vm1772 = vcmp.eq.s32.totalorder %v262, %v1684
      %vm1773 = vcmp.eq.s32.totalorder %v261, %v1700
      %vm1774 = vcmp.eq.s32.totalorder %v262, %v1700
      %vm1775 = vcmp.eq.s32.totalorder %v261, %v1716
      %vm1776 = vcmp.eq.s32.totalorder %v262, %v1716
      %vm1777 = vcmp.eq.s32.totalorder %v261, %v1732
      %vm1778 = vcmp.eq.s32.totalorder %v262, %v1732
      %vm1779 = vcmp.eq.s32.totalorder %v261, %v1748
      %vm1780 = vcmp.eq.s32.totalorder %v262, %v1748
      %v1781 = vsel %vm537, 1, 0
      %v1782 = vsel %vm538, 1, 0
      %v1783 = vsel %vm539, 1, 0
      %v1784 = vsel %vm540, 1, 0
      %v1785 = vsel %vm541, 1, 0
      %v1786 = vsel %vm542, 1, 0
      %v1787 = vsel %vm543, 1, 0
      %v1788 = vsel %vm544, 1, 0
      %v1789 = vsel %vm545, 1, 0
      %v1790 = vsel %vm546, 1, 0
      %v1791 = vsel %vm547, 1, 0
      %v1792 = vsel %vm548, 1, 0
      %v1793 = vsel %vm549, 1, 0
      %v1794 = vsel %vm550, 1, 0
      %v1795 = vsel %vm551, 1, 0
      %v1796 = vsel %vm552, 1, 0
      %v1797 = vsel %vm553, 1, 0
      %v1798 = vsel %vm554, 1, 0
      %v1799 = vsel %vm555, 1, 0
      %v1800 = vsel %vm556, 1, 0
      %v1801 = vsel %vm557, 1, 0
      %v1802 = vsel %vm558, 1, 0
      %v1803 = vsel %vm559, 1, 0
      %v1804 = vsel %vm560, 1, 0
      %v1805 = vsel %vm561, 1, 0
      %v1806 = vsel %vm562, 1, 0
      %v1807 = vsel %vm563, 1, 0
      %v1808 = vsel %vm564, 1, 0
      %v1809 = vsel %vm565, 1, 0
      %v1810 = vsel %vm566, 1, 0
      %v1811 = vsel %vm567, 1, 0
      %v1812 = vsel %vm568, 1, 0
      %v1813 = vcvt.s32.f32 %v1781
      %v1814 = vcvt.s32.f32 %v1782
      %v1815 = vcvt.s32.f32 %v1783
      %v1816 = vcvt.s32.f32 %v1784
      %v1817 = vcvt.s32.f32 %v1785
      %v1818 = vcvt.s32.f32 %v1786
      %v1819 = vcvt.s32.f32 %v1787
      %v1820 = vcvt.s32.f32 %v1788
      %v1821 = vcvt.s32.f32 %v1789
      %v1822 = vcvt.s32.f32 %v1790
      %v1823 = vcvt.s32.f32 %v1791
      %v1824 = vcvt.s32.f32 %v1792
      %v1825 = vcvt.s32.f32 %v1793
      %v1826 = vcvt.s32.f32 %v1794
      %v1827 = vcvt.s32.f32 %v1795
      %v1828 = vcvt.s32.f32 %v1796
      %v1829 = vcvt.s32.f32 %v1797
      %v1830 = vcvt.s32.f32 %v1798
      %v1831 = vcvt.s32.f32 %v1799
      %v1832 = vcvt.s32.f32 %v1800
      %v1833 = vcvt.s32.f32 %v1801
      %v1834 = vcvt.s32.f32 %v1802
      %v1835 = vcvt.s32.f32 %v1803
      %v1836 = vcvt.s32.f32 %v1804
      %v1837 = vcvt.s32.f32 %v1805
      %v1838 = vcvt.s32.f32 %v1806
      %v1839 = vcvt.s32.f32 %v1807
      %v1840 = vcvt.s32.f32 %v1808
      %v1841 = vcvt.s32.f32 %v1809
      %v1842 = vcvt.s32.f32 %v1810
      %v1843 = vcvt.s32.f32 %v1811
      %v1844 = vcvt.s32.f32 %v1812
      %v1845 = vsel %vm1749, 1, 0
      %v1846 = vsel %vm1750, 1, 0
      %v1847 = vsel %vm1751, 1, 0
      %v1848 = vsel %vm1752, 1, 0
      %v1849 = vsel %vm1753, 1, 0
      %v1850 = vsel %vm1754, 1, 0
      %v1851 = vsel %vm1755, 1, 0
      %v1852 = vsel %vm1756, 1, 0
      %v1853 = vsel %vm1757, 1, 0
      %v1854 = vsel %vm1758, 1, 0
      %v1855 = vsel %vm1759, 1, 0
      %v1856 = vsel %vm1760, 1, 0
      %v1857 = vsel %vm1761, 1, 0
      %v1858 = vsel %vm1762, 1, 0
      %v1859 = vsel %vm1763, 1, 0
      %v1860 = vsel %vm1764, 1, 0
      %v1861 = vsel %vm1765, 1, 0
      %v1862 = vsel %vm1766, 1, 0
      %v1863 = vsel %vm1767, 1, 0
      %v1864 = vsel %vm1768, 1, 0
      %v1865 = vsel %vm1769, 1, 0
      %v1866 = vsel %vm1770, 1, 0
      %v1867 = vsel %vm1771, 1, 0
      %v1868 = vsel %vm1772, 1, 0
      %v1869 = vsel %vm1773, 1, 0
      %v1870 = vsel %vm1774, 1, 0
      %v1871 = vsel %vm1775, 1, 0
      %v1872 = vsel %vm1776, 1, 0
      %v1873 = vsel %vm1777, 1, 0
      %v1874 = vsel %vm1778, 1, 0
      %v1875 = vsel %vm1779, 1, 0
      %v1876 = vsel %vm1780, 1, 0
      %v1877 = vcvt.s32.f32 %v1845
      %v1878 = vcvt.s32.f32 %v1846
      %v1879 = vcvt.s32.f32 %v1847
      %v1880 = vcvt.s32.f32 %v1848
      %v1881 = vcvt.s32.f32 %v1849
      %v1882 = vcvt.s32.f32 %v1850
      %v1883 = vcvt.s32.f32 %v1851
      %v1884 = vcvt.s32.f32 %v1852
      %v1885 = vcvt.s32.f32 %v1853
      %v1886 = vcvt.s32.f32 %v1854
      %v1887 = vcvt.s32.f32 %v1855
      %v1888 = vcvt.s32.f32 %v1856
      %v1889 = vcvt.s32.f32 %v1857
      %v1890 = vcvt.s32.f32 %v1858
      %v1891 = vcvt.s32.f32 %v1859
      %v1892 = vcvt.s32.f32 %v1860
      %v1893 = vcvt.s32.f32 %v1861
      %v1894 = vcvt.s32.f32 %v1862
      %v1895 = vcvt.s32.f32 %v1863
      %v1896 = vcvt.s32.f32 %v1864
      %v1897 = vcvt.s32.f32 %v1865
      %v1898 = vcvt.s32.f32 %v1866
      %v1899 = vcvt.s32.f32 %v1867
      %v1900 = vcvt.s32.f32 %v1868
      %v1901 = vcvt.s32.f32 %v1869
      %v1902 = vcvt.s32.f32 %v1870
      %v1903 = vcvt.s32.f32 %v1871
      %v1904 = vcvt.s32.f32 %v1872
      %v1905 = vcvt.s32.f32 %v1873
      %v1906 = vcvt.s32.f32 %v1874
      %v1907 = vcvt.s32.f32 %v1875
      %v1908 = vcvt.s32.f32 %v1876
      %v1909 = vadd.f32 %v1813, %v1877
      %v1910 = vadd.f32 %v1814, %v1878
      %v1911 = vadd.f32 %v1815, %v1879
      %v1912 = vadd.f32 %v1816, %v1880
      %v1913 = vadd.f32 %v1817, %v1881
      %v1914 = vadd.f32 %v1818, %v1882
      %v1915 = vadd.f32 %v1819, %v1883
      %v1916 = vadd.f32 %v1820, %v1884
      %v1917 = vadd.f32 %v1821, %v1885
      %v1918 = vadd.f32 %v1822, %v1886
      %v1919 = vadd.f32 %v1823, %v1887
      %v1920 = vadd.f32 %v1824, %v1888
      %v1921 = vadd.f32 %v1825, %v1889
      %v1922 = vadd.f32 %v1826, %v1890
      %v1923 = vadd.f32 %v1827, %v1891
      %v1924 = vadd.f32 %v1828, %v1892
      %v1925 = vadd.f32 %v1829, %v1893
      %v1926 = vadd.f32 %v1830, %v1894
      %v1927 = vadd.f32 %v1831, %v1895
      %v1928 = vadd.f32 %v1832, %v1896
      %v1929 = vadd.f32 %v1833, %v1897
      %v1930 = vadd.f32 %v1834, %v1898
      %v1931 = vadd.f32 %v1835, %v1899
      %v1932 = vadd.f32 %v1836, %v1900
      %v1933 = vadd.f32 %v1837, %v1901
      %v1934 = vadd.f32 %v1838, %v1902
      %v1935 = vadd.f32 %v1839, %v1903
      %v1936 = vadd.f32 %v1840, %v1904
      %v1937 = vadd.f32 %v1841, %v1905
      %v1938 = vadd.f32 %v1842, %v1906
      %v1939 = vadd.f32 %v1843, %v1907
      %v1940 = vadd.f32 %v1844, %v1908
      %vm1941 = vcmask 7168
      %v1942 = vsel %vm1941, %v1059, 0.0
      %v1943 = vsel %vm1941, %v1060, 0.0
      %v1944 = vadd.f32 %v1942, %v1943
      %v1945 = vsel %vm1941, %v1061, 0.0
      %v1946 = vadd.f32 %v1944, %v1945
      %v1947 = vsel %vm1941, %v1062, 0.0
      %v1948 = vadd.f32 %v1946, %v1947
      %v1949 = vsel %vm1941, %v1063, 0.0
      %v1950 = vadd.f32 %v1948, %v1949
      %v1951 = vsel %vm1941, %v1064, 0.0
      %v1952 = vadd.f32 %v1950, %v1951
      %v1953 = vsel %vm1941, %v1065, 0.0
      %v1954 = vadd.f32 %v1952, %v1953
      %v1955 = vsel %vm1941, %v1066, 0.0
      %v1956 = vadd.f32 %v1954, %v1955
      %v1957 = vsel %vm1941, %v1067, 0.0
      %v1958 = vadd.f32 %v1956, %v1957
      %v1959 = vsel %vm1941, %v1068, 0.0
      %v1960 = vadd.f32 %v1958, %v1959
      %v1961 = vsel %vm1941, %v1069, 0.0
      %v1962 = vadd.f32 %v1960, %v1961
      %v1963 = vsel %vm1941, %v1070, 0.0
      %v1964 = vadd.f32 %v1962, %v1963
      %v1965 = vsel %vm1941, %v1071, 0.0
      %v1966 = vadd.f32 %v1964, %v1965
      %v1967 = vsel %vm1941, %v1072, 0.0
      %v1968 = vadd.f32 %v1966, %v1967
      %v1969 = vsel %vm1941, %v1073, 0.0
      %v1970 = vadd.f32 %v1968, %v1969
      %v1971 = vsel %vm1941, %v1074, 0.0
      %v1972 = vadd.f32 %v1970, %v1971
      %1973 = vadd.xlane.f32.xlu0 %v1972
      %v1974 = vpop.xlane.xlu0 %1973
      %v1975 = vrot.slane %v1974, 4
      %v1976 = vadd.f32 %v1974, %v1975
      %v1977 = vrot.slane %v1976, 2
      %v1978 = vadd.f32 %v1976, %v1977
      %v1979 = vrot.slane %v1978, 1
      %v1980 = vadd.f32 %v1978, %v1979
      %s1981 = vtos %v1980
      %s1982 = smul.f32 %s1981, 2.0
      %v1983 = vmul.f32 %v1909, %v803
      %v1984 = vmul.f32 %v1910, %v804
      %v1985 = vmul.f32 %v1911, %v805
      %v1986 = vmul.f32 %v1912, %v806
      %v1987 = vmul.f32 %v1913, %v807
      %v1988 = vmul.f32 %v1914, %v808
      %v1989 = vmul.f32 %v1915, %v809
      %v1990 = vmul.f32 %v1916, %v810
      %v1991 = vmul.f32 %v1917, %v811
      %v1992 = vmul.f32 %v1918, %v812
      %v1993 = vmul.f32 %v1919, %v813
      %v1994 = vmul.f32 %v1920, %v814
      %v1995 = vmul.f32 %v1921, %v815
      %v1996 = vmul.f32 %v1922, %v816
      %v1997 = vmul.f32 %v1923, %v817
      %v1998 = vmul.f32 %v1924, %v818
      %v1999 = vmul.f32 %v1925, %v819
      %v2000 = vmul.f32 %v1926, %v820
      %v2001 = vmul.f32 %v1927, %v821
      %v2002 = vmul.f32 %v1928, %v822
      %v2003 = vmul.f32 %v1929, %v823
      %v2004 = vmul.f32 %v1930, %v824
      %v2005 = vmul.f32 %v1931, %v825
      %v2006 = vmul.f32 %v1932, %v826
      %v2007 = vmul.f32 %v1933, %v827
      %v2008 = vmul.f32 %v1934, %v828
      %v2009 = vmul.f32 %v1935, %v829
      %v2010 = vmul.f32 %v1936, %v830
      %v2011 = vmul.f32 %v1937, %v831
      %v2012 = vmul.f32 %v1938, %v832
      %v2013 = vmul.f32 %v1939, %v833
      %v2014 = vmul.f32 %v1940, %v834
      %v2015 = vadd.f32 %v1983, %v1984
      %v2016 = vadd.f32 %v2015, %v1985
      %v2017 = vadd.f32 %v2016, %v1986
      %v2018 = vadd.f32 %v2017, %v1987
      %v2019 = vadd.f32 %v2018, %v1988
      %v2020 = vadd.f32 %v2019, %v1989
      %v2021 = vadd.f32 %v2020, %v1990
      %v2022 = vadd.f32 %v2021, %v1991
      %v2023 = vadd.f32 %v2022, %v1992
      %v2024 = vadd.f32 %v2023, %v1993
      %v2025 = vadd.f32 %v2024, %v1994
      %v2026 = vadd.f32 %v2025, %v1995
      %v2027 = vadd.f32 %v2026, %v1996
      %v2028 = vadd.f32 %v2027, %v1997
      %v2029 = vadd.f32 %v2028, %v1998
      %v2030 = vadd.f32 %v2029, %v1999
      %v2031 = vadd.f32 %v2030, %v2000
      %v2032 = vadd.f32 %v2031, %v2001
      %v2033 = vadd.f32 %v2032, %v2002
      %v2034 = vadd.f32 %v2033, %v2003
      %v2035 = vadd.f32 %v2034, %v2004
      %v2036 = vadd.f32 %v2035, %v2005
      %v2037 = vadd.f32 %v2036, %v2006
      %v2038 = vadd.f32 %v2037, %v2007
      %v2039 = vadd.f32 %v2038, %v2008
      %v2040 = vadd.f32 %v2039, %v2009
      %v2041 = vadd.f32 %v2040, %v2010
      %v2042 = vadd.f32 %v2041, %v2011
      %v2043 = vadd.f32 %v2042, %v2012
      %v2044 = vadd.f32 %v2043, %v2013
      %v2045 = vadd.f32 %v2044, %v2014
      %2046 = vadd.xlane.f32.xlu0 %v2045
      %v2047 = vpop.xlane.xlu0 %2046
      %v2048 = vrot.slane %v2047, 4
      %v2049 = vadd.f32 %v2047, %v2048
      %v2050 = vrot.slane %v2049, 2
      %v2051 = vadd.f32 %v2049, %v2050
      %v2052 = vrot.slane %v2051, 1
      %v2053 = vadd.f32 %v2051, %v2052
      %s2054 = vtos %v2053
      %s2055 = ssub.f32 %s1982, %s2054
      %v2056 = vstv %s2055
      %vm2057 = vcmask 0
      %2058 = vst.msk [vmem:[%s252] sm:$0x1] %vm2057, %v2056
      %vm2059 = vcmp.eq.f32.partialorder %v803, %v837
      %vm2060 = vcmp.eq.f32.partialorder %v804, %v837
      %vm2061 = vcmp.eq.f32.partialorder %v805, %v840
      %vm2062 = vcmp.eq.f32.partialorder %v806, %v840
      %vm2063 = vcmp.eq.f32.partialorder %v807, %v843
      %vm2064 = vcmp.eq.f32.partialorder %v808, %v843
      %vm2065 = vcmp.eq.f32.partialorder %v809, %v846
      %vm2066 = vcmp.eq.f32.partialorder %v810, %v846
      %vm2067 = vcmp.eq.f32.partialorder %v811, %v849
      %vm2068 = vcmp.eq.f32.partialorder %v812, %v849
      %vm2069 = vcmp.eq.f32.partialorder %v813, %v852
      %vm2070 = vcmp.eq.f32.partialorder %v814, %v852
      %vm2071 = vcmp.eq.f32.partialorder %v815, %v855
      %vm2072 = vcmp.eq.f32.partialorder %v816, %v855
      %vm2073 = vcmp.eq.f32.partialorder %v817, %v858
      %vm2074 = vcmp.eq.f32.partialorder %v818, %v858
      %vm2075 = vcmp.eq.f32.partialorder %v819, %v861
      %vm2076 = vcmp.eq.f32.partialorder %v820, %v861
      %vm2077 = vcmp.eq.f32.partialorder %v821, %v864
      %vm2078 = vcmp.eq.f32.partialorder %v822, %v864
      %vm2079 = vcmp.eq.f32.partialorder %v823, %v867
      %vm2080 = vcmp.eq.f32.partialorder %v824, %v867
      %vm2081 = vcmp.eq.f32.partialorder %v825, %v870
      %vm2082 = vcmp.eq.f32.partialorder %v826, %v870
      %vm2083 = vcmp.eq.f32.partialorder %v827, %v873
      %vm2084 = vcmp.eq.f32.partialorder %v828, %v873
      %vm2085 = vcmp.eq.f32.partialorder %v829, %v876
      %vm2086 = vcmp.eq.f32.partialorder %v830, %v876
      %vm2087 = vcmp.eq.f32.partialorder %v831, %v879
      %vm2088 = vcmp.eq.f32.partialorder %v832, %v879
      %vm2089 = vcmp.eq.f32.partialorder %v833, %v882
      %vm2090 = vcmp.eq.f32.partialorder %v834, %v882
      %v2091 = vsel %vm2059, %v261, 256
      %v2092 = vsel %vm2060, %v262, 256
      %v2093 = vsel %vm2061, %v261, 256
      %v2094 = vsel %vm2062, %v262, 256
      %v2095 = vsel %vm2063, %v261, 256
      %v2096 = vsel %vm2064, %v262, 256
      %v2097 = vsel %vm2065, %v261, 256
      %v2098 = vsel %vm2066, %v262, 256
      %v2099 = vsel %vm2067, %v261, 256
      %v2100 = vsel %vm2068, %v262, 256
      %v2101 = vsel %vm2069, %v261, 256
      %v2102 = vsel %vm2070, %v262, 256
      %v2103 = vsel %vm2071, %v261, 256
      %v2104 = vsel %vm2072, %v262, 256
      %v2105 = vsel %vm2073, %v261, 256
      %v2106 = vsel %vm2074, %v262, 256
      %v2107 = vsel %vm2075, %v261, 256
      %v2108 = vsel %vm2076, %v262, 256
      %v2109 = vsel %vm2077, %v261, 256
      %v2110 = vsel %vm2078, %v262, 256
      %v2111 = vsel %vm2079, %v261, 256
      %v2112 = vsel %vm2080, %v262, 256
      %v2113 = vsel %vm2081, %v261, 256
      %v2114 = vsel %vm2082, %v262, 256
      %v2115 = vsel %vm2083, %v261, 256
      %v2116 = vsel %vm2084, %v262, 256
      %v2117 = vsel %vm2085, %v261, 256
      %v2118 = vsel %vm2086, %v262, 256
      %v2119 = vsel %vm2087, %v261, 256
      %v2120 = vsel %vm2088, %v262, 256
      %v2121 = vsel %vm2089, %v261, 256
      %v2122 = vsel %vm2090, %v262, 256
      %vm2123 = vcmp.lt.s32.totalorder %v2091, %v2092
      %v2124 = vsel %vm2123, %v2091, %v2092
      %v2125 = vand.u32 %v2124, 65535
      %v2126 = vshra.s32 %v2124, 16
      %v2127 = vcvt.s32.f32 %v2125
      %v2128 = vcvt.s32.f32 %v2126
      %2129 = vmin.xlane.f32.xlu0 %v2128
      %v2130 = vpop.xlane.xlu0 %2129
      %vm2131 = vcmp.eq.f32.partialorder %v2128, %v2130
      %v2132 = vsel %vm2131, %v2127, inf
      %2133 = vmin.xlane.f32.xlu0 %v2132
      %v2134 = vpop.xlane.xlu0 %2133
      %v2135 = vcvt.f32.s32 %v2134
      %v2136 = vcvt.f32.s32 %v2130
      %v2137 = vshll.u32 %v2136, 16
      %v2138 = vadd.s32 %v2137, %v2135
      %vm2139 = vcmp.lt.s32.totalorder %v2093, %v2094
      %v2140 = vsel %vm2139, %v2093, %v2094
      %v2141 = vand.u32 %v2140, 65535
      %v2142 = vshra.s32 %v2140, 16
      %v2143 = vcvt.s32.f32 %v2141
      %v2144 = vcvt.s32.f32 %v2142
      %2145 = vmin.xlane.f32.xlu0 %v2144
      %v2146 = vpop.xlane.xlu0 %2145
      %vm2147 = vcmp.eq.f32.partialorder %v2144, %v2146
      %v2148 = vsel %vm2147, %v2143, inf
      %2149 = vmin.xlane.f32.xlu0 %v2148
      %v2150 = vpop.xlane.xlu0 %2149
      %v2151 = vcvt.f32.s32 %v2150
      %v2152 = vcvt.f32.s32 %v2146
      %v2153 = vshll.u32 %v2152, 16
      %v2154 = vadd.s32 %v2153, %v2151
      %vm2155 = vcmp.lt.s32.totalorder %v2095, %v2096
      %v2156 = vsel %vm2155, %v2095, %v2096
      %v2157 = vand.u32 %v2156, 65535
      %v2158 = vshra.s32 %v2156, 16
      %v2159 = vcvt.s32.f32 %v2157
      %v2160 = vcvt.s32.f32 %v2158
      %2161 = vmin.xlane.f32.xlu0 %v2160
      %v2162 = vpop.xlane.xlu0 %2161
      %vm2163 = vcmp.eq.f32.partialorder %v2160, %v2162
      %v2164 = vsel %vm2163, %v2159, inf
      %2165 = vmin.xlane.f32.xlu0 %v2164
      %v2166 = vpop.xlane.xlu0 %2165
      %v2167 = vcvt.f32.s32 %v2166
      %v2168 = vcvt.f32.s32 %v2162
      %v2169 = vshll.u32 %v2168, 16
      %v2170 = vadd.s32 %v2169, %v2167
      %vm2171 = vcmp.lt.s32.totalorder %v2097, %v2098
      %v2172 = vsel %vm2171, %v2097, %v2098
      %v2173 = vand.u32 %v2172, 65535
      %v2174 = vshra.s32 %v2172, 16
      %v2175 = vcvt.s32.f32 %v2173
      %v2176 = vcvt.s32.f32 %v2174
      %2177 = vmin.xlane.f32.xlu0 %v2176
      %v2178 = vpop.xlane.xlu0 %2177
      %vm2179 = vcmp.eq.f32.partialorder %v2176, %v2178
      %v2180 = vsel %vm2179, %v2175, inf
      %2181 = vmin.xlane.f32.xlu0 %v2180
      %v2182 = vpop.xlane.xlu0 %2181
      %v2183 = vcvt.f32.s32 %v2182
      %v2184 = vcvt.f32.s32 %v2178
      %v2185 = vshll.u32 %v2184, 16
      %v2186 = vadd.s32 %v2185, %v2183
      %vm2187 = vcmp.lt.s32.totalorder %v2099, %v2100
      %v2188 = vsel %vm2187, %v2099, %v2100
      %v2189 = vand.u32 %v2188, 65535
      %v2190 = vshra.s32 %v2188, 16
      %v2191 = vcvt.s32.f32 %v2189
      %v2192 = vcvt.s32.f32 %v2190
      %2193 = vmin.xlane.f32.xlu0 %v2192
      %v2194 = vpop.xlane.xlu0 %2193
      %vm2195 = vcmp.eq.f32.partialorder %v2192, %v2194
      %v2196 = vsel %vm2195, %v2191, inf
      %2197 = vmin.xlane.f32.xlu0 %v2196
      %v2198 = vpop.xlane.xlu0 %2197
      %v2199 = vcvt.f32.s32 %v2198
      %v2200 = vcvt.f32.s32 %v2194
      %v2201 = vshll.u32 %v2200, 16
      %v2202 = vadd.s32 %v2201, %v2199
      %vm2203 = vcmp.lt.s32.totalorder %v2101, %v2102
      %v2204 = vsel %vm2203, %v2101, %v2102
      %v2205 = vand.u32 %v2204, 65535
      %v2206 = vshra.s32 %v2204, 16
      %v2207 = vcvt.s32.f32 %v2205
      %v2208 = vcvt.s32.f32 %v2206
      %2209 = vmin.xlane.f32.xlu0 %v2208
      %v2210 = vpop.xlane.xlu0 %2209
      %vm2211 = vcmp.eq.f32.partialorder %v2208, %v2210
      %v2212 = vsel %vm2211, %v2207, inf
      %2213 = vmin.xlane.f32.xlu0 %v2212
      %v2214 = vpop.xlane.xlu0 %2213
      %v2215 = vcvt.f32.s32 %v2214
      %v2216 = vcvt.f32.s32 %v2210
      %v2217 = vshll.u32 %v2216, 16
      %v2218 = vadd.s32 %v2217, %v2215
      %vm2219 = vcmp.lt.s32.totalorder %v2103, %v2104
      %v2220 = vsel %vm2219, %v2103, %v2104
      %v2221 = vand.u32 %v2220, 65535
      %v2222 = vshra.s32 %v2220, 16
      %v2223 = vcvt.s32.f32 %v2221
      %v2224 = vcvt.s32.f32 %v2222
      %2225 = vmin.xlane.f32.xlu0 %v2224
      %v2226 = vpop.xlane.xlu0 %2225
      %vm2227 = vcmp.eq.f32.partialorder %v2224, %v2226
      %v2228 = vsel %vm2227, %v2223, inf
      %2229 = vmin.xlane.f32.xlu0 %v2228
      %v2230 = vpop.xlane.xlu0 %2229
      %v2231 = vcvt.f32.s32 %v2230
      %v2232 = vcvt.f32.s32 %v2226
      %v2233 = vshll.u32 %v2232, 16
      %v2234 = vadd.s32 %v2233, %v2231
      %vm2235 = vcmp.lt.s32.totalorder %v2105, %v2106
      %v2236 = vsel %vm2235, %v2105, %v2106
      %v2237 = vand.u32 %v2236, 65535
      %v2238 = vshra.s32 %v2236, 16
      %v2239 = vcvt.s32.f32 %v2237
      %v2240 = vcvt.s32.f32 %v2238
      %2241 = vmin.xlane.f32.xlu0 %v2240
      %v2242 = vpop.xlane.xlu0 %2241
      %vm2243 = vcmp.eq.f32.partialorder %v2240, %v2242
      %v2244 = vsel %vm2243, %v2239, inf
      %2245 = vmin.xlane.f32.xlu0 %v2244
      %v2246 = vpop.xlane.xlu0 %2245
      %v2247 = vcvt.f32.s32 %v2246
      %v2248 = vcvt.f32.s32 %v2242
      %v2249 = vshll.u32 %v2248, 16
      %v2250 = vadd.s32 %v2249, %v2247
      %vm2251 = vcmp.lt.s32.totalorder %v2107, %v2108
      %v2252 = vsel %vm2251, %v2107, %v2108
      %v2253 = vand.u32 %v2252, 65535
      %v2254 = vshra.s32 %v2252, 16
      %v2255 = vcvt.s32.f32 %v2253
      %v2256 = vcvt.s32.f32 %v2254
      %2257 = vmin.xlane.f32.xlu0 %v2256
      %v2258 = vpop.xlane.xlu0 %2257
      %vm2259 = vcmp.eq.f32.partialorder %v2256, %v2258
      %v2260 = vsel %vm2259, %v2255, inf
      %2261 = vmin.xlane.f32.xlu0 %v2260
      %v2262 = vpop.xlane.xlu0 %2261
      %v2263 = vcvt.f32.s32 %v2262
      %v2264 = vcvt.f32.s32 %v2258
      %v2265 = vshll.u32 %v2264, 16
      %v2266 = vadd.s32 %v2265, %v2263
      %vm2267 = vcmp.lt.s32.totalorder %v2109, %v2110
      %v2268 = vsel %vm2267, %v2109, %v2110
      %v2269 = vand.u32 %v2268, 65535
      %v2270 = vshra.s32 %v2268, 16
      %v2271 = vcvt.s32.f32 %v2269
      %v2272 = vcvt.s32.f32 %v2270
      %2273 = vmin.xlane.f32.xlu0 %v2272
      %v2274 = vpop.xlane.xlu0 %2273
      %vm2275 = vcmp.eq.f32.partialorder %v2272, %v2274
      %v2276 = vsel %vm2275, %v2271, inf
      %2277 = vmin.xlane.f32.xlu0 %v2276
      %v2278 = vpop.xlane.xlu0 %2277
      %v2279 = vcvt.f32.s32 %v2278
      %v2280 = vcvt.f32.s32 %v2274
      %v2281 = vshll.u32 %v2280, 16
      %v2282 = vadd.s32 %v2281, %v2279
      %vm2283 = vcmp.lt.s32.totalorder %v2111, %v2112
      %v2284 = vsel %vm2283, %v2111, %v2112
      %v2285 = vand.u32 %v2284, 65535
      %v2286 = vshra.s32 %v2284, 16
      %v2287 = vcvt.s32.f32 %v2285
      %v2288 = vcvt.s32.f32 %v2286
      %2289 = vmin.xlane.f32.xlu0 %v2288
      %v2290 = vpop.xlane.xlu0 %2289
      %vm2291 = vcmp.eq.f32.partialorder %v2288, %v2290
      %v2292 = vsel %vm2291, %v2287, inf
      %2293 = vmin.xlane.f32.xlu0 %v2292
      %v2294 = vpop.xlane.xlu0 %2293
      %v2295 = vcvt.f32.s32 %v2294
      %v2296 = vcvt.f32.s32 %v2290
      %v2297 = vshll.u32 %v2296, 16
      %v2298 = vadd.s32 %v2297, %v2295
      %vm2299 = vcmp.lt.s32.totalorder %v2113, %v2114
      %v2300 = vsel %vm2299, %v2113, %v2114
      %v2301 = vand.u32 %v2300, 65535
      %v2302 = vshra.s32 %v2300, 16
      %v2303 = vcvt.s32.f32 %v2301
      %v2304 = vcvt.s32.f32 %v2302
      %2305 = vmin.xlane.f32.xlu0 %v2304
      %v2306 = vpop.xlane.xlu0 %2305
      %vm2307 = vcmp.eq.f32.partialorder %v2304, %v2306
      %v2308 = vsel %vm2307, %v2303, inf
      %2309 = vmin.xlane.f32.xlu0 %v2308
      %v2310 = vpop.xlane.xlu0 %2309
      %v2311 = vcvt.f32.s32 %v2310
      %v2312 = vcvt.f32.s32 %v2306
      %v2313 = vshll.u32 %v2312, 16
      %v2314 = vadd.s32 %v2313, %v2311
      %vm2315 = vcmp.lt.s32.totalorder %v2115, %v2116
      %v2316 = vsel %vm2315, %v2115, %v2116
      %v2317 = vand.u32 %v2316, 65535
      %v2318 = vshra.s32 %v2316, 16
      %v2319 = vcvt.s32.f32 %v2317
      %v2320 = vcvt.s32.f32 %v2318
      %2321 = vmin.xlane.f32.xlu0 %v2320
      %v2322 = vpop.xlane.xlu0 %2321
      %vm2323 = vcmp.eq.f32.partialorder %v2320, %v2322
      %v2324 = vsel %vm2323, %v2319, inf
      %2325 = vmin.xlane.f32.xlu0 %v2324
      %v2326 = vpop.xlane.xlu0 %2325
      %v2327 = vcvt.f32.s32 %v2326
      %v2328 = vcvt.f32.s32 %v2322
      %v2329 = vshll.u32 %v2328, 16
      %v2330 = vadd.s32 %v2329, %v2327
      %vm2331 = vcmp.lt.s32.totalorder %v2117, %v2118
      %v2332 = vsel %vm2331, %v2117, %v2118
      %v2333 = vand.u32 %v2332, 65535
      %v2334 = vshra.s32 %v2332, 16
      %v2335 = vcvt.s32.f32 %v2333
      %v2336 = vcvt.s32.f32 %v2334
      %2337 = vmin.xlane.f32.xlu0 %v2336
      %v2338 = vpop.xlane.xlu0 %2337
      %vm2339 = vcmp.eq.f32.partialorder %v2336, %v2338
      %v2340 = vsel %vm2339, %v2335, inf
      %2341 = vmin.xlane.f32.xlu0 %v2340
      %v2342 = vpop.xlane.xlu0 %2341
      %v2343 = vcvt.f32.s32 %v2342
      %v2344 = vcvt.f32.s32 %v2338
      %v2345 = vshll.u32 %v2344, 16
      %v2346 = vadd.s32 %v2345, %v2343
      %vm2347 = vcmp.lt.s32.totalorder %v2119, %v2120
      %v2348 = vsel %vm2347, %v2119, %v2120
      %v2349 = vand.u32 %v2348, 65535
      %v2350 = vshra.s32 %v2348, 16
      %v2351 = vcvt.s32.f32 %v2349
      %v2352 = vcvt.s32.f32 %v2350
      %2353 = vmin.xlane.f32.xlu0 %v2352
      %v2354 = vpop.xlane.xlu0 %2353
      %vm2355 = vcmp.eq.f32.partialorder %v2352, %v2354
      %v2356 = vsel %vm2355, %v2351, inf
      %2357 = vmin.xlane.f32.xlu0 %v2356
      %v2358 = vpop.xlane.xlu0 %2357
      %v2359 = vcvt.f32.s32 %v2358
      %v2360 = vcvt.f32.s32 %v2354
      %v2361 = vshll.u32 %v2360, 16
      %v2362 = vadd.s32 %v2361, %v2359
      %vm2363 = vcmp.lt.s32.totalorder %v2121, %v2122
      %v2364 = vsel %vm2363, %v2121, %v2122
      %v2365 = vand.u32 %v2364, 65535
      %v2366 = vshra.s32 %v2364, 16
      %v2367 = vcvt.s32.f32 %v2365
      %v2368 = vcvt.s32.f32 %v2366
      %2369 = vmin.xlane.f32.xlu0 %v2368
      %v2370 = vpop.xlane.xlu0 %2369
      %vm2371 = vcmp.eq.f32.partialorder %v2368, %v2370
      %v2372 = vsel %vm2371, %v2367, inf
      %2373 = vmin.xlane.f32.xlu0 %v2372
      %v2374 = vpop.xlane.xlu0 %2373
      %v2375 = vcvt.f32.s32 %v2374
      %v2376 = vcvt.f32.s32 %v2370
      %v2377 = vshll.u32 %v2376, 16
      %v2378 = vadd.s32 %v2377, %v2375
      %vm2379 = vcmp.eq.s32.totalorder %v2138, %v489
      %vm2380 = vcmp.eq.s32.totalorder %v2154, %v490
      %vm2381 = vcmp.eq.s32.totalorder %v2170, %v491
      %vm2382 = vcmp.eq.s32.totalorder %v2186, %v492
      %vm2383 = vcmp.eq.s32.totalorder %v2202, %v493
      %vm2384 = vcmp.eq.s32.totalorder %v2218, %v494
      %vm2385 = vcmp.eq.s32.totalorder %v2234, %v495
      %vm2386 = vcmp.eq.s32.totalorder %v2250, %v496
      %vm2387 = vcmp.eq.s32.totalorder %v2266, %v497
      %vm2388 = vcmp.eq.s32.totalorder %v2282, %v498
      %vm2389 = vcmp.eq.s32.totalorder %v2298, %v499
      %vm2390 = vcmp.eq.s32.totalorder %v2314, %v500
      %vm2391 = vcmp.eq.s32.totalorder %v2330, %v501
      %vm2392 = vcmp.eq.s32.totalorder %v2346, %v502
      %vm2393 = vcmp.eq.s32.totalorder %v2362, %v503
      %vm2394 = vcmp.eq.s32.totalorder %v2378, %v504
      %v2395 = vsel %vm2379, 1, 0
      %v2396 = vsel %vm2380, 1, 0
      %v2397 = vsel %vm2381, 1, 0
      %v2398 = vsel %vm2382, 1, 0
      %v2399 = vsel %vm2383, 1, 0
      %v2400 = vsel %vm2384, 1, 0
      %v2401 = vsel %vm2385, 1, 0
      %v2402 = vsel %vm2386, 1, 0
      %v2403 = vsel %vm2387, 1, 0
      %v2404 = vsel %vm2388, 1, 0
      %v2405 = vsel %vm2389, 1, 0
      %v2406 = vsel %vm2390, 1, 0
      %v2407 = vsel %vm2391, 1, 0
      %v2408 = vsel %vm2392, 1, 0
      %v2409 = vsel %vm2393, 1, 0
      %v2410 = vsel %vm2394, 1, 0
      %v2411 = vcvt.s32.f32 %v2395
      %v2412 = vcvt.s32.f32 %v2396
      %v2413 = vcvt.s32.f32 %v2397
      %v2414 = vcvt.s32.f32 %v2398
      %v2415 = vcvt.s32.f32 %v2399
      %v2416 = vcvt.s32.f32 %v2400
      %v2417 = vcvt.s32.f32 %v2401
      %v2418 = vcvt.s32.f32 %v2402
      %v2419 = vcvt.s32.f32 %v2403
      %v2420 = vcvt.s32.f32 %v2404
      %v2421 = vcvt.s32.f32 %v2405
      %v2422 = vcvt.s32.f32 %v2406
      %v2423 = vcvt.s32.f32 %v2407
      %v2424 = vcvt.s32.f32 %v2408
      %v2425 = vcvt.s32.f32 %v2409
      %v2426 = vcvt.s32.f32 %v2410
      %2427 = vst.msk [vmem:[%s257] sm:$0xff] %vm1941, %v2411
      %2428 = vst.msk [vmem:[%s257 + $0x8] sm:$0xff] %vm1941, %v2412
      %2429 = vst.msk [vmem:[%s257 + $0x10] sm:$0xff] %vm1941, %v2413
      %2430 = vst.msk [vmem:[%s257 + $0x18] sm:$0xff] %vm1941, %v2414
      %2431 = vst.msk [vmem:[%s257 + $0x20] sm:$0xff] %vm1941, %v2415
      %2432 = vst.msk [vmem:[%s257 + $0x28] sm:$0xff] %vm1941, %v2416
      %2433 = vst.msk [vmem:[%s257 + $0x30] sm:$0xff] %vm1941, %v2417
      %2434 = vst.msk [vmem:[%s257 + $0x38] sm:$0xff] %vm1941, %v2418
      %2435 = vst.msk [vmem:[%s257 + $0x40] sm:$0xff] %vm1941, %v2419
      %2436 = vst.msk [vmem:[%s257 + $0x48] sm:$0xff] %vm1941, %v2420
      %2437 = vst.msk [vmem:[%s257 + $0x50] sm:$0xff] %vm1941, %v2421
      %2438 = vst.msk [vmem:[%s257 + $0x58] sm:$0xff] %vm1941, %v2422
      %2439 = vst.msk [vmem:[%s257 + $0x60] sm:$0xff] %vm1941, %v2423
      %2440 = vst.msk [vmem:[%s257 + $0x68] sm:$0xff] %vm1941, %v2424
      %2441 = vst.msk [vmem:[%s257 + $0x70] sm:$0xff] %vm1941, %v2425
      %2442 = vst.msk [vmem:[%s257 + $0x78] sm:$0xff] %vm1941, %v2426
      %p2443 = scmp.lt.s32.totalorder %s17, 1
      %s2444 = scalar_select %p2443, %s17, 1
      %s2445 = scalar_lea.vmem %s4, %s2444
      %s2446 = smul.u32 16, %s17
      %p2447 = scmp.lt.s32.totalorder %s2446, 31
      %s2448 = scalar_select %p2447, %s2446, 31
      %s2449 = smul.addr %s2448, 8
      %s2450 = scalar_lea.vmem %s5, %s2449
      // Predicated region
      $region37: #{tpu_custom_call.1} parent=35 // pred_check
        %p2451 = pneg %p129
      $region38: #{tpu_custom_call.1} parent=35 // pred_check_branch
        %2453 = sbr.rel (%p2451) target = $region40
      $region39: #{tpu_custom_call.1} parent=35 // pred_region
        _
      $region40: #{tpu_custom_call.1} parent=35 // pred_fallthru
        _
      // Predicated region
      $region41: #{tpu_custom_call.1} parent=35 // pred_check
        %p2454 = pneg %p155
      $region42: #{tpu_custom_call.1} parent=35 // pred_check_branch
        %2456 = sbr.rel (%p2454) target = $region44
      $region43: #{tpu_custom_call.1} parent=35 // pred_region
        %s2457 = smul.u32 16, %s17
      $region44: #{tpu_custom_call.1} parent=35 // pred_fallthru
        _
    $region36: #{tpu_custom_call.1} parent=5 // pred_fallthru
      _
    %p2458 = scmp.le.s32.totalorder 2, %s12
    // Predicated region
    $region45: #{tpu_custom_call.1} parent=5 // pred_check
      %p2459 = pneg %p2458
    $region46: #{tpu_custom_call.1} parent=5 // pred_check_branch
      %2461 = sbr.rel (%p2459) target = $region48
    $region47: #{tpu_custom_call.1} parent=5 // pred_region
      %s2462 = ssub.s32 %s12, 2
      // Predicated region
      $region49: #{tpu_custom_call.1} parent=47 // pred_check
        %p2463 = pneg %p135
      $region50: #{tpu_custom_call.1} parent=47 // pred_check_branch
        %2465 = sbr.rel (%p2463) target = $region52
      $region51: #{tpu_custom_call.1} parent=47 // pred_region
        %p2466 = scmp.lt.s32.totalorder %s18, 1
        %s2467 = scalar_select %p2466, %s18, 1
        %s2468 = scalar_lea.vmem %s4, %s2467
      $region52: #{tpu_custom_call.1} parent=47 // pred_fallthru
        _
      // Predicated region
      $region53: #{tpu_custom_call.1} parent=47 // pred_check
        %p2469 = pneg %p161
      $region54: #{tpu_custom_call.1} parent=47 // pred_check_branch
        %2471 = sbr.rel (%p2469) target = $region56
      $region55: #{tpu_custom_call.1} parent=47 // pred_region
        %s2472 = smul.u32 16, %s18
        %p2473 = scmp.lt.s32.totalorder %s2472, 31
        %s2474 = scalar_select %p2473, %s2472, 31
        %s2475 = smul.addr %s2474, 8
        %s2476 = scalar_lea.vmem %s5, %s2475
      $region56: #{tpu_custom_call.1} parent=47 // pred_fallthru
        _
    $region48: #{tpu_custom_call.1} parent=5 // pred_fallthru
      _
  $region6: #{tpu_custom_call.1} parent=0 // loop_footer
    %s16 = sadd.s32 1, %s12
  $region7: #{tpu_custom_call.1} parent=0 // loop_footer_branch
    %11 = sbr.rel target = $region3
  $region8: #{tpu_custom_call.1} parent=0 // loop_exit
    _

// kernel: tpu_custom_call.1
$region0: #{tpu_custom_call.1}
  #allocation0 [shape = 'u32[]', space=smem, size = 0x4, offset = 0x4, fixed_abs, tag = 'smem constant byte address 0x4 - core index']
  #allocation1 [shape = 'u32[144,128]{1,0:T(1,128)}', space=vmem, size = 0x12000, scoped, tag = 'internal scratch']
  %s0 = inlined_call_operand.vmem [shape: f32[256,32], index: 0, kind: input, shape index: {}]
  %s1 = inlined_call_operand.vmem [shape: f32[32,256], index: 1, kind: input, shape index: {}]
  %s2 = inlined_call_operand.vmem [shape: f32[256,64], index: 2, kind: input, shape index: {}]
  %s3 = inlined_call_operand.vmem [shape: f32[64,256], index: 3, kind: input, shape index: {}]
  %s4 = inlined_call_operand.vmem [shape: f32[2,1,1], index: 4, kind: output, shape index: {0}]
  %s5 = inlined_call_operand.vmem [shape: f32[256,1], index: 5, kind: output, shape index: {1}]
  %6 = xla_tuple %s4, %s5
  %s7 = sld [smem:[#allocation0]]
  $region57: #{tpu_custom_call.1} parent=0
    _
  %s9 = ssub.s32 1, %s7
  %s10 = scalar_select 0, %s9, %s7
  loop: start=0, step=1, limit=4
  $region2: #{tpu_custom_call.1} parent=0 // loop_pre_header
    _
  $region3: #{tpu_custom_call.1} parent=0 // loop_header
    %s12 = sphi 0, %s16
    %p13 = scmp.ge.s32.totalorder %s12, 4
    %s22 = sphi 0, %s24
    %s25 = sphi 0, %s22
    %s26 = sphi 0, %s25
    %s42 = sphi 0, %s26
    %s46 = sphi 0, %s46
    %s48 = sphi 0, %s46
    %s49 = sphi 0, %s48
    %s63 = sphi 0, %s49
    %s69 = sphi 0, %s71
    %s72 = sphi 0, %s69
    %s73 = sphi 0, %s72
    %s89 = sphi 0, %s73
    %s93 = sphi 0, %s93
    %s95 = sphi 0, %s93
    %s96 = sphi 0, %s95
    %s110 = sphi 0, %s96
    %s116 = sphi 0, %s118
    %s119 = sphi 0, %s116
    %s120 = sphi 0, %s119
    %s136 = sphi 0, %s120
    %s142 = sphi 0, %s144
    %s145 = sphi 0, %s142
    %s146 = sphi 0, %s145
    %s162 = sphi 0, %s146
  $region4: #{tpu_custom_call.1} parent=0 // loop_header_branch
    %15 = sbr.rel (%p13) target = $region8
  $region5: #{tpu_custom_call.1} parent=0 // loop_body
    %s17 = ssub.s32 %s12, 1
    %s18 = ssub.s32 %s12, 2
    %s19 = sadd.s32 %s12, 1
    %s20 = ssub.s32 %s12, %s19
    %p21 = scmp.eq.s32.totalorder %s20, 0
    %s23 = sadd.s32 %s22, 1
    %s24 = scalar_select %p21, %s22, %s23
    %p27 = pneg %p21
    %p28 = scmp.eq.s32.totalorder %s12, 1
    %p29 = por %p27, %p28
    %p30 = scmp.ne.s32.totalorder %s22, %s25
    %p31 = scmp.eq.s32.totalorder %s12, 0
    %p32 = por %p30, %p31
    %p33 = scmp.ne.s32.totalorder %s22, %s25
    %p34 = scmp.eq.s32.totalorder %s17, 1
    %p35 = por %p33, %p34
    %p36 = scmp.ne.s32.totalorder %s25, %s26
    %p37 = scmp.eq.s32.totalorder %s17, 0
    %p38 = por %p36, %p37
    %p39 = scmp.ne.s32.totalorder %s25, %s26
    %p40 = scmp.eq.s32.totalorder %s18, 1
    %p41 = por %p39, %p40
    %p43 = scmp.ne.s32.totalorder %s26, %s42
    %p44 = scmp.eq.s32.totalorder %s18, 0
    %p45 = por %p43, %p44
    %s47 = sadd.s32 %s46, 1
    %p50 = scmp.eq.s32.totalorder %s12, 1
    %p51 = scmp.ne.s32.totalorder %s46, %s48
    %p52 = scmp.eq.s32.totalorder %s12, 0
    %p53 = por %p51, %p52
    %p54 = scmp.ne.s32.totalorder %s46, %s48
    %p55 = scmp.eq.s32.totalorder %s17, 1
    %p56 = por %p54, %p55
    %p57 = scmp.ne.s32.totalorder %s48, %s49
    %p58 = scmp.eq.s32.totalorder %s17, 0
    %p59 = por %p57, %p58
    %p60 = scmp.ne.s32.totalorder %s48, %s49
    %p61 = scmp.eq.s32.totalorder %s18, 1
    %p62 = por %p60, %p61
    %p64 = scmp.ne.s32.totalorder %s49, %s63
    %p65 = scmp.eq.s32.totalorder %s18, 0
    %p66 = por %p64, %p65
    %s67 = ssub.s32 %s12, %s19
    %p68 = scmp.eq.s32.totalorder %s67, 0
    %s70 = sadd.s32 %s69, 1
    %s71 = scalar_select %p68, %s69, %s70
    %p74 = pneg %p68
    %p75 = scmp.eq.s32.totalorder %s12, 1
    %p76 = por %p74, %p75
    %p77 = scmp.ne.s32.totalorder %s69, %s72
    %p78 = scmp.eq.s32.totalorder %s12, 0
    %p79 = por %p77, %p78
    %p80 = scmp.ne.s32.totalorder %s69, %s72
    %p81 = scmp.eq.s32.totalorder %s17, 1
    %p82 = por %p80, %p81
    %p83 = scmp.ne.s32.totalorder %s72, %s73
    %p84 = scmp.eq.s32.totalorder %s17, 0
    %p85 = por %p83, %p84
    %p86 = scmp.ne.s32.totalorder %s72, %s73
    %p87 = scmp.eq.s32.totalorder %s18, 1
    %p88 = por %p86, %p87
    %p90 = scmp.ne.s32.totalorder %s73, %s89
    %p91 = scmp.eq.s32.totalorder %s18, 0
    %p92 = por %p90, %p91
    %s94 = sadd.s32 %s93, 1
    %p97 = scmp.eq.s32.totalorder %s12, 1
    %p98 = scmp.ne.s32.totalorder %s93, %s95
    %p99 = scmp.eq.s32.totalorder %s12, 0
    %p100 = por %p98, %p99
    %p101 = scmp.ne.s32.totalorder %s93, %s95
    %p102 = scmp.eq.s32.totalorder %s17, 1
    %p103 = por %p101, %p102
    %p104 = scmp.ne.s32.totalorder %s95, %s96
    %p105 = scmp.eq.s32.totalorder %s17, 0
    %p106 = por %p104, %p105
    %p107 = scmp.ne.s32.totalorder %s95, %s96
    %p108 = scmp.eq.s32.totalorder %s18, 1
    %p109 = por %p107, %p108
    %p111 = scmp.ne.s32.totalorder %s96, %s110
    %p112 = scmp.eq.s32.totalorder %s18, 0
    %p113 = por %p111, %p112
    %s114 = ssub.s32 %s12, %s19
    %p115 = scmp.eq.s32.totalorder %s114, 0
    %s117 = sadd.s32 %s116, 1
    %s118 = scalar_select %p115, %s116, %s117
    %p121 = pneg %p115
    %p122 = scmp.eq.s32.totalorder %s12, 1
    %p123 = por %p121, %p122
    %p124 = scmp.ne.s32.totalorder %s116, %s119
    %p125 = scmp.eq.s32.totalorder %s12, 0
    %p126 = por %p124, %p125
    %p127 = scmp.ne.s32.totalorder %s116, %s119
    %p128 = scmp.eq.s32.totalorder %s17, 1
    %p129 = por %p127, %p128
    %p130 = scmp.ne.s32.totalorder %s119, %s120
    %p131 = scmp.eq.s32.totalorder %s17, 0
    %p132 = por %p130, %p131
    %p133 = scmp.ne.s32.totalorder %s119, %s120
    %p134 = scmp.eq.s32.totalorder %s18, 1
    %p135 = por %p133, %p134
    %p137 = scmp.ne.s32.totalorder %s120, %s136
    %p138 = scmp.eq.s32.totalorder %s18, 0
    %p139 = por %p137, %p138
    %s140 = ssub.s32 %s12, %s19
    %p141 = scmp.eq.s32.totalorder %s140, 0
    %s143 = sadd.s32 %s142, 1
    %s144 = scalar_select %p141, %s142, %s143
    %p147 = pneg %p141
    %p148 = scmp.eq.s32.totalorder %s12, 1
    %p149 = por %p147, %p148
    %p150 = scmp.ne.s32.totalorder %s142, %s145
    %p151 = scmp.eq.s32.totalorder %s12, 0
    %p152 = por %p150, %p151
    %p153 = scmp.ne.s32.totalorder %s142, %s145
    %p154 = scmp.eq.s32.totalorder %s17, 1
    %p155 = por %p153, %p154
    %p156 = scmp.ne.s32.totalorder %s145, %s146
    %p157 = scmp.eq.s32.totalorder %s17, 0
    %p158 = por %p156, %p157
    %p159 = scmp.ne.s32.totalorder %s145, %s146
    %p160 = scmp.eq.s32.totalorder %s18, 1
    %p161 = por %p159, %p160
    %p163 = scmp.ne.s32.totalorder %s146, %s162
    %p164 = scmp.eq.s32.totalorder %s18, 0
    %p165 = por %p163, %p164
    %p166 = scmp.le.s32.totalorder 1, %s12
    %p167 = scmp.lt.s32.totalorder %s12, 3
    %p168 = pnand %p166, %p167
    %p169 = pneg %p168
    // Predicated region
    $region9: #{tpu_custom_call.1} parent=5 // pred_check
      _
    $region10: #{tpu_custom_call.1} parent=5 // pred_check_branch
      %171 = sbr.rel (%p168) target = $region12
    $region11: #{tpu_custom_call.1} parent=5 // pred_region
      %s172 = ssub.s32 %s12, 1
      // Predicated region
      $region13: #{tpu_custom_call.1} parent=11 // pred_check
        %p173 = pneg %p59
      $region14: #{tpu_custom_call.1} parent=11 // pred_check_branch
        %175 = sbr.rel (%p173) target = $region16
      $region15: #{tpu_custom_call.1} parent=11 // pred_region
        _
      $region16: #{tpu_custom_call.1} parent=11 // pred_fallthru
        _
      // Predicated region
      $region17: #{tpu_custom_call.1} parent=11 // pred_check
        %p176 = pneg %p106
      $region18: #{tpu_custom_call.1} parent=11 // pred_check_branch
        %178 = sbr.rel (%p176) target = $region20
      $region19: #{tpu_custom_call.1} parent=11 // pred_region
        _
      $region20: #{tpu_custom_call.1} parent=11 // pred_fallthru
        _
    $region12: #{tpu_custom_call.1} parent=5 // pred_fallthru
      _
    %p179 = scmp.lt.s32.totalorder %s12, 2
    // Predicated region
    $region21: #{tpu_custom_call.1} parent=5 // pred_check
      %p180 = pneg %p179
    $region22: #{tpu_custom_call.1} parent=5 // pred_check_branch
      %182 = sbr.rel (%p180) target = $region24
    $region23: #{tpu_custom_call.1} parent=5 // pred_region
      // Predicated region
      $region25: #{tpu_custom_call.1} parent=23 // pred_check
        %p183 = pneg %p32
      $region26: #{tpu_custom_call.1} parent=23 // pred_check_branch
        %185 = sbr.rel (%p183) target = $region28
      $region27: #{tpu_custom_call.1} parent=23 // pred_region
        %s186 = smul.u32 16, %s12
        %p187 = scmp.lt.s32.totalorder %s186, 31
        %s188 = scalar_select %p187, %s186, 31
        %s189 = smul.addr %s188, 8
        %s190 = scalar_lea.vmem %s0, %s189
        %s191 = smul.u32 16, %s12
      $region28: #{tpu_custom_call.1} parent=23 // pred_fallthru
        _
      // Predicated region
      $region29: #{tpu_custom_call.1} parent=23 // pred_check
        %p192 = pneg %p79
      $region30: #{tpu_custom_call.1} parent=23 // pred_check_branch
        %194 = sbr.rel (%p192) target = $region32
      $region31: #{tpu_custom_call.1} parent=23 // pred_region
        %s195 = smul.u32 16, %s12
        %p196 = scmp.lt.s32.totalorder %s195, 31
        %s197 = scalar_select %p196, %s195, 31
        %s198 = smul.addr %s197, 8
        %s199 = scalar_lea.vmem %s2, %s198
        %s200 = smul.u32 16, %s12
      $region32: #{tpu_custom_call.1} parent=23 // pred_fallthru
        _
    $region24: #{tpu_custom_call.1} parent=5 // pred_fallthru
      _
    %p201 = scmp.le.s32.totalorder 1, %s12
    %p202 = scmp.lt.s32.totalorder %s12, 3
    %p203 = pnand %p201, %p202
    %p204 = pneg %p203
    // Predicated region
    $region33: #{tpu_custom_call.1} parent=5 // pred_check
      _
    $region34: #{tpu_custom_call.1} parent=5 // pred_check_branch
      %206 = sbr.rel (%p203) target = $region36
    $region35: #{tpu_custom_call.1} parent=5 // pred_region
      %s207 = ssub.s32 %s12, 1
      %s208 = smul.u32 16, %s17
      %p209 = scmp.lt.s32.totalorder %s208, 31
      %s210 = scalar_select %p209, %s208, 31
      %s211 = smul.addr %s210, 8
      %s212 = scalar_lea.vmem %s0, %s211
      %p213 = pneg %p38
      %p214 = pneg %p35
      %p215 = pneg %p59
      %p216 = pneg %p56
      %s217 = smul.u32 16, %s17
      %p218 = scmp.lt.s32.totalorder %s217, 31
      %s219 = scalar_select %p218, %s217, 31
      %s220 = smul.addr %s219, 8
      %s221 = scalar_lea.vmem %s2, %s220
      %p222 = pneg %p85
      %p223 = pneg %p82
      %p224 = pneg %p106
      %p225 = pneg %p103
      %p226 = pneg %p132
      %p227 = pneg %p129
      %p228 = scmp.lt.s32.totalorder %s17, 1
      %s229 = scalar_select %p228, %s17, 1
      %s230 = scalar_lea.vmem %s4, %s229
      %p231 = pneg %p158
      %p232 = pneg %p155
      %s233 = smul.u32 16, %s17
      %p234 = scmp.lt.s32.totalorder %s233, 31
      %s235 = scalar_select %p234, %s233, 31
      %s236 = smul.addr %s235, 8
      %s237 = scalar_lea.vmem %s5, %s236
      %s238 = smul.u32 16, %s17
      %p239 = scmp.lt.s32.totalorder %s238, 31
      %s240 = scalar_select %p239, %s238, 31
      %s241 = smul.addr %s240, 8
      %s242 = scalar_lea.vmem %s0, %s241
      %s243 = smul.u32 16, %s17
      %s244 = smul.u32 16, %s17
      %p245 = scmp.lt.s32.totalorder %s244, 31
      %s246 = scalar_select %p245, %s244, 31
      %s247 = smul.addr %s246, 8
      %s248 = scalar_lea.vmem %s2, %s247
      %s249 = smul.u32 16, %s17
      %p250 = scmp.lt.s32.totalorder %s17, 1
      %s251 = scalar_select %p250, %s17, 1
      %s252 = scalar_lea.vmem %s4, %s251
      %s253 = smul.u32 16, %s17
      %p254 = scmp.lt.s32.totalorder %s253, 31
      %s255 = scalar_select %p254, %s253, 31
      %s256 = smul.addr %s255, 8
      %s257 = scalar_lea.vmem %s5, %s256
      %s258 = smul.u32 16, %s17
      %s259 = smul.u32 %s17, 128
      %v260 = vlaneseq
      %v261 = vand.u32 %v260, 127
      %v262 = vadd.s32 %v261, 128
      %v263 = vlaneseq
      %v264 = vshrl.u32 %v263, 7
      %v265 = vadd.s32 %v264, 8
      %v266 = vadd.s32 %v264, 16
      %v267 = vadd.s32 %v264, 24
      %v268 = vadd.s32 %v264, 32
      %v269 = vadd.s32 %v264, 40
      %v270 = vadd.s32 %v264, 48
      %v271 = vadd.s32 %v264, 56
      %v272 = vadd.s32 %v264, 64
      %v273 = vadd.s32 %v264, 72
      %v274 = vadd.s32 %v264, 80
      %v275 = vadd.s32 %v264, 88
      %v276 = vadd.s32 %v264, 96
      %v277 = vadd.s32 %v264, 104
      %v278 = vadd.s32 %v264, 112
      %v279 = vadd.s32 %v264, 120
      %v280 = vstv %s259
      %v281 = vadd.s32 %v280, %v264
      %v282 = vadd.s32 %v280, %v265
      %v283 = vadd.s32 %v280, %v266
      %v284 = vadd.s32 %v280, %v267
      %v285 = vadd.s32 %v280, %v268
      %v286 = vadd.s32 %v280, %v269
      %v287 = vadd.s32 %v280, %v270
      %v288 = vadd.s32 %v280, %v271
      %v289 = vadd.s32 %v280, %v272
      %v290 = vadd.s32 %v280, %v273
      %v291 = vadd.s32 %v280, %v274
      %v292 = vadd.s32 %v280, %v275
      %v293 = vadd.s32 %v280, %v276
      %v294 = vadd.s32 %v280, %v277
      %v295 = vadd.s32 %v280, %v278
      %v296 = vadd.s32 %v280, %v279
      %v297 = vadd.s32 %v281, 128
      %v298 = vadd.s32 %v282, 128
      %v299 = vadd.s32 %v283, 128
      %v300 = vadd.s32 %v284, 128
      %v301 = vadd.s32 %v285, 128
      %v302 = vadd.s32 %v286, 128
      %v303 = vadd.s32 %v287, 128
      %v304 = vadd.s32 %v288, 128
      %v305 = vadd.s32 %v289, 128
      %v306 = vadd.s32 %v290, 128
      %v307 = vadd.s32 %v291, 128
      %v308 = vadd.s32 %v292, 128
      %v309 = vadd.s32 %v293, 128
      %v310 = vadd.s32 %v294, 128
      %v311 = vadd.s32 %v295, 128
      %v312 = vadd.s32 %v296, 128
      %vm313 = vcmp.lt.s32.totalorder %v297, 0
      %v314 = vsub.s32 0, %v297
      %v315 = vsel %vm313, %v314, %v297
      %v316 = vshrl.u32 %v315, 8
      %v317 = vand.u32 %v315, 255
      %v318 = vsub.s32 0, %v317
      %v319 = vsel %vm313, %v318, %v317
      %vm320 = vcmp.lt.s32.totalorder %v298, 0
      %v321 = vsub.s32 0, %v298
      %v322 = vsel %vm320, %v321, %v298
      %v323 = vshrl.u32 %v322, 8
      %v324 = vand.u32 %v322, 255
      %v325 = vsub.s32 0, %v324
      %v326 = vsel %vm320, %v325, %v324
      %vm327 = vcmp.lt.s32.totalorder %v299, 0
      %v328 = vsub.s32 0, %v299
      %v329 = vsel %vm327, %v328, %v299
      %v330 = vshrl.u32 %v329, 8
      %v331 = vand.u32 %v329, 255
      %v332 = vsub.s32 0, %v331
      %v333 = vsel %vm327, %v332, %v331
      %vm334 = vcmp.lt.s32.totalorder %v300, 0
      %v335 = vsub.s32 0, %v300
      %v336 = vsel %vm334, %v335, %v300
      %v337 = vshrl.u32 %v336, 8
      %v338 = vand.u32 %v336, 255
      %v339 = vsub.s32 0, %v338
      %v340 = vsel %vm334, %v339, %v338
      %vm341 = vcmp.lt.s32.totalorder %v301, 0
      %v342 = vsub.s32 0, %v301
      %v343 = vsel %vm341, %v342, %v301
      %v344 = vshrl.u32 %v343, 8
      %v345 = vand.u32 %v343, 255
      %v346 = vsub.s32 0, %v345
      %v347 = vsel %vm341, %v346, %v345
      %vm348 = vcmp.lt.s32.totalorder %v302, 0
      %v349 = vsub.s32 0, %v302
      %v350 = vsel %vm348, %v349, %v302
      %v351 = vshrl.u32 %v350, 8
      %v352 = vand.u32 %v350, 255
      %v353 = vsub.s32 0, %v352
      %v354 = vsel %vm348, %v353, %v352
      %vm355 = vcmp.lt.s32.totalorder %v303, 0
      %v356 = vsub.s32 0, %v303
      %v357 = vsel %vm355, %v356, %v303
      %v358 = vshrl.u32 %v357, 8
      %v359 = vand.u32 %v357, 255
      %v360 = vsub.s32 0, %v359
      %v361 = vsel %vm355, %v360, %v359
      %vm362 = vcmp.lt.s32.totalorder %v304, 0
      %v363 = vsub.s32 0, %v304
      %v364 = vsel %vm362, %v363, %v304
      %v365 = vshrl.u32 %v364, 8
      %v366 = vand.u32 %v364, 255
      %v367 = vsub.s32 0, %v366
      %v368 = vsel %vm362, %v367, %v366
      %vm369 = vcmp.lt.s32.totalorder %v305, 0
      %v370 = vsub.s32 0, %v305
      %v371 = vsel %vm369, %v370, %v305
      %v372 = vshrl.u32 %v371, 8
      %v373 = vand.u32 %v371, 255
      %v374 = vsub.s32 0, %v373
      %v375 = vsel %vm369, %v374, %v373
      %vm376 = vcmp.lt.s32.totalorder %v306, 0
      %v377 = vsub.s32 0, %v306
      %v378 = vsel %vm376, %v377, %v306
      %v379 = vshrl.u32 %v378, 8
      %v380 = vand.u32 %v378, 255
      %v381 = vsub.s32 0, %v380
      %v382 = vsel %vm376, %v381, %v380
      %vm383 = vcmp.lt.s32.totalorder %v307, 0
      %v384 = vsub.s32 0, %v307
      %v385 = vsel %vm383, %v384, %v307
      %v386 = vshrl.u32 %v385, 8
      %v387 = vand.u32 %v385, 255
      %v388 = vsub.s32 0, %v387
      %v389 = vsel %vm383, %v388, %v387
      %vm390 = vcmp.lt.s32.totalorder %v308, 0
      %v391 = vsub.s32 0, %v308
      %v392 = vsel %vm390, %v391, %v308
      %v393 = vshrl.u32 %v392, 8
      %v394 = vand.u32 %v392, 255
      %v395 = vsub.s32 0, %v394
      %v396 = vsel %vm390, %v395, %v394
      %vm397 = vcmp.lt.s32.totalorder %v309, 0
      %v398 = vsub.s32 0, %v309
      %v399 = vsel %vm397, %v398, %v309
      %v400 = vshrl.u32 %v399, 8
      %v401 = vand.u32 %v399, 255
      %v402 = vsub.s32 0, %v401
      %v403 = vsel %vm397, %v402, %v401
      %vm404 = vcmp.lt.s32.totalorder %v310, 0
      %v405 = vsub.s32 0, %v310
      %v406 = vsel %vm404, %v405, %v310
      %v407 = vshrl.u32 %v406, 8
      %v408 = vand.u32 %v406, 255
      %v409 = vsub.s32 0, %v408
      %v410 = vsel %vm404, %v409, %v408
      %vm411 = vcmp.lt.s32.totalorder %v311, 0
      %v412 = vsub.s32 0, %v311
      %v413 = vsel %vm411, %v412, %v311
      %v414 = vshrl.u32 %v413, 8
      %v415 = vand.u32 %v413, 255
      %v416 = vsub.s32 0, %v415
      %v417 = vsel %vm411, %v416, %v415
      %vm418 = vcmp.lt.s32.totalorder %v312, 0
      %v419 = vsub.s32 0, %v312
      %v420 = vsel %vm418, %v419, %v312
      %v421 = vshrl.u32 %v420, 8
      %v422 = vand.u32 %v420, 255
      %v423 = vsub.s32 0, %v422
      %v424 = vsel %vm418, %v423, %v422
      %vm425 = vcmp.ne.s32.totalorder %v319, 0
      %vm426 = vcmp.ne.s32.totalorder %v326, 0
      %vm427 = vcmp.ne.s32.totalorder %v333, 0
      %vm428 = vcmp.ne.s32.totalorder %v340, 0
      %vm429 = vcmp.ne.s32.totalorder %v347, 0
      %vm430 = vcmp.ne.s32.totalorder %v354, 0
      %vm431 = vcmp.ne.s32.totalorder %v361, 0
      %vm432 = vcmp.ne.s32.totalorder %v368, 0
      %vm433 = vcmp.ne.s32.totalorder %v375, 0
      %vm434 = vcmp.ne.s32.totalorder %v382, 0
      %vm435 = vcmp.ne.s32.totalorder %v389, 0
      %vm436 = vcmp.ne.s32.totalorder %v396, 0
      %vm437 = vcmp.ne.s32.totalorder %v403, 0
      %vm438 = vcmp.ne.s32.totalorder %v410, 0
      %vm439 = vcmp.ne.s32.totalorder %v417, 0
      %vm440 = vcmp.ne.s32.totalorder %v424, 0
      %vm441 = vcmp.lt.s32.totalorder %v319, 0
      %vm442 = vcmp.lt.s32.totalorder %v326, 0
      %vm443 = vcmp.lt.s32.totalorder %v333, 0
      %vm444 = vcmp.lt.s32.totalorder %v340, 0
      %vm445 = vcmp.lt.s32.totalorder %v347, 0
      %vm446 = vcmp.lt.s32.totalorder %v354, 0
      %vm447 = vcmp.lt.s32.totalorder %v361, 0
      %vm448 = vcmp.lt.s32.totalorder %v368, 0
      %vm449 = vcmp.lt.s32.totalorder %v375, 0
      %vm450 = vcmp.lt.s32.totalorder %v382, 0
      %vm451 = vcmp.lt.s32.totalorder %v389, 0
      %vm452 = vcmp.lt.s32.totalorder %v396, 0
      %vm453 = vcmp.lt.s32.totalorder %v403, 0
      %vm454 = vcmp.lt.s32.totalorder %v410, 0
      %vm455 = vcmp.lt.s32.totalorder %v417, 0
      %vm456 = vcmp.lt.s32.totalorder %v424, 0
      %vm457 = vmand %vm441, %vm425
      %vm458 = vmand %vm442, %vm426
      %vm459 = vmand %vm443, %vm427
      %vm460 = vmand %vm444, %vm428
      %vm461 = vmand %vm445, %vm429
      %vm462 = vmand %vm446, %vm430
      %vm463 = vmand %vm447, %vm431
      %vm464 = vmand %vm448, %vm432
      %vm465 = vmand %vm449, %vm433
      %vm466 = vmand %vm450, %vm434
      %vm467 = vmand %vm451, %vm435
      %vm468 = vmand %vm452, %vm436
      %vm469 = vmand %vm453, %vm437
      %vm470 = vmand %vm454, %vm438
      %vm471 = vmand %vm455, %vm439
      %vm472 = vmand %vm456, %vm440
      %v473 = vadd.s32 %v319, 256
      %v474 = vadd.s32 %v326, 256
      %v475 = vadd.s32 %v333, 256
      %v476 = vadd.s32 %v340, 256
      %v477 = vadd.s32 %v347, 256
      %v478 = vadd.s32 %v354, 256
      %v479 = vadd.s32 %v361, 256
      %v480 = vadd.s32 %v368, 256
      %v481 = vadd.s32 %v375, 256
      %v482 = vadd.s32 %v382, 256
      %v483 = vadd.s32 %v389, 256
      %v484 = vadd.s32 %v396, 256
      %v485 = vadd.s32 %v403, 256
      %v486 = vadd.s32 %v410, 256
      %v487 = vadd.s32 %v417, 256
      %v488 = vadd.s32 %v424, 256
      %v489 = vsel %vm457, %v473, %v319
      %v490 = vsel %vm458, %v474, %v326
      %v491 = vsel %vm459, %v475, %v333
      %v492 = vsel %vm460, %v476, %v340
      %v493 = vsel %vm461, %v477, %v347
      %v494 = vsel %vm462, %v478, %v354
      %v495 = vsel %vm463, %v479, %v361
      %v496 = vsel %vm464, %v480, %v368
      %v497 = vsel %vm465, %v481, %v375
      %v498 = vsel %vm466, %v482, %v382
      %v499 = vsel %vm467, %v483, %v389
      %v500 = vsel %vm468, %v484, %v396
      %v501 = vsel %vm469, %v485, %v403
      %v502 = vsel %vm470, %v486, %v410
      %v503 = vsel %vm471, %v487, %v417
      %v504 = vsel %vm472, %v488, %v424
      %vm505 = vcmp.eq.s32.totalorder %v261, %v281
      %vm506 = vcmp.eq.s32.totalorder %v262, %v281
      %vm507 = vcmp.eq.s32.totalorder %v261, %v282
      %vm508 = vcmp.eq.s32.totalorder %v262, %v282
      %vm509 = vcmp.eq.s32.totalorder %v261, %v283
      %vm510 = vcmp.eq.s32.totalorder %v262, %v283
      %vm511 = vcmp.eq.s32.totalorder %v261, %v284
      %vm512 = vcmp.eq.s32.totalorder %v262, %v284
      %vm513 = vcmp.eq.s32.totalorder %v261, %v285
      %vm514 = vcmp.eq.s32.totalorder %v262, %v285
      %vm515 = vcmp.eq.s32.totalorder %v261, %v286
      %vm516 = vcmp.eq.s32.totalorder %v262, %v286
      %vm517 = vcmp.eq.s32.totalorder %v261, %v287
      %vm518 = vcmp.eq.s32.totalorder %v262, %v287
      %vm519 = vcmp.eq.s32.totalorder %v261, %v288
      %vm520 = vcmp.eq.s32.totalorder %v262, %v288
      %vm521 = vcmp.eq.s32.totalorder %v261, %v289
      %vm522 = vcmp.eq.s32.totalorder %v262, %v289
      %vm523 = vcmp.eq.s32.totalorder %v261, %v290
      %vm524 = vcmp.eq.s32.totalorder %v262, %v290
      %vm525 = vcmp.eq.s32.totalorder %v261, %v291
      %vm526 = vcmp.eq.s32.totalorder %v262, %v291
      %vm527 = vcmp.eq.s32.totalorder %v261, %v292
      %vm528 = vcmp.eq.s32.totalorder %v262, %v292
      %vm529 = vcmp.eq.s32.totalorder %v261, %v293
      %vm530 = vcmp.eq.s32.totalorder %v262, %v293
      %vm531 = vcmp.eq.s32.totalorder %v261, %v294
      %vm532 = vcmp.eq.s32.totalorder %v262, %v294
      %vm533 = vcmp.eq.s32.totalorder %v261, %v295
      %vm534 = vcmp.eq.s32.totalorder %v262, %v295
      %vm535 = vcmp.eq.s32.totalorder %v261, %v296
      %vm536 = vcmp.eq.s32.totalorder %v262, %v296
      %vm537 = vcmp.eq.s32.totalorder %v261, %v489
      %vm538 = vcmp.eq.s32.totalorder %v262, %v489
      %vm539 = vcmp.eq.s32.totalorder %v261, %v490
      %vm540 = vcmp.eq.s32.totalorder %v262, %v490
      %vm541 = vcmp.eq.s32.totalorder %v261, %v491
      %vm542 = vcmp.eq.s32.totalorder %v262, %v491
      %vm543 = vcmp.eq.s32.totalorder %v261, %v492
      %vm544 = vcmp.eq.s32.totalorder %v262, %v492
      %vm545 = vcmp.eq.s32.totalorder %v261, %v493
      %vm546 = vcmp.eq.s32.totalorder %v262, %v493
      %vm547 = vcmp.eq.s32.totalorder %v261, %v494
      %vm548 = vcmp.eq.s32.totalorder %v262, %v494
      %vm549 = vcmp.eq.s32.totalorder %v261, %v495
      %vm550 = vcmp.eq.s32.totalorder %v262, %v495
      %vm551 = vcmp.eq.s32.totalorder %v261, %v496
      %vm552 = vcmp.eq.s32.totalorder %v262, %v496
      %vm553 = vcmp.eq.s32.totalorder %v261, %v497
      %vm554 = vcmp.eq.s32.totalorder %v262, %v497
      %vm555 = vcmp.eq.s32.totalorder %v261, %v498
      %vm556 = vcmp.eq.s32.totalorder %v262, %v498
      %vm557 = vcmp.eq.s32.totalorder %v261, %v499
      %vm558 = vcmp.eq.s32.totalorder %v262, %v499
      %vm559 = vcmp.eq.s32.totalorder %v261, %v500
      %vm560 = vcmp.eq.s32.totalorder %v262, %v500
      %vm561 = vcmp.eq.s32.totalorder %v261, %v501
      %vm562 = vcmp.eq.s32.totalorder %v262, %v501
      %vm563 = vcmp.eq.s32.totalorder %v261, %v502
      %vm564 = vcmp.eq.s32.totalorder %v262, %v502
      %vm565 = vcmp.eq.s32.totalorder %v261, %v503
      %vm566 = vcmp.eq.s32.totalorder %v262, %v503
      %vm567 = vcmp.eq.s32.totalorder %v261, %v504
      %vm568 = vcmp.eq.s32.totalorder %v262, %v504
      %v569 = vld [vmem:[%s242] sm:$0xff]
      %v570 = vld [vmem:[%s242 + $0x8] sm:$0xff]
      %v571 = vld [vmem:[%s242 + $0x10] sm:$0xff]
      %v572 = vld [vmem:[%s242 + $0x18] sm:$0xff]
      %v573 = vld [vmem:[%s242 + $0x20] sm:$0xff]
      %v574 = vld [vmem:[%s242 + $0x28] sm:$0xff]
      %v575 = vld [vmem:[%s242 + $0x30] sm:$0xff]
      %v576 = vld [vmem:[%s242 + $0x38] sm:$0xff]
      %v577 = vld [vmem:[%s242 + $0x40] sm:$0xff]
      %v578 = vld [vmem:[%s242 + $0x48] sm:$0xff]
      %v579 = vld [vmem:[%s242 + $0x50] sm:$0xff]
      %v580 = vld [vmem:[%s242 + $0x58] sm:$0xff]
      %v581 = vld [vmem:[%s242 + $0x60] sm:$0xff]
      %v582 = vld [vmem:[%s242 + $0x68] sm:$0xff]
      %v583 = vld [vmem:[%s242 + $0x70] sm:$0xff]
      %v584 = vld [vmem:[%s242 + $0x78] sm:$0xff]
      %v585 = vld [vmem:[%s1] sm:$0xff]
      %v586 = vld [vmem:[%s1 + $0x8] sm:$0xff]
      %v587 = vld [vmem:[%s1 + $0x10] sm:$0xff]
      %v588 = vld [vmem:[%s1 + $0x18] sm:$0xff]
      %v589 = vld [vmem:[%s1 + $0x20] sm:$0xff]
      %v590 = vld [vmem:[%s1 + $0x28] sm:$0xff]
      %v591 = vld [vmem:[%s1 + $0x30] sm:$0xff]
      %v592 = vld [vmem:[%s1 + $0x38] sm:$0xff]
      %vm593 = vcmask 261120
      %v595 = vsel %vm593, %v569, 0
      %v598 = vsel %vm593, %v570, 0
      %v601 = vsel %vm593, %v571, 0
      %v604 = vsel %vm593, %v572, 0
      %v607 = vsel %vm593, %v573, 0
      %v610 = vsel %vm593, %v574, 0
      %v613 = vsel %vm593, %v575, 0
      %v616 = vsel %vm593, %v576, 0
      %v619 = vsel %vm593, %v577, 0
      %v622 = vsel %vm593, %v578, 0
      %v625 = vsel %vm593, %v579, 0
      %v628 = vsel %vm593, %v580, 0
      %v631 = vsel %vm593, %v581, 0
      %v634 = vsel %vm593, %v582, 0
      %v637 = vsel %vm593, %v583, 0
      %v640 = vsel %vm593, %v584, 0
      %642 = vmatprep.subr.mxu0 0.0
      %643 = vmatpush1.msra.mxu0 0.0
      %644 = vmatprep.subr.mxu0 0.0
      %645 = vmatpush1.msra.mxu0 0.0
      %646 = vmatprep.subr.mxu0 0.0
      %647 = vmatpush1.msra.mxu0 0.0
      %648 = vmatprep.subr.mxu0 0.0
      %649 = vmatpush1.msra.mxu0 0.0
      %650 = vmatprep.subr.mxu0 0.0
      %651 = vmatpush1.msra.mxu0 0.0
      %652 = vmatprep.subr.mxu0 0.0
      %653 = vmatpush1.msra.mxu0 0.0
      %654 = vmatprep.subr.mxu0 0.0
      %655 = vmatpush1.msra.mxu0 0.0
      %656 = vmatprep.subr.mxu0 0.0
      %657 = vmatpush1.msra.mxu0 0.0
      %658 = vmatprep.subr.mxu0 0.0
      %659 = vmatpush1.msra.mxu0 0.0
      %660 = vmatprep.subr.mxu0 0.0
      %661 = vmatpush1.msra.mxu0 0.0
      %662 = vmatprep.subr.mxu0 0.0
      %663 = vmatpush1.msra.mxu0 0.0
      %664 = vmatprep.subr.mxu0 0.0
      %665 = vmatpush1.msra.mxu0 0.0
      %666 = vmatprep.subr.mxu0 %v592
      %667 = vmatpush1.msra.mxu0 %v591
      %668 = vmatprep.subr.mxu0 %v590
      %669 = vmatpush1.msra.mxu0 %v589
      %670 = vmatprep.subr.mxu0 %v588
      %671 = vmatpush1.msra.mxu0 %v587
      %672 = vmatprep.subr.mxu0 %v586
      %673 = vmatpush1.msra.mxu0 %v585
      %674 = vmatprep.subr.mxu0 0.0
      %675 = vmatpush2.msra.mxu0 0.0
      %676 = vmatprep.subr.mxu0 0.0
      %677 = vmatpush2.msra.mxu0 0.0
      %678 = vmatprep.subr.mxu0 0.0
      %679 = vmatpush2.msra.mxu0 0.0
      %680 = vmatprep.subr.mxu0 0.0
      %681 = vmatpush2.msra.mxu0 0.0
      %682 = vmatprep.subr.mxu0 0.0
      %683 = vmatpush2.msra.mxu0 0.0
      %684 = vmatprep.subr.mxu0 0.0
      %685 = vmatpush2.msra.mxu0 0.0
      %686 = vmatprep.subr.mxu0 0.0
      %687 = vmatpush2.msra.mxu0 0.0
      %688 = vmatprep.subr.mxu0 0.0
      %689 = vmatpush2.msra.mxu0 0.0
      %690 = vmatprep.subr.mxu0 0.0
      %691 = vmatpush2.msra.mxu0 0.0
      %692 = vmatprep.subr.mxu0 0.0
      %693 = vmatpush2.msra.mxu0 0.0
      %694 = vmatprep.subr.mxu0 0.0
      %695 = vmatpush2.msra.mxu0 0.0
      %696 = vmatprep.subr.mxu0 0.0
      %697 = vmatpush2.msra.mxu0 0.0
      %698 = vmatprep.subr.mxu0 0.0
      %699 = vmatpush2.msra.mxu0 0.0
      %700 = vmatprep.subr.mxu0 0.0
      %701 = vmatpush2.msra.mxu0 0.0
      %702 = vmatprep.subr.mxu0 0.0
      %703 = vmatpush2.msra.mxu0 0.0
      %704 = vmatprep.subr.mxu0 0.0
      %705 = vmatpush2.msra.mxu0 0.0
      %706 = vmatprep.mubr.f32.mxu0 0.0
      %707 = vmatmul.mubr.f32.gmra.mxu0 %v595
      %v708 = vpop.f32.mrf.mxu0
      %v709 = vadd.f32 0.0, %v708
      %v710 = vpop.f32.mrf.mxu0
      %v711 = vadd.f32 0.0, %v710
      %712 = vmatprep.mubr.f32.mxu0 0.0
      %713 = vmatmul.mubr.f32.gmra.mxu0 %v598
      %v714 = vpop.f32.mrf.mxu0
      %v715 = vadd.f32 0.0, %v714
      %v716 = vpop.f32.mrf.mxu0
      %v717 = vadd.f32 0.0, %v716
      %718 = vmatprep.mubr.f32.mxu0 0.0
      %719 = vmatmul.mubr.f32.gmra.mxu0 %v601
      %v720 = vpop.f32.mrf.mxu0
      %v721 = vadd.f32 0.0, %v720
      %v722 = vpop.f32.mrf.mxu0
      %v723 = vadd.f32 0.0, %v722
      %724 = vmatprep.mubr.f32.mxu0 0.0
      %725 = vmatmul.mubr.f32.gmra.mxu0 %v604
      %v726 = vpop.f32.mrf.mxu0
      %v727 = vadd.f32 0.0, %v726
      %v728 = vpop.f32.mrf.mxu0
      %v729 = vadd.f32 0.0, %v728
      %730 = vmatprep.mubr.f32.mxu0 0.0
      %731 = vmatmul.mubr.f32.gmra.mxu0 %v607
      %v732 = vpop.f32.mrf.mxu0
      %v733 = vadd.f32 0.0, %v732
      %v734 = vpop.f32.mrf.mxu0
      %v735 = vadd.f32 0.0, %v734
      %736 = vmatprep.mubr.f32.mxu0 0.0
      %737 = vmatmul.mubr.f32.gmra.mxu0 %v610
      %v738 = vpop.f32.mrf.mxu0
      %v739 = vadd.f32 0.0, %v738
      %v740 = vpop.f32.mrf.mxu0
      %v741 = vadd.f32 0.0, %v740
      %742 = vmatprep.mubr.f32.mxu0 0.0
      %743 = vmatmul.mubr.f32.gmra.mxu0 %v613
      %v744 = vpop.f32.mrf.mxu0
      %v745 = vadd.f32 0.0, %v744
      %v746 = vpop.f32.mrf.mxu0
      %v747 = vadd.f32 0.0, %v746
      %748 = vmatprep.mubr.f32.mxu0 0.0
      %749 = vmatmul.mubr.f32.gmra.mxu0 %v616
      %v750 = vpop.f32.mrf.mxu0
      %v751 = vadd.f32 0.0, %v750
      %v752 = vpop.f32.mrf.mxu0
      %v753 = vadd.f32 0.0, %v752
      %754 = vmatprep.mubr.f32.mxu0 0.0
      %755 = vmatmul.mubr.f32.gmra.mxu0 %v619
      %v756 = vpop.f32.mrf.mxu0
      %v757 = vadd.f32 0.0, %v756
      %v758 = vpop.f32.mrf.mxu0
      %v759 = vadd.f32 0.0, %v758
      %760 = vmatprep.mubr.f32.mxu0 0.0
      %761 = vmatmul.mubr.f32.gmra.mxu0 %v622
      %v762 = vpop.f32.mrf.mxu0
      %v763 = vadd.f32 0.0, %v762
      %v764 = vpop.f32.mrf.mxu0
      %v765 = vadd.f32 0.0, %v764
      %766 = vmatprep.mubr.f32.mxu0 0.0
      %767 = vmatmul.mubr.f32.gmra.mxu0 %v625
      %v768 = vpop.f32.mrf.mxu0
      %v769 = vadd.f32 0.0, %v768
      %v770 = vpop.f32.mrf.mxu0
      %v771 = vadd.f32 0.0, %v770
      %772 = vmatprep.mubr.f32.mxu0 0.0
      %773 = vmatmul.mubr.f32.gmra.mxu0 %v628
      %v774 = vpop.f32.mrf.mxu0
      %v775 = vadd.f32 0.0, %v774
      %v776 = vpop.f32.mrf.mxu0
      %v777 = vadd.f32 0.0, %v776
      %778 = vmatprep.mubr.f32.mxu0 0.0
      %779 = vmatmul.mubr.f32.gmra.mxu0 %v631
      %v780 = vpop.f32.mrf.mxu0
      %v781 = vadd.f32 0.0, %v780
      %v782 = vpop.f32.mrf.mxu0
      %v783 = vadd.f32 0.0, %v782
      %784 = vmatprep.mubr.f32.mxu0 0.0
      %785 = vmatmul.mubr.f32.gmra.mxu0 %v634
      %v786 = vpop.f32.mrf.mxu0
      %v787 = vadd.f32 0.0, %v786
      %v788 = vpop.f32.mrf.mxu0
      %v789 = vadd.f32 0.0, %v788
      %790 = vmatprep.mubr.f32.mxu0 0.0
      %791 = vmatmul.mubr.f32.gmra.mxu0 %v637
      %v792 = vpop.f32.mrf.mxu0
      %v793 = vadd.f32 0.0, %v792
      %v794 = vpop.f32.mrf.mxu0
      %v795 = vadd.f32 0.0, %v794
      %796 = vmatprep.mubr.f32.mxu0 0.0
      %797 = vmatmul.mubr.f32.gmra.mxu0 %v640
      %v798 = vpop.f32.mrf.mxu0
      %v799 = vadd.f32 0.0, %v798
      %v800 = vpop.f32.mrf.mxu0
      %v801 = vadd.f32 0.0, %v800
      %802 = vdwg.mxu0
      %v803 = vsel %vm505, -1e+09, %v709
      %v804 = vsel %vm506, -1e+09, %v711
      %v805 = vsel %vm507, -1e+09, %v715
      %v806 = vsel %vm508, -1e+09, %v717
      %v807 = vsel %vm509, -1e+09, %v721
      %v808 = vsel %vm510, -1e+09, %v723
      %v809 = vsel %vm511, -1e+09, %v727
      %v810 = vsel %vm512, -1e+09, %v729
      %v811 = vsel %vm513, -1e+09, %v733
      %v812 = vsel %vm514, -1e+09, %v735
      %v813 = vsel %vm515, -1e+09, %v739
      %v814 = vsel %vm516, -1e+09, %v741
      %v815 = vsel %vm517, -1e+09, %v745
      %v816 = vsel %vm518, -1e+09, %v747
      %v817 = vsel %vm519, -1e+09, %v751
      %v818 = vsel %vm520, -1e+09, %v753
      %v819 = vsel %vm521, -1e+09, %v757
      %v820 = vsel %vm522, -1e+09, %v759
      %v821 = vsel %vm523, -1e+09, %v763
      %v822 = vsel %vm524, -1e+09, %v765
      %v823 = vsel %vm525, -1e+09, %v769
      %v824 = vsel %vm526, -1e+09, %v771
      %v825 = vsel %vm527, -1e+09, %v775
      %v826 = vsel %vm528, -1e+09, %v777
      %v827 = vsel %vm529, -1e+09, %v781
      %v828 = vsel %vm530, -1e+09, %v783
      %v829 = vsel %vm531, -1e+09, %v787
      %v830 = vsel %vm532, -1e+09, %v789
      %v831 = vsel %vm533, -1e+09, %v793
      %v832 = vsel %vm534, -1e+09, %v795
      %v833 = vsel %vm535, -1e+09, %v799
      %v834 = vsel %vm536, -1e+09, %v801
      %v835 = vmax.f32 %v803, %v804
      %836 = vmax.xlane.f32.xlu0 %v835
      %v837 = vpop.xlane.xlu0 %836
      %v838 = vmax.f32 %v805, %v806
      %839 = vmax.xlane.f32.xlu0 %v838
      %v840 = vpop.xlane.xlu0 %839
      %v841 = vmax.f32 %v807, %v808
      %842 = vmax.xlane.f32.xlu0 %v841
      %v843 = vpop.xlane.xlu0 %842
      %v844 = vmax.f32 %v809, %v810
      %845 = vmax.xlane.f32.xlu0 %v844
      %v846 = vpop.xlane.xlu0 %845
      %v847 = vmax.f32 %v811, %v812
      %848 = vmax.xlane.f32.xlu0 %v847
      %v849 = vpop.xlane.xlu0 %848
      %v850 = vmax.f32 %v813, %v814
      %851 = vmax.xlane.f32.xlu0 %v850
      %v852 = vpop.xlane.xlu0 %851
      %v853 = vmax.f32 %v815, %v816
      %854 = vmax.xlane.f32.xlu0 %v853
      %v855 = vpop.xlane.xlu0 %854
      %v856 = vmax.f32 %v817, %v818
      %857 = vmax.xlane.f32.xlu0 %v856
      %v858 = vpop.xlane.xlu0 %857
      %v859 = vmax.f32 %v819, %v820
      %860 = vmax.xlane.f32.xlu0 %v859
      %v861 = vpop.xlane.xlu0 %860
      %v862 = vmax.f32 %v821, %v822
      %863 = vmax.xlane.f32.xlu0 %v862
      %v864 = vpop.xlane.xlu0 %863
      %v865 = vmax.f32 %v823, %v824
      %866 = vmax.xlane.f32.xlu0 %v865
      %v867 = vpop.xlane.xlu0 %866
      %v868 = vmax.f32 %v825, %v826
      %869 = vmax.xlane.f32.xlu0 %v868
      %v870 = vpop.xlane.xlu0 %869
      %v871 = vmax.f32 %v827, %v828
      %872 = vmax.xlane.f32.xlu0 %v871
      %v873 = vpop.xlane.xlu0 %872
      %v874 = vmax.f32 %v829, %v830
      %875 = vmax.xlane.f32.xlu0 %v874
      %v876 = vpop.xlane.xlu0 %875
      %v877 = vmax.f32 %v831, %v832
      %878 = vmax.xlane.f32.xlu0 %v877
      %v879 = vpop.xlane.xlu0 %878
      %v880 = vmax.f32 %v833, %v834
      %881 = vmax.xlane.f32.xlu0 %v880
      %v882 = vpop.xlane.xlu0 %881
      %v883 = vsub.f32 %v803, %v837
      %v884 = vsub.f32 %v804, %v837
      %v885 = vsub.f32 %v805, %v840
      %v886 = vsub.f32 %v806, %v840
      %v887 = vsub.f32 %v807, %v843
      %v888 = vsub.f32 %v808, %v843
      %v889 = vsub.f32 %v809, %v846
      %v890 = vsub.f32 %v810, %v846
      %v891 = vsub.f32 %v811, %v849
      %v892 = vsub.f32 %v812, %v849
      %v893 = vsub.f32 %v813, %v852
      %v894 = vsub.f32 %v814, %v852
      %v895 = vsub.f32 %v815, %v855
      %v896 = vsub.f32 %v816, %v855
      %v897 = vsub.f32 %v817, %v858
      %v898 = vsub.f32 %v818, %v858
      %v899 = vsub.f32 %v819, %v861
      %v900 = vsub.f32 %v820, %v861
      %v901 = vsub.f32 %v821, %v864
      %v902 = vsub.f32 %v822, %v864
      %v903 = vsub.f32 %v823, %v867
      %v904 = vsub.f32 %v824, %v867
      %v905 = vsub.f32 %v825, %v870
      %v906 = vsub.f32 %v826, %v870
      %v907 = vsub.f32 %v827, %v873
      %v908 = vsub.f32 %v828, %v873
      %v909 = vsub.f32 %v829, %v876
      %v910 = vsub.f32 %v830, %v876
      %v911 = vsub.f32 %v831, %v879
      %v912 = vsub.f32 %v832, %v879
      %v913 = vsub.f32 %v833, %v882
      %v914 = vsub.f32 %v834, %v882
      %v915 = vmul.f32 %v883, 1.442695
      %v916 = vpow.pop %v915
      %v917 = vmul.f32 %v884, 1.442695
      %v918 = vpow.pop %v917
      %v919 = vmul.f32 %v885, 1.442695
      %v920 = vpow.pop %v919
      %v921 = vmul.f32 %v886, 1.442695
      %v922 = vpow.pop %v921
      %v923 = vmul.f32 %v887, 1.442695
      %v924 = vpow.pop %v923
      %v925 = vmul.f32 %v888, 1.442695
      %v926 = vpow.pop %v925
      %v927 = vmul.f32 %v889, 1.442695
      %v928 = vpow.pop %v927
      %v929 = vmul.f32 %v890, 1.442695
      %v930 = vpow.pop %v929
      %v931 = vmul.f32 %v891, 1.442695
      %v932 = vpow.pop %v931
      %v933 = vmul.f32 %v892, 1.442695
      %v934 = vpow.pop %v933
      %v935 = vmul.f32 %v893, 1.442695
      %v936 = vpow.pop %v935
      %v937 = vmul.f32 %v894, 1.442695
      %v938 = vpow.pop %v937
      %v939 = vmul.f32 %v895, 1.442695
      %v940 = vpow.pop %v939
      %v941 = vmul.f32 %v896, 1.442695
      %v942 = vpow.pop %v941
      %v943 = vmul.f32 %v897, 1.442695
      %v944 = vpow.pop %v943
      %v945 = vmul.f32 %v898, 1.442695
      %v946 = vpow.pop %v945
      %v947 = vmul.f32 %v899, 1.442695
      %v948 = vpow.pop %v947
      %v949 = vmul.f32 %v900, 1.442695
      %v950 = vpow.pop %v949
      %v951 = vmul.f32 %v901, 1.442695
      %v952 = vpow.pop %v951
      %v953 = vmul.f32 %v902, 1.442695
      %v954 = vpow.pop %v953
      %v955 = vmul.f32 %v903, 1.442695
      %v956 = vpow.pop %v955
      %v957 = vmul.f32 %v904, 1.442695
      %v958 = vpow.pop %v957
      %v959 = vmul.f32 %v905, 1.442695
      %v960 = vpow.pop %v959
      %v961 = vmul.f32 %v906, 1.442695
      %v962 = vpow.pop %v961
      %v963 = vmul.f32 %v907, 1.442695
      %v964 = vpow.pop %v963
      %v965 = vmul.f32 %v908, 1.442695
      %v966 = vpow.pop %v965
      %v967 = vmul.f32 %v909, 1.442695
      %v968 = vpow.pop %v967
      %v969 = vmul.f32 %v910, 1.442695
      %v970 = vpow.pop %v969
      %v971 = vmul.f32 %v911, 1.442695
      %v972 = vpow.pop %v971
      %v973 = vmul.f32 %v912, 1.442695
      %v974 = vpow.pop %v973
      %v975 = vmul.f32 %v913, 1.442695
      %v976 = vpow.pop %v975
      %v977 = vmul.f32 %v914, 1.442695
      %v978 = vpow.pop %v977
      %v979 = vadd.f32 %v916, %v918
      %980 = vadd.xlane.f32.xlu0 %v979
      %v981 = vpop.xlane.xlu0 %980
      %v982 = vadd.f32 %v920, %v922
      %983 = vadd.xlane.f32.xlu0 %v982
      %v984 = vpop.xlane.xlu0 %983
      %v985 = vadd.f32 %v924, %v926
      %986 = vadd.xlane.f32.xlu0 %v985
      %v987 = vpop.xlane.xlu0 %986
      %v988 = vadd.f32 %v928, %v930
      %989 = vadd.xlane.f32.xlu0 %v988
      %v990 = vpop.xlane.xlu0 %989
      %v991 = vadd.f32 %v932, %v934
      %992 = vadd.xlane.f32.xlu0 %v991
      %v993 = vpop.xlane.xlu0 %992
      %v994 = vadd.f32 %v936, %v938
      %995 = vadd.xlane.f32.xlu0 %v994
      %v996 = vpop.xlane.xlu0 %995
      %v997 = vadd.f32 %v940, %v942
      %998 = vadd.xlane.f32.xlu0 %v997
      %v999 = vpop.xlane.xlu0 %998
      %v1000 = vadd.f32 %v944, %v946
      %1001 = vadd.xlane.f32.xlu0 %v1000
      %v1002 = vpop.xlane.xlu0 %1001
      %v1003 = vadd.f32 %v948, %v950
      %1004 = vadd.xlane.f32.xlu0 %v1003
      %v1005 = vpop.xlane.xlu0 %1004
      %v1006 = vadd.f32 %v952, %v954
      %1007 = vadd.xlane.f32.xlu0 %v1006
      %v1008 = vpop.xlane.xlu0 %1007
      %v1009 = vadd.f32 %v956, %v958
      %1010 = vadd.xlane.f32.xlu0 %v1009
      %v1011 = vpop.xlane.xlu0 %1010
      %v1012 = vadd.f32 %v960, %v962
      %1013 = vadd.xlane.f32.xlu0 %v1012
      %v1014 = vpop.xlane.xlu0 %1013
      %v1015 = vadd.f32 %v964, %v966
      %1016 = vadd.xlane.f32.xlu0 %v1015
      %v1017 = vpop.xlane.xlu0 %1016
      %v1018 = vadd.f32 %v968, %v970
      %1019 = vadd.xlane.f32.xlu0 %v1018
      %v1020 = vpop.xlane.xlu0 %1019
      %v1021 = vadd.f32 %v972, %v974
      %1022 = vadd.xlane.f32.xlu0 %v1021
      %v1023 = vpop.xlane.xlu0 %1022
      %v1024 = vadd.f32 %v976, %v978
      %1025 = vadd.xlane.f32.xlu0 %v1024
      %v1026 = vpop.xlane.xlu0 %1025
      %v1027 = vlog2.pop %v981
      %v1028 = vmul.f32 %v1027, 0.6931472
      %v1029 = vlog2.pop %v984
      %v1030 = vmul.f32 %v1029, 0.6931472
      %v1031 = vlog2.pop %v987
      %v1032 = vmul.f32 %v1031, 0.6931472
      %v1033 = vlog2.pop %v990
      %v1034 = vmul.f32 %v1033, 0.6931472
      %v1035 = vlog2.pop %v993
      %v1036 = vmul.f32 %v1035, 0.6931472
      %v1037 = vlog2.pop %v996
      %v1038 = vmul.f32 %v1037, 0.6931472
      %v1039 = vlog2.pop %v999
      %v1040 = vmul.f32 %v1039, 0.6931472
      %v1041 = vlog2.pop %v1002
      %v1042 = vmul.f32 %v1041, 0.6931472
      %v1043 = vlog2.pop %v1005
      %v1044 = vmul.f32 %v1043, 0.6931472
      %v1045 = vlog2.pop %v1008
      %v1046 = vmul.f32 %v1045, 0.6931472
      %v1047 = vlog2.pop %v1011
      %v1048 = vmul.f32 %v1047, 0.6931472
      %v1049 = vlog2.pop %v1014
      %v1050 = vmul.f32 %v1049, 0.6931472
      %v1051 = vlog2.pop %v1017
      %v1052 = vmul.f32 %v1051, 0.6931472
      %v1053 = vlog2.pop %v1020
      %v1054 = vmul.f32 %v1053, 0.6931472
      %v1055 = vlog2.pop %v1023
      %v1056 = vmul.f32 %v1055, 0.6931472
      %v1057 = vlog2.pop %v1026
      %v1058 = vmul.f32 %v1057, 0.6931472
      %v1059 = vadd.f32 %v837, %v1028
      %v1060 = vadd.f32 %v840, %v1030
      %v1061 = vadd.f32 %v843, %v1032
      %v1062 = vadd.f32 %v846, %v1034
      %v1063 = vadd.f32 %v849, %v1036
      %v1064 = vadd.f32 %v852, %v1038
      %v1065 = vadd.f32 %v855, %v1040
      %v1066 = vadd.f32 %v858, %v1042
      %v1067 = vadd.f32 %v861, %v1044
      %v1068 = vadd.f32 %v864, %v1046
      %v1069 = vadd.f32 %v867, %v1048
      %v1070 = vadd.f32 %v870, %v1050
      %v1071 = vadd.f32 %v873, %v1052
      %v1072 = vadd.f32 %v876, %v1054
      %v1073 = vadd.f32 %v879, %v1056
      %v1074 = vadd.f32 %v882, %v1058
      %v1075 = vld [vmem:[%s248] sm:$0xff]
      %v1076 = vld [vmem:[%s248 + $0x8] sm:$0xff]
      %v1077 = vld [vmem:[%s248 + $0x10] sm:$0xff]
      %v1078 = vld [vmem:[%s248 + $0x18] sm:$0xff]
      %v1079 = vld [vmem:[%s248 + $0x20] sm:$0xff]
      %v1080 = vld [vmem:[%s248 + $0x28] sm:$0xff]
      %v1081 = vld [vmem:[%s248 + $0x30] sm:$0xff]
      %v1082 = vld [vmem:[%s248 + $0x38] sm:$0xff]
      %v1083 = vld [vmem:[%s248 + $0x40] sm:$0xff]
      %v1084 = vld [vmem:[%s248 + $0x48] sm:$0xff]
      %v1085 = vld [vmem:[%s248 + $0x50] sm:$0xff]
      %v1086 = vld [vmem:[%s248 + $0x58] sm:$0xff]
      %v1087 = vld [vmem:[%s248 + $0x60] sm:$0xff]
      %v1088 = vld [vmem:[%s248 + $0x68] sm:$0xff]
      %v1089 = vld [vmem:[%s248 + $0x70] sm:$0xff]
      %v1090 = vld [vmem:[%s248 + $0x78] sm:$0xff]
      %v1091 = vld [vmem:[%s3] sm:$0xff]
      %v1092 = vld [vmem:[%s3 + $0x8] sm:$0xff]
      %v1093 = vld [vmem:[%s3 + $0x10] sm:$0xff]
      %v1094 = vld [vmem:[%s3 + $0x18] sm:$0xff]
      %v1095 = vld [vmem:[%s3 + $0x20] sm:$0xff]
      %v1096 = vld [vmem:[%s3 + $0x28] sm:$0xff]
      %v1097 = vld [vmem:[%s3 + $0x30] sm:$0xff]
      %v1098 = vld [vmem:[%s3 + $0x38] sm:$0xff]
      %v1099 = vld [vmem:[%s3 + $0x40] sm:$0xff]
      %v1100 = vld [vmem:[%s3 + $0x48] sm:$0xff]
      %v1101 = vld [vmem:[%s3 + $0x50] sm:$0xff]
      %v1102 = vld [vmem:[%s3 + $0x58] sm:$0xff]
      %v1103 = vld [vmem:[%s3 + $0x60] sm:$0xff]
      %v1104 = vld [vmem:[%s3 + $0x68] sm:$0xff]
      %v1105 = vld [vmem:[%s3 + $0x70] sm:$0xff]
      %v1106 = vld [vmem:[%s3 + $0x78] sm:$0xff]
      %vm1107 = vcmask 523264
      %v1109 = vsel %vm1107, %v1075, 0
      %v1112 = vsel %vm1107, %v1076, 0
      %v1115 = vsel %vm1107, %v1077, 0
      %v1118 = vsel %vm1107, %v1078, 0
      %v1121 = vsel %vm1107, %v1079, 0
      %v1124 = vsel %vm1107, %v1080, 0
      %v1127 = vsel %vm1107, %v1081, 0
      %v1130 = vsel %vm1107, %v1082, 0
      %v1133 = vsel %vm1107, %v1083, 0
      %v1136 = vsel %vm1107, %v1084, 0
      %v1139 = vsel %vm1107, %v1085, 0
      %v1142 = vsel %vm1107, %v1086, 0
      %v1145 = vsel %vm1107, %v1087, 0
      %v1148 = vsel %vm1107, %v1088, 0
      %v1151 = vsel %vm1107, %v1089, 0
      %v1154 = vsel %vm1107, %v1090, 0
      %1156 = vmatprep.subr.mxu0 0.0
      %1157 = vmatpush1.msra.mxu0 0.0
      %1158 = vmatprep.subr.mxu0 0.0
      %1159 = vmatpush1.msra.mxu0 0.0
      %1160 = vmatprep.subr.mxu0 0.0
      %1161 = vmatpush1.msra.mxu0 0.0
      %1162 = vmatprep.subr.mxu0 0.0
      %1163 = vmatpush1.msra.mxu0 0.0
      %1164 = vmatprep.subr.mxu0 0.0
      %1165 = vmatpush1.msra.mxu0 0.0
      %1166 = vmatprep.subr.mxu0 0.0
      %1167 = vmatpush1.msra.mxu0 0.0
      %1168 = vmatprep.subr.mxu0 0.0
      %1169 = vmatpush1.msra.mxu0 0.0
      %1170 = vmatprep.subr.mxu0 0.0
      %1171 = vmatpush1.msra.mxu0 0.0
      %1172 = vmatprep.subr.mxu0 %v1106
      %1173 = vmatpush1.msra.mxu0 %v1105
      %1174 = vmatprep.subr.mxu0 %v1104
      %1175 = vmatpush1.msra.mxu0 %v1103
      %1176 = vmatprep.subr.mxu0 %v1102
      %1177 = vmatpush1.msra.mxu0 %v1101
      %1178 = vmatprep.subr.mxu0 %v1100
      %1179 = vmatpush1.msra.mxu0 %v1099
      %1180 = vmatprep.subr.mxu0 %v1098
      %1181 = vmatpush1.msra.mxu0 %v1097
      %1182 = vmatprep.subr.mxu0 %v1096
      %1183 = vmatpush1.msra.mxu0 %v1095
      %1184 = vmatprep.subr.mxu0 %v1094
      %1185 = vmatpush1.msra.mxu0 %v1093
      %1186 = vmatprep.subr.mxu0 %v1092
      %1187 = vmatpush1.msra.mxu0 %v1091
      %1188 = vmatprep.subr.mxu0 0.0
      %1189 = vmatpush2.msra.mxu0 0.0
      %1190 = vmatprep.subr.mxu0 0.0
      %1191 = vmatpush2.msra.mxu0 0.0
      %1192 = vmatprep.subr.mxu0 0.0
      %1193 = vmatpush2.msra.mxu0 0.0
      %1194 = vmatprep.subr.mxu0 0.0
      %1195 = vmatpush2.msra.mxu0 0.0
      %1196 = vmatprep.subr.mxu0 0.0
      %1197 = vmatpush2.msra.mxu0 0.0
      %1198 = vmatprep.subr.mxu0 0.0
      %1199 = vmatpush2.msra.mxu0 0.0
      %1200 = vmatprep.subr.mxu0 0.0
      %1201 = vmatpush2.msra.mxu0 0.0
      %1202 = vmatprep.subr.mxu0 0.0
      %1203 = vmatpush2.msra.mxu0 0.0
      %1204 = vmatprep.subr.mxu0 0.0
      %1205 = vmatpush2.msra.mxu0 0.0
      %1206 = vmatprep.subr.mxu0 0.0
      %1207 = vmatpush2.msra.mxu0 0.0
      %1208 = vmatprep.subr.mxu0 0.0
      %1209 = vmatpush2.msra.mxu0 0.0
      %1210 = vmatprep.subr.mxu0 0.0
      %1211 = vmatpush2.msra.mxu0 0.0
      %1212 = vmatprep.subr.mxu0 0.0
      %1213 = vmatpush2.msra.mxu0 0.0
      %1214 = vmatprep.subr.mxu0 0.0
      %1215 = vmatpush2.msra.mxu0 0.0
      %1216 = vmatprep.subr.mxu0 0.0
      %1217 = vmatpush2.msra.mxu0 0.0
      %1218 = vmatprep.subr.mxu0 0.0
      %1219 = vmatpush2.msra.mxu0 0.0
      %1220 = vmatprep.mubr.f32.mxu0 0.0
      %1221 = vmatmul.mubr.f32.gmra.mxu0 %v1109
      %v1222 = vpop.f32.mrf.mxu0
      %v1223 = vadd.f32 0.0, %v1222
      %v1224 = vpop.f32.mrf.mxu0
      %v1225 = vadd.f32 0.0, %v1224
      %1226 = vmatprep.mubr.f32.mxu0 0.0
      %1227 = vmatmul.mubr.f32.gmra.mxu0 %v1112
      %v1228 = vpop.f32.mrf.mxu0
      %v1229 = vadd.f32 0.0, %v1228
      %v1230 = vpop.f32.mrf.mxu0
      %v1231 = vadd.f32 0.0, %v1230
      %1232 = vmatprep.mubr.f32.mxu0 0.0
      %1233 = vmatmul.mubr.f32.gmra.mxu0 %v1115
      %v1234 = vpop.f32.mrf.mxu0
      %v1235 = vadd.f32 0.0, %v1234
      %v1236 = vpop.f32.mrf.mxu0
      %v1237 = vadd.f32 0.0, %v1236
      %1238 = vmatprep.mubr.f32.mxu0 0.0
      %1239 = vmatmul.mubr.f32.gmra.mxu0 %v1118
      %v1240 = vpop.f32.mrf.mxu0
      %v1241 = vadd.f32 0.0, %v1240
      %v1242 = vpop.f32.mrf.mxu0
      %v1243 = vadd.f32 0.0, %v1242
      %1244 = vmatprep.mubr.f32.mxu0 0.0
      %1245 = vmatmul.mubr.f32.gmra.mxu0 %v1121
      %v1246 = vpop.f32.mrf.mxu0
      %v1247 = vadd.f32 0.0, %v1246
      %v1248 = vpop.f32.mrf.mxu0
      %v1249 = vadd.f32 0.0, %v1248
      %1250 = vmatprep.mubr.f32.mxu0 0.0
      %1251 = vmatmul.mubr.f32.gmra.mxu0 %v1124
      %v1252 = vpop.f32.mrf.mxu0
      %v1253 = vadd.f32 0.0, %v1252
      %v1254 = vpop.f32.mrf.mxu0
      %v1255 = vadd.f32 0.0, %v1254
      %1256 = vmatprep.mubr.f32.mxu0 0.0
      %1257 = vmatmul.mubr.f32.gmra.mxu0 %v1127
      %v1258 = vpop.f32.mrf.mxu0
      %v1259 = vadd.f32 0.0, %v1258
      %v1260 = vpop.f32.mrf.mxu0
      %v1261 = vadd.f32 0.0, %v1260
      %1262 = vmatprep.mubr.f32.mxu0 0.0
      %1263 = vmatmul.mubr.f32.gmra.mxu0 %v1130
      %v1264 = vpop.f32.mrf.mxu0
      %v1265 = vadd.f32 0.0, %v1264
      %v1266 = vpop.f32.mrf.mxu0
      %v1267 = vadd.f32 0.0, %v1266
      %1268 = vmatprep.mubr.f32.mxu0 0.0
      %1269 = vmatmul.mubr.f32.gmra.mxu0 %v1133
      %v1270 = vpop.f32.mrf.mxu0
      %v1271 = vadd.f32 0.0, %v1270
      %v1272 = vpop.f32.mrf.mxu0
      %v1273 = vadd.f32 0.0, %v1272
      %1274 = vmatprep.mubr.f32.mxu0 0.0
      %1275 = vmatmul.mubr.f32.gmra.mxu0 %v1136
      %v1276 = vpop.f32.mrf.mxu0
      %v1277 = vadd.f32 0.0, %v1276
      %v1278 = vpop.f32.mrf.mxu0
      %v1279 = vadd.f32 0.0, %v1278
      %1280 = vmatprep.mubr.f32.mxu0 0.0
      %1281 = vmatmul.mubr.f32.gmra.mxu0 %v1139
      %v1282 = vpop.f32.mrf.mxu0
      %v1283 = vadd.f32 0.0, %v1282
      %v1284 = vpop.f32.mrf.mxu0
      %v1285 = vadd.f32 0.0, %v1284
      %1286 = vmatprep.mubr.f32.mxu0 0.0
      %1287 = vmatmul.mubr.f32.gmra.mxu0 %v1142
      %v1288 = vpop.f32.mrf.mxu0
      %v1289 = vadd.f32 0.0, %v1288
      %v1290 = vpop.f32.mrf.mxu0
      %v1291 = vadd.f32 0.0, %v1290
      %1292 = vmatprep.mubr.f32.mxu0 0.0
      %1293 = vmatmul.mubr.f32.gmra.mxu0 %v1145
      %v1294 = vpop.f32.mrf.mxu0
      %v1295 = vadd.f32 0.0, %v1294
      %v1296 = vpop.f32.mrf.mxu0
      %v1297 = vadd.f32 0.0, %v1296
      %1298 = vmatprep.mubr.f32.mxu0 0.0
      %1299 = vmatmul.mubr.f32.gmra.mxu0 %v1148
      %v1300 = vpop.f32.mrf.mxu0
      %v1301 = vadd.f32 0.0, %v1300
      %v1302 = vpop.f32.mrf.mxu0
      %v1303 = vadd.f32 0.0, %v1302
      %1304 = vmatprep.mubr.f32.mxu0 0.0
      %1305 = vmatmul.mubr.f32.gmra.mxu0 %v1151
      %v1306 = vpop.f32.mrf.mxu0
      %v1307 = vadd.f32 0.0, %v1306
      %v1308 = vpop.f32.mrf.mxu0
      %v1309 = vadd.f32 0.0, %v1308
      %1310 = vmatprep.mubr.f32.mxu0 0.0
      %1311 = vmatmul.mubr.f32.gmra.mxu0 %v1154
      %v1312 = vpop.f32.mrf.mxu0
      %v1313 = vadd.f32 0.0, %v1312
      %v1314 = vpop.f32.mrf.mxu0
      %v1315 = vadd.f32 0.0, %v1314
      %1316 = vdwg.mxu0
      %vm1317 = vmor %vm505, %vm537
      %vm1318 = vmor %vm506, %vm538
      %vm1319 = vmor %vm507, %vm539
      %vm1320 = vmor %vm508, %vm540
      %vm1321 = vmor %vm509, %vm541
      %vm1322 = vmor %vm510, %vm542
      %vm1323 = vmor %vm511, %vm543
      %vm1324 = vmor %vm512, %vm544
      %vm1325 = vmor %vm513, %vm545
      %vm1326 = vmor %vm514, %vm546
      %vm1327 = vmor %vm515, %vm547
      %vm1328 = vmor %vm516, %vm548
      %vm1329 = vmor %vm517, %vm549
      %vm1330 = vmor %vm518, %vm550
      %vm1331 = vmor %vm519, %vm551
      %vm1332 = vmor %vm520, %vm552
      %vm1333 = vmor %vm521, %vm553
      %vm1334 = vmor %vm522, %vm554
      %vm1335 = vmor %vm523, %vm555
      %vm1336 = vmor %vm524, %vm556
      %vm1337 = vmor %vm525, %vm557
      %vm1338 = vmor %vm526, %vm558
      %vm1339 = vmor %vm527, %vm559
      %vm1340 = vmor %vm528, %vm560
      %vm1341 = vmor %vm529, %vm561
      %vm1342 = vmor %vm530, %vm562
      %vm1343 = vmor %vm531, %vm563
      %vm1344 = vmor %vm532, %vm564
      %vm1345 = vmor %vm533, %vm565
      %vm1346 = vmor %vm534, %vm566
      %vm1347 = vmor %vm535, %vm567
      %vm1348 = vmor %vm536, %vm568
      %v1349 = vsel %vm1317, -1.0, %v1223
      %v1350 = vsel %vm1318, -1.0, %v1225
      %v1351 = vsel %vm1319, -1.0, %v1229
      %v1352 = vsel %vm1320, -1.0, %v1231
      %v1353 = vsel %vm1321, -1.0, %v1235
      %v1354 = vsel %vm1322, -1.0, %v1237
      %v1355 = vsel %vm1323, -1.0, %v1241
      %v1356 = vsel %vm1324, -1.0, %v1243
      %v1357 = vsel %vm1325, -1.0, %v1247
      %v1358 = vsel %vm1326, -1.0, %v1249
      %v1359 = vsel %vm1327, -1.0, %v1253
      %v1360 = vsel %vm1328, -1.0, %v1255
      %v1361 = vsel %vm1329, -1.0, %v1259
      %v1362 = vsel %vm1330, -1.0, %v1261
      %v1363 = vsel %vm1331, -1.0, %v1265
      %v1364 = vsel %vm1332, -1.0, %v1267
      %v1365 = vsel %vm1333, -1.0, %v1271
      %v1366 = vsel %vm1334, -1.0, %v1273
      %v1367 = vsel %vm1335, -1.0, %v1277
      %v1368 = vsel %vm1336, -1.0, %v1279
      %v1369 = vsel %vm1337, -1.0, %v1283
      %v1370 = vsel %vm1338, -1.0, %v1285
      %v1371 = vsel %vm1339, -1.0, %v1289
      %v1372 = vsel %vm1340, -1.0, %v1291
      %v1373 = vsel %vm1341, -1.0, %v1295
      %v1374 = vsel %vm1342, -1.0, %v1297
      %v1375 = vsel %vm1343, -1.0, %v1301
      %v1376 = vsel %vm1344, -1.0, %v1303
      %v1377 = vsel %vm1345, -1.0, %v1307
      %v1378 = vsel %vm1346, -1.0, %v1309
      %v1379 = vsel %vm1347, -1.0, %v1313
      %v1380 = vsel %vm1348, -1.0, %v1315
      %v1381 = vmax.f32 %v1349, %v1350
      %1382 = vmax.xlane.f32.xlu0 %v1381
      %v1383 = vpop.xlane.xlu0 %1382
      %v1384 = vmax.f32 %v1351, %v1352
      %1385 = vmax.xlane.f32.xlu0 %v1384
      %v1386 = vpop.xlane.xlu0 %1385
      %v1387 = vmax.f32 %v1353, %v1354
      %1388 = vmax.xlane.f32.xlu0 %v1387
      %v1389 = vpop.xlane.xlu0 %1388
      %v1390 = vmax.f32 %v1355, %v1356
      %1391 = vmax.xlane.f32.xlu0 %v1390
      %v1392 = vpop.xlane.xlu0 %1391
      %v1393 = vmax.f32 %v1357, %v1358
      %1394 = vmax.xlane.f32.xlu0 %v1393
      %v1395 = vpop.xlane.xlu0 %1394
      %v1396 = vmax.f32 %v1359, %v1360
      %1397 = vmax.xlane.f32.xlu0 %v1396
      %v1398 = vpop.xlane.xlu0 %1397
      %v1399 = vmax.f32 %v1361, %v1362
      %1400 = vmax.xlane.f32.xlu0 %v1399
      %v1401 = vpop.xlane.xlu0 %1400
      %v1402 = vmax.f32 %v1363, %v1364
      %1403 = vmax.xlane.f32.xlu0 %v1402
      %v1404 = vpop.xlane.xlu0 %1403
      %v1405 = vmax.f32 %v1365, %v1366
      %1406 = vmax.xlane.f32.xlu0 %v1405
      %v1407 = vpop.xlane.xlu0 %1406
      %v1408 = vmax.f32 %v1367, %v1368
      %1409 = vmax.xlane.f32.xlu0 %v1408
      %v1410 = vpop.xlane.xlu0 %1409
      %v1411 = vmax.f32 %v1369, %v1370
      %1412 = vmax.xlane.f32.xlu0 %v1411
      %v1413 = vpop.xlane.xlu0 %1412
      %v1414 = vmax.f32 %v1371, %v1372
      %1415 = vmax.xlane.f32.xlu0 %v1414
      %v1416 = vpop.xlane.xlu0 %1415
      %v1417 = vmax.f32 %v1373, %v1374
      %1418 = vmax.xlane.f32.xlu0 %v1417
      %v1419 = vpop.xlane.xlu0 %1418
      %v1420 = vmax.f32 %v1375, %v1376
      %1421 = vmax.xlane.f32.xlu0 %v1420
      %v1422 = vpop.xlane.xlu0 %1421
      %v1423 = vmax.f32 %v1377, %v1378
      %1424 = vmax.xlane.f32.xlu0 %v1423
      %v1425 = vpop.xlane.xlu0 %1424
      %v1426 = vmax.f32 %v1379, %v1380
      %1427 = vmax.xlane.f32.xlu0 %v1426
      %v1428 = vpop.xlane.xlu0 %1427
      %vm1429 = vcmp.eq.f32.partialorder %v1349, %v1383
      %vm1430 = vcmp.eq.f32.partialorder %v1350, %v1383
      %vm1431 = vcmp.eq.f32.partialorder %v1351, %v1386
      %vm1432 = vcmp.eq.f32.partialorder %v1352, %v1386
      %vm1433 = vcmp.eq.f32.partialorder %v1353, %v1389
      %vm1434 = vcmp.eq.f32.partialorder %v1354, %v1389
      %vm1435 = vcmp.eq.f32.partialorder %v1355, %v1392
      %vm1436 = vcmp.eq.f32.partialorder %v1356, %v1392
      %vm1437 = vcmp.eq.f32.partialorder %v1357, %v1395
      %vm1438 = vcmp.eq.f32.partialorder %v1358, %v1395
      %vm1439 = vcmp.eq.f32.partialorder %v1359, %v1398
      %vm1440 = vcmp.eq.f32.partialorder %v1360, %v1398
      %vm1441 = vcmp.eq.f32.partialorder %v1361, %v1401
      %vm1442 = vcmp.eq.f32.partialorder %v1362, %v1401
      %vm1443 = vcmp.eq.f32.partialorder %v1363, %v1404
      %vm1444 = vcmp.eq.f32.partialorder %v1364, %v1404
      %vm1445 = vcmp.eq.f32.partialorder %v1365, %v1407
      %vm1446 = vcmp.eq.f32.partialorder %v1366, %v1407
      %vm1447 = vcmp.eq.f32.partialorder %v1367, %v1410
      %vm1448 = vcmp.eq.f32.partialorder %v1368, %v1410
      %vm1449 = vcmp.eq.f32.partialorder %v1369, %v1413
      %vm1450 = vcmp.eq.f32.partialorder %v1370, %v1413
      %vm1451 = vcmp.eq.f32.partialorder %v1371, %v1416
      %vm1452 = vcmp.eq.f32.partialorder %v1372, %v1416
      %vm1453 = vcmp.eq.f32.partialorder %v1373, %v1419
      %vm1454 = vcmp.eq.f32.partialorder %v1374, %v1419
      %vm1455 = vcmp.eq.f32.partialorder %v1375, %v1422
      %vm1456 = vcmp.eq.f32.partialorder %v1376, %v1422
      %vm1457 = vcmp.eq.f32.partialorder %v1377, %v1425
      %vm1458 = vcmp.eq.f32.partialorder %v1378, %v1425
      %vm1459 = vcmp.eq.f32.partialorder %v1379, %v1428
      %vm1460 = vcmp.eq.f32.partialorder %v1380, %v1428
      %v1461 = vsel %vm1429, %v261, 256
      %v1462 = vsel %vm1430, %v262, 256
      %v1463 = vsel %vm1431, %v261, 256
      %v1464 = vsel %vm1432, %v262, 256
      %v1465 = vsel %vm1433, %v261, 256
      %v1466 = vsel %vm1434, %v262, 256
      %v1467 = vsel %vm1435, %v261, 256
      %v1468 = vsel %vm1436, %v262, 256
      %v1469 = vsel %vm1437, %v261, 256
      %v1470 = vsel %vm1438, %v262, 256
      %v1471 = vsel %vm1439, %v261, 256
      %v1472 = vsel %vm1440, %v262, 256
      %v1473 = vsel %vm1441, %v261, 256
      %v1474 = vsel %vm1442, %v262, 256
      %v1475 = vsel %vm1443, %v261, 256
      %v1476 = vsel %vm1444, %v262, 256
      %v1477 = vsel %vm1445, %v261, 256
      %v1478 = vsel %vm1446, %v262, 256
      %v1479 = vsel %vm1447, %v261, 256
      %v1480 = vsel %vm1448, %v262, 256
      %v1481 = vsel %vm1449, %v261, 256
      %v1482 = vsel %vm1450, %v262, 256
      %v1483 = vsel %vm1451, %v261, 256
      %v1484 = vsel %vm1452, %v262, 256
      %v1485 = vsel %vm1453, %v261, 256
      %v1486 = vsel %vm1454, %v262, 256
      %v1487 = vsel %vm1455, %v261, 256
      %v1488 = vsel %vm1456, %v262, 256
      %v1489 = vsel %vm1457, %v261, 256
      %v1490 = vsel %vm1458, %v262, 256
      %v1491 = vsel %vm1459, %v261, 256
      %v1492 = vsel %vm1460, %v262, 256
      %vm1493 = vcmp.lt.s32.totalorder %v1461, %v1462
      %v1494 = vsel %vm1493, %v1461, %v1462
      %v1495 = vand.u32 %v1494, 65535
      %v1496 = vshra.s32 %v1494, 16
      %v1497 = vcvt.s32.f32 %v1495
      %v1498 = vcvt.s32.f32 %v1496
      %1499 = vmin.xlane.f32.xlu0 %v1498
      %v1500 = vpop.xlane.xlu0 %1499
      %vm1501 = vcmp.eq.f32.partialorder %v1498, %v1500
      %v1502 = vsel %vm1501, %v1497, inf
      %1503 = vmin.xlane.f32.xlu0 %v1502
      %v1504 = vpop.xlane.xlu0 %1503
      %v1505 = vcvt.f32.s32 %v1504
      %v1506 = vcvt.f32.s32 %v1500
      %v1507 = vshll.u32 %v1506, 16
      %v1508 = vadd.s32 %v1507, %v1505
      %vm1509 = vcmp.lt.s32.totalorder %v1463, %v1464
      %v1510 = vsel %vm1509, %v1463, %v1464
      %v1511 = vand.u32 %v1510, 65535
      %v1512 = vshra.s32 %v1510, 16
      %v1513 = vcvt.s32.f32 %v1511
      %v1514 = vcvt.s32.f32 %v1512
      %1515 = vmin.xlane.f32.xlu0 %v1514
      %v1516 = vpop.xlane.xlu0 %1515
      %vm1517 = vcmp.eq.f32.partialorder %v1514, %v1516
      %v1518 = vsel %vm1517, %v1513, inf
      %1519 = vmin.xlane.f32.xlu0 %v1518
      %v1520 = vpop.xlane.xlu0 %1519
      %v1521 = vcvt.f32.s32 %v1520
      %v1522 = vcvt.f32.s32 %v1516
      %v1523 = vshll.u32 %v1522, 16
      %v1524 = vadd.s32 %v1523, %v1521
      %vm1525 = vcmp.lt.s32.totalorder %v1465, %v1466
      %v1526 = vsel %vm1525, %v1465, %v1466
      %v1527 = vand.u32 %v1526, 65535
      %v1528 = vshra.s32 %v1526, 16
      %v1529 = vcvt.s32.f32 %v1527
      %v1530 = vcvt.s32.f32 %v1528
      %1531 = vmin.xlane.f32.xlu0 %v1530
      %v1532 = vpop.xlane.xlu0 %1531
      %vm1533 = vcmp.eq.f32.partialorder %v1530, %v1532
      %v1534 = vsel %vm1533, %v1529, inf
      %1535 = vmin.xlane.f32.xlu0 %v1534
      %v1536 = vpop.xlane.xlu0 %1535
      %v1537 = vcvt.f32.s32 %v1536
      %v1538 = vcvt.f32.s32 %v1532
      %v1539 = vshll.u32 %v1538, 16
      %v1540 = vadd.s32 %v1539, %v1537
      %vm1541 = vcmp.lt.s32.totalorder %v1467, %v1468
      %v1542 = vsel %vm1541, %v1467, %v1468
      %v1543 = vand.u32 %v1542, 65535
      %v1544 = vshra.s32 %v1542, 16
      %v1545 = vcvt.s32.f32 %v1543
      %v1546 = vcvt.s32.f32 %v1544
      %1547 = vmin.xlane.f32.xlu0 %v1546
      %v1548 = vpop.xlane.xlu0 %1547
      %vm1549 = vcmp.eq.f32.partialorder %v1546, %v1548
      %v1550 = vsel %vm1549, %v1545, inf
      %1551 = vmin.xlane.f32.xlu0 %v1550
      %v1552 = vpop.xlane.xlu0 %1551
      %v1553 = vcvt.f32.s32 %v1552
      %v1554 = vcvt.f32.s32 %v1548
      %v1555 = vshll.u32 %v1554, 16
      %v1556 = vadd.s32 %v1555, %v1553
      %vm1557 = vcmp.lt.s32.totalorder %v1469, %v1470
      %v1558 = vsel %vm1557, %v1469, %v1470
      %v1559 = vand.u32 %v1558, 65535
      %v1560 = vshra.s32 %v1558, 16
      %v1561 = vcvt.s32.f32 %v1559
      %v1562 = vcvt.s32.f32 %v1560
      %1563 = vmin.xlane.f32.xlu0 %v1562
      %v1564 = vpop.xlane.xlu0 %1563
      %vm1565 = vcmp.eq.f32.partialorder %v1562, %v1564
      %v1566 = vsel %vm1565, %v1561, inf
      %1567 = vmin.xlane.f32.xlu0 %v1566
      %v1568 = vpop.xlane.xlu0 %1567
      %v1569 = vcvt.f32.s32 %v1568
      %v1570 = vcvt.f32.s32 %v1564
      %v1571 = vshll.u32 %v1570, 16
      %v1572 = vadd.s32 %v1571, %v1569
      %vm1573 = vcmp.lt.s32.totalorder %v1471, %v1472
      %v1574 = vsel %vm1573, %v1471, %v1472
      %v1575 = vand.u32 %v1574, 65535
      %v1576 = vshra.s32 %v1574, 16
      %v1577 = vcvt.s32.f32 %v1575
      %v1578 = vcvt.s32.f32 %v1576
      %1579 = vmin.xlane.f32.xlu0 %v1578
      %v1580 = vpop.xlane.xlu0 %1579
      %vm1581 = vcmp.eq.f32.partialorder %v1578, %v1580
      %v1582 = vsel %vm1581, %v1577, inf
      %1583 = vmin.xlane.f32.xlu0 %v1582
      %v1584 = vpop.xlane.xlu0 %1583
      %v1585 = vcvt.f32.s32 %v1584
      %v1586 = vcvt.f32.s32 %v1580
      %v1587 = vshll.u32 %v1586, 16
      %v1588 = vadd.s32 %v1587, %v1585
      %vm1589 = vcmp.lt.s32.totalorder %v1473, %v1474
      %v1590 = vsel %vm1589, %v1473, %v1474
      %v1591 = vand.u32 %v1590, 65535
      %v1592 = vshra.s32 %v1590, 16
      %v1593 = vcvt.s32.f32 %v1591
      %v1594 = vcvt.s32.f32 %v1592
      %1595 = vmin.xlane.f32.xlu0 %v1594
      %v1596 = vpop.xlane.xlu0 %1595
      %vm1597 = vcmp.eq.f32.partialorder %v1594, %v1596
      %v1598 = vsel %vm1597, %v1593, inf
      %1599 = vmin.xlane.f32.xlu0 %v1598
      %v1600 = vpop.xlane.xlu0 %1599
      %v1601 = vcvt.f32.s32 %v1600
      %v1602 = vcvt.f32.s32 %v1596
      %v1603 = vshll.u32 %v1602, 16
      %v1604 = vadd.s32 %v1603, %v1601
      %vm1605 = vcmp.lt.s32.totalorder %v1475, %v1476
      %v1606 = vsel %vm1605, %v1475, %v1476
      %v1607 = vand.u32 %v1606, 65535
      %v1608 = vshra.s32 %v1606, 16
      %v1609 = vcvt.s32.f32 %v1607
      %v1610 = vcvt.s32.f32 %v1608
      %1611 = vmin.xlane.f32.xlu0 %v1610
      %v1612 = vpop.xlane.xlu0 %1611
      %vm1613 = vcmp.eq.f32.partialorder %v1610, %v1612
      %v1614 = vsel %vm1613, %v1609, inf
      %1615 = vmin.xlane.f32.xlu0 %v1614
      %v1616 = vpop.xlane.xlu0 %1615
      %v1617 = vcvt.f32.s32 %v1616
      %v1618 = vcvt.f32.s32 %v1612
      %v1619 = vshll.u32 %v1618, 16
      %v1620 = vadd.s32 %v1619, %v1617
      %vm1621 = vcmp.lt.s32.totalorder %v1477, %v1478
      %v1622 = vsel %vm1621, %v1477, %v1478
      %v1623 = vand.u32 %v1622, 65535
      %v1624 = vshra.s32 %v1622, 16
      %v1625 = vcvt.s32.f32 %v1623
      %v1626 = vcvt.s32.f32 %v1624
      %1627 = vmin.xlane.f32.xlu0 %v1626
      %v1628 = vpop.xlane.xlu0 %1627
      %vm1629 = vcmp.eq.f32.partialorder %v1626, %v1628
      %v1630 = vsel %vm1629, %v1625, inf
      %1631 = vmin.xlane.f32.xlu0 %v1630
      %v1632 = vpop.xlane.xlu0 %1631
      %v1633 = vcvt.f32.s32 %v1632
      %v1634 = vcvt.f32.s32 %v1628
      %v1635 = vshll.u32 %v1634, 16
      %v1636 = vadd.s32 %v1635, %v1633
      %vm1637 = vcmp.lt.s32.totalorder %v1479, %v1480
      %v1638 = vsel %vm1637, %v1479, %v1480
      %v1639 = vand.u32 %v1638, 65535
      %v1640 = vshra.s32 %v1638, 16
      %v1641 = vcvt.s32.f32 %v1639
      %v1642 = vcvt.s32.f32 %v1640
      %1643 = vmin.xlane.f32.xlu0 %v1642
      %v1644 = vpop.xlane.xlu0 %1643
      %vm1645 = vcmp.eq.f32.partialorder %v1642, %v1644
      %v1646 = vsel %vm1645, %v1641, inf
      %1647 = vmin.xlane.f32.xlu0 %v1646
      %v1648 = vpop.xlane.xlu0 %1647
      %v1649 = vcvt.f32.s32 %v1648
      %v1650 = vcvt.f32.s32 %v1644
      %v1651 = vshll.u32 %v1650, 16
      %v1652 = vadd.s32 %v1651, %v1649
      %vm1653 = vcmp.lt.s32.totalorder %v1481, %v1482
      %v1654 = vsel %vm1653, %v1481, %v1482
      %v1655 = vand.u32 %v1654, 65535
      %v1656 = vshra.s32 %v1654, 16
      %v1657 = vcvt.s32.f32 %v1655
      %v1658 = vcvt.s32.f32 %v1656
      %1659 = vmin.xlane.f32.xlu0 %v1658
      %v1660 = vpop.xlane.xlu0 %1659
      %vm1661 = vcmp.eq.f32.partialorder %v1658, %v1660
      %v1662 = vsel %vm1661, %v1657, inf
      %1663 = vmin.xlane.f32.xlu0 %v1662
      %v1664 = vpop.xlane.xlu0 %1663
      %v1665 = vcvt.f32.s32 %v1664
      %v1666 = vcvt.f32.s32 %v1660
      %v1667 = vshll.u32 %v1666, 16
      %v1668 = vadd.s32 %v1667, %v1665
      %vm1669 = vcmp.lt.s32.totalorder %v1483, %v1484
      %v1670 = vsel %vm1669, %v1483, %v1484
      %v1671 = vand.u32 %v1670, 65535
      %v1672 = vshra.s32 %v1670, 16
      %v1673 = vcvt.s32.f32 %v1671
      %v1674 = vcvt.s32.f32 %v1672
      %1675 = vmin.xlane.f32.xlu0 %v1674
      %v1676 = vpop.xlane.xlu0 %1675
      %vm1677 = vcmp.eq.f32.partialorder %v1674, %v1676
      %v1678 = vsel %vm1677, %v1673, inf
      %1679 = vmin.xlane.f32.xlu0 %v1678
      %v1680 = vpop.xlane.xlu0 %1679
      %v1681 = vcvt.f32.s32 %v1680
      %v1682 = vcvt.f32.s32 %v1676
      %v1683 = vshll.u32 %v1682, 16
      %v1684 = vadd.s32 %v1683, %v1681
      %vm1685 = vcmp.lt.s32.totalorder %v1485, %v1486
      %v1686 = vsel %vm1685, %v1485, %v1486
      %v1687 = vand.u32 %v1686, 65535
      %v1688 = vshra.s32 %v1686, 16
      %v1689 = vcvt.s32.f32 %v1687
      %v1690 = vcvt.s32.f32 %v1688
      %1691 = vmin.xlane.f32.xlu0 %v1690
      %v1692 = vpop.xlane.xlu0 %1691
      %vm1693 = vcmp.eq.f32.partialorder %v1690, %v1692
      %v1694 = vsel %vm1693, %v1689, inf
      %1695 = vmin.xlane.f32.xlu0 %v1694
      %v1696 = vpop.xlane.xlu0 %1695
      %v1697 = vcvt.f32.s32 %v1696
      %v1698 = vcvt.f32.s32 %v1692
      %v1699 = vshll.u32 %v1698, 16
      %v1700 = vadd.s32 %v1699, %v1697
      %vm1701 = vcmp.lt.s32.totalorder %v1487, %v1488
      %v1702 = vsel %vm1701, %v1487, %v1488
      %v1703 = vand.u32 %v1702, 65535
      %v1704 = vshra.s32 %v1702, 16
      %v1705 = vcvt.s32.f32 %v1703
      %v1706 = vcvt.s32.f32 %v1704
      %1707 = vmin.xlane.f32.xlu0 %v1706
      %v1708 = vpop.xlane.xlu0 %1707
      %vm1709 = vcmp.eq.f32.partialorder %v1706, %v1708
      %v1710 = vsel %vm1709, %v1705, inf
      %1711 = vmin.xlane.f32.xlu0 %v1710
      %v1712 = vpop.xlane.xlu0 %1711
      %v1713 = vcvt.f32.s32 %v1712
      %v1714 = vcvt.f32.s32 %v1708
      %v1715 = vshll.u32 %v1714, 16
      %v1716 = vadd.s32 %v1715, %v1713
      %vm1717 = vcmp.lt.s32.totalorder %v1489, %v1490
      %v1718 = vsel %vm1717, %v1489, %v1490
      %v1719 = vand.u32 %v1718, 65535
      %v1720 = vshra.s32 %v1718, 16
      %v1721 = vcvt.s32.f32 %v1719
      %v1722 = vcvt.s32.f32 %v1720
      %1723 = vmin.xlane.f32.xlu0 %v1722
      %v1724 = vpop.xlane.xlu0 %1723
      %vm1725 = vcmp.eq.f32.partialorder %v1722, %v1724
      %v1726 = vsel %vm1725, %v1721, inf
      %1727 = vmin.xlane.f32.xlu0 %v1726
      %v1728 = vpop.xlane.xlu0 %1727
      %v1729 = vcvt.f32.s32 %v1728
      %v1730 = vcvt.f32.s32 %v1724
      %v1731 = vshll.u32 %v1730, 16
      %v1732 = vadd.s32 %v1731, %v1729
      %vm1733 = vcmp.lt.s32.totalorder %v1491, %v1492
      %v1734 = vsel %vm1733, %v1491, %v1492
      %v1735 = vand.u32 %v1734, 65535
      %v1736 = vshra.s32 %v1734, 16
      %v1737 = vcvt.s32.f32 %v1735
      %v1738 = vcvt.s32.f32 %v1736
      %1739 = vmin.xlane.f32.xlu0 %v1738
      %v1740 = vpop.xlane.xlu0 %1739
      %vm1741 = vcmp.eq.f32.partialorder %v1738, %v1740
      %v1742 = vsel %vm1741, %v1737, inf
      %1743 = vmin.xlane.f32.xlu0 %v1742
      %v1744 = vpop.xlane.xlu0 %1743
      %v1745 = vcvt.f32.s32 %v1744
      %v1746 = vcvt.f32.s32 %v1740
      %v1747 = vshll.u32 %v1746, 16
      %v1748 = vadd.s32 %v1747, %v1745
      %vm1749 = vcmp.eq.s32.totalorder %v261, %v1508
      %vm1750 = vcmp.eq.s32.totalorder %v262, %v1508
      %vm1751 = vcmp.eq.s32.totalorder %v261, %v1524
      %vm1752 = vcmp.eq.s32.totalorder %v262, %v1524
      %vm1753 = vcmp.eq.s32.totalorder %v261, %v1540
      %vm1754 = vcmp.eq.s32.totalorder %v262, %v1540
      %vm1755 = vcmp.eq.s32.totalorder %v261, %v1556
      %vm1756 = vcmp.eq.s32.totalorder %v262, %v1556
      %vm1757 = vcmp.eq.s32.totalorder %v261, %v1572
      %vm1758 = vcmp.eq.s32.totalorder %v262, %v1572
      %vm1759 = vcmp.eq.s32.totalorder %v261, %v1588
      %vm1760 = vcmp.eq.s32.totalorder %v262, %v1588
      %vm1761 = vcmp.eq.s32.totalorder %v261, %v1604
      %vm1762 = vcmp.eq.s32.totalorder %v262, %v1604
      %vm1763 = vcmp.eq.s32.totalorder %v261, %v1620
      %vm1764 = vcmp.eq.s32.totalorder %v262, %v1620
      %vm1765 = vcmp.eq.s32.totalorder %v261, %v1636
      %vm1766 = vcmp.eq.s32.totalorder %v262, %v1636
      %vm1767 = vcmp.eq.s32.totalorder %v261, %v1652
      %vm1768 = vcmp.eq.s32.totalorder %v262, %v1652
      %vm1769 = vcmp.eq.s32.totalorder %v261, %v1668
      %vm1770 = vcmp.eq.s32.totalorder %v262, %v1668
      %vm1771 = vcmp.eq.s32.totalorder %v261, %v1684
      %vm1772 = vcmp.eq.s32.totalorder %v262, %v1684
      %vm1773 = vcmp.eq.s32.totalorder %v261, %v1700
      %vm1774 = vcmp.eq.s32.totalorder %v262, %v1700
      %vm1775 = vcmp.eq.s32.totalorder %v261, %v1716
      %vm1776 = vcmp.eq.s32.totalorder %v262, %v1716
      %vm1777 = vcmp.eq.s32.totalorder %v261, %v1732
      %vm1778 = vcmp.eq.s32.totalorder %v262, %v1732
      %vm1779 = vcmp.eq.s32.totalorder %v261, %v1748
      %vm1780 = vcmp.eq.s32.totalorder %v262, %v1748
      %v1781 = vsel %vm537, 1, 0
      %v1782 = vsel %vm538, 1, 0
      %v1783 = vsel %vm539, 1, 0
      %v1784 = vsel %vm540, 1, 0
      %v1785 = vsel %vm541, 1, 0
      %v1786 = vsel %vm542, 1, 0
      %v1787 = vsel %vm543, 1, 0
      %v1788 = vsel %vm544, 1, 0
      %v1789 = vsel %vm545, 1, 0
      %v1790 = vsel %vm546, 1, 0
      %v1791 = vsel %vm547, 1, 0
      %v1792 = vsel %vm548, 1, 0
      %v1793 = vsel %vm549, 1, 0
      %v1794 = vsel %vm550, 1, 0
      %v1795 = vsel %vm551, 1, 0
      %v1796 = vsel %vm552, 1, 0
      %v1797 = vsel %vm553, 1, 0
      %v1798 = vsel %vm554, 1, 0
      %v1799 = vsel %vm555, 1, 0
      %v1800 = vsel %vm556, 1, 0
      %v1801 = vsel %vm557, 1, 0
      %v1802 = vsel %vm558, 1, 0
      %v1803 = vsel %vm559, 1, 0
      %v1804 = vsel %vm560, 1, 0
      %v1805 = vsel %vm561, 1, 0
      %v1806 = vsel %vm562, 1, 0
      %v1807 = vsel %vm563, 1, 0
      %v1808 = vsel %vm564, 1, 0
      %v1809 = vsel %vm565, 1, 0
      %v1810 = vsel %vm566, 1, 0
      %v1811 = vsel %vm567, 1, 0
      %v1812 = vsel %vm568, 1, 0
      %v1813 = vcvt.s32.f32 %v1781
      %v1814 = vcvt.s32.f32 %v1782
      %v1815 = vcvt.s32.f32 %v1783
      %v1816 = vcvt.s32.f32 %v1784
      %v1817 = vcvt.s32.f32 %v1785
      %v1818 = vcvt.s32.f32 %v1786
      %v1819 = vcvt.s32.f32 %v1787
      %v1820 = vcvt.s32.f32 %v1788
      %v1821 = vcvt.s32.f32 %v1789
      %v1822 = vcvt.s32.f32 %v1790
      %v1823 = vcvt.s32.f32 %v1791
      %v1824 = vcvt.s32.f32 %v1792
      %v1825 = vcvt.s32.f32 %v1793
      %v1826 = vcvt.s32.f32 %v1794
      %v1827 = vcvt.s32.f32 %v1795
      %v1828 = vcvt.s32.f32 %v1796
      %v1829 = vcvt.s32.f32 %v1797
      %v1830 = vcvt.s32.f32 %v1798
      %v1831 = vcvt.s32.f32 %v1799
      %v1832 = vcvt.s32.f32 %v1800
      %v1833 = vcvt.s32.f32 %v1801
      %v1834 = vcvt.s32.f32 %v1802
      %v1835 = vcvt.s32.f32 %v1803
      %v1836 = vcvt.s32.f32 %v1804
      %v1837 = vcvt.s32.f32 %v1805
      %v1838 = vcvt.s32.f32 %v1806
      %v1839 = vcvt.s32.f32 %v1807
      %v1840 = vcvt.s32.f32 %v1808
      %v1841 = vcvt.s32.f32 %v1809
      %v1842 = vcvt.s32.f32 %v1810
      %v1843 = vcvt.s32.f32 %v1811
      %v1844 = vcvt.s32.f32 %v1812
      %v1845 = vsel %vm1749, 1, 0
      %v1846 = vsel %vm1750, 1, 0
      %v1847 = vsel %vm1751, 1, 0
      %v1848 = vsel %vm1752, 1, 0
      %v1849 = vsel %vm1753, 1, 0
      %v1850 = vsel %vm1754, 1, 0
      %v1851 = vsel %vm1755, 1, 0
      %v1852 = vsel %vm1756, 1, 0
      %v1853 = vsel %vm1757, 1, 0
      %v1854 = vsel %vm1758, 1, 0
      %v1855 = vsel %vm1759, 1, 0
      %v1856 = vsel %vm1760, 1, 0
      %v1857 = vsel %vm1761, 1, 0
      %v1858 = vsel %vm1762, 1, 0
      %v1859 = vsel %vm1763, 1, 0
      %v1860 = vsel %vm1764, 1, 0
      %v1861 = vsel %vm1765, 1, 0
      %v1862 = vsel %vm1766, 1, 0
      %v1863 = vsel %vm1767, 1, 0
      %v1864 = vsel %vm1768, 1, 0
      %v1865 = vsel %vm1769, 1, 0
      %v1866 = vsel %vm1770, 1, 0
      %v1867 = vsel %vm1771, 1, 0
      %v1868 = vsel %vm1772, 1, 0
      %v1869 = vsel %vm1773, 1, 0
      %v1870 = vsel %vm1774, 1, 0
      %v1871 = vsel %vm1775, 1, 0
      %v1872 = vsel %vm1776, 1, 0
      %v1873 = vsel %vm1777, 1, 0
      %v1874 = vsel %vm1778, 1, 0
      %v1875 = vsel %vm1779, 1, 0
      %v1876 = vsel %vm1780, 1, 0
      %v1877 = vcvt.s32.f32 %v1845
      %v1878 = vcvt.s32.f32 %v1846
      %v1879 = vcvt.s32.f32 %v1847
      %v1880 = vcvt.s32.f32 %v1848
      %v1881 = vcvt.s32.f32 %v1849
      %v1882 = vcvt.s32.f32 %v1850
      %v1883 = vcvt.s32.f32 %v1851
      %v1884 = vcvt.s32.f32 %v1852
      %v1885 = vcvt.s32.f32 %v1853
      %v1886 = vcvt.s32.f32 %v1854
      %v1887 = vcvt.s32.f32 %v1855
      %v1888 = vcvt.s32.f32 %v1856
      %v1889 = vcvt.s32.f32 %v1857
      %v1890 = vcvt.s32.f32 %v1858
      %v1891 = vcvt.s32.f32 %v1859
      %v1892 = vcvt.s32.f32 %v1860
      %v1893 = vcvt.s32.f32 %v1861
      %v1894 = vcvt.s32.f32 %v1862
      %v1895 = vcvt.s32.f32 %v1863
      %v1896 = vcvt.s32.f32 %v1864
      %v1897 = vcvt.s32.f32 %v1865
      %v1898 = vcvt.s32.f32 %v1866
      %v1899 = vcvt.s32.f32 %v1867
      %v1900 = vcvt.s32.f32 %v1868
      %v1901 = vcvt.s32.f32 %v1869
      %v1902 = vcvt.s32.f32 %v1870
      %v1903 = vcvt.s32.f32 %v1871
      %v1904 = vcvt.s32.f32 %v1872
      %v1905 = vcvt.s32.f32 %v1873
      %v1906 = vcvt.s32.f32 %v1874
      %v1907 = vcvt.s32.f32 %v1875
      %v1908 = vcvt.s32.f32 %v1876
      %v1909 = vadd.f32 %v1813, %v1877
      %v1910 = vadd.f32 %v1814, %v1878
      %v1911 = vadd.f32 %v1815, %v1879
      %v1912 = vadd.f32 %v1816, %v1880
      %v1913 = vadd.f32 %v1817, %v1881
      %v1914 = vadd.f32 %v1818, %v1882
      %v1915 = vadd.f32 %v1819, %v1883
      %v1916 = vadd.f32 %v1820, %v1884
      %v1917 = vadd.f32 %v1821, %v1885
      %v1918 = vadd.f32 %v1822, %v1886
      %v1919 = vadd.f32 %v1823, %v1887
      %v1920 = vadd.f32 %v1824, %v1888
      %v1921 = vadd.f32 %v1825, %v1889
      %v1922 = vadd.f32 %v1826, %v1890
      %v1923 = vadd.f32 %v1827, %v1891
      %v1924 = vadd.f32 %v1828, %v1892
      %v1925 = vadd.f32 %v1829, %v1893
      %v1926 = vadd.f32 %v1830, %v1894
      %v1927 = vadd.f32 %v1831, %v1895
      %v1928 = vadd.f32 %v1832, %v1896
      %v1929 = vadd.f32 %v1833, %v1897
      %v1930 = vadd.f32 %v1834, %v1898
      %v1931 = vadd.f32 %v1835, %v1899
      %v1932 = vadd.f32 %v1836, %v1900
      %v1933 = vadd.f32 %v1837, %v1901
      %v1934 = vadd.f32 %v1838, %v1902
      %v1935 = vadd.f32 %v1839, %v1903
      %v1936 = vadd.f32 %v1840, %v1904
      %v1937 = vadd.f32 %v1841, %v1905
      %v1938 = vadd.f32 %v1842, %v1906
      %v1939 = vadd.f32 %v1843, %v1907
      %v1940 = vadd.f32 %v1844, %v1908
      %vm1941 = vcmask 7168
      %v1942 = vsel %vm1941, %v1059, 0.0
      %v1943 = vsel %vm1941, %v1060, 0.0
      %v1944 = vadd.f32 %v1942, %v1943
      %v1945 = vsel %vm1941, %v1061, 0.0
      %v1946 = vadd.f32 %v1944, %v1945
      %v1947 = vsel %vm1941, %v1062, 0.0
      %v1948 = vadd.f32 %v1946, %v1947
      %v1949 = vsel %vm1941, %v1063, 0.0
      %v1950 = vadd.f32 %v1948, %v1949
      %v1951 = vsel %vm1941, %v1064, 0.0
      %v1952 = vadd.f32 %v1950, %v1951
      %v1953 = vsel %vm1941, %v1065, 0.0
      %v1954 = vadd.f32 %v1952, %v1953
      %v1955 = vsel %vm1941, %v1066, 0.0
      %v1956 = vadd.f32 %v1954, %v1955
      %v1957 = vsel %vm1941, %v1067, 0.0
      %v1958 = vadd.f32 %v1956, %v1957
      %v1959 = vsel %vm1941, %v1068, 0.0
      %v1960 = vadd.f32 %v1958, %v1959
      %v1961 = vsel %vm1941, %v1069, 0.0
      %v1962 = vadd.f32 %v1960, %v1961
      %v1963 = vsel %vm1941, %v1070, 0.0
      %v1964 = vadd.f32 %v1962, %v1963
      %v1965 = vsel %vm1941, %v1071, 0.0
      %v1966 = vadd.f32 %v1964, %v1965
      %v1967 = vsel %vm1941, %v1072, 0.0
      %v1968 = vadd.f32 %v1966, %v1967
      %v1969 = vsel %vm1941, %v1073, 0.0
      %v1970 = vadd.f32 %v1968, %v1969
      %v1971 = vsel %vm1941, %v1074, 0.0
      %v1972 = vadd.f32 %v1970, %v1971
      %1973 = vadd.xlane.f32.xlu0 %v1972
      %v1974 = vpop.xlane.xlu0 %1973
      %v1975 = vrot.slane %v1974, 4
      %v1976 = vadd.f32 %v1974, %v1975
      %v1977 = vrot.slane %v1976, 2
      %v1978 = vadd.f32 %v1976, %v1977
      %v1979 = vrot.slane %v1978, 1
      %v1980 = vadd.f32 %v1978, %v1979
      %s1981 = vtos %v1980
      %s1982 = smul.f32 %s1981, 2.0
      %v1983 = vmul.f32 %v1909, %v803
      %v1984 = vmul.f32 %v1910, %v804
      %v1985 = vmul.f32 %v1911, %v805
      %v1986 = vmul.f32 %v1912, %v806
      %v1987 = vmul.f32 %v1913, %v807
      %v1988 = vmul.f32 %v1914, %v808
      %v1989 = vmul.f32 %v1915, %v809
      %v1990 = vmul.f32 %v1916, %v810
      %v1991 = vmul.f32 %v1917, %v811
      %v1992 = vmul.f32 %v1918, %v812
      %v1993 = vmul.f32 %v1919, %v813
      %v1994 = vmul.f32 %v1920, %v814
      %v1995 = vmul.f32 %v1921, %v815
      %v1996 = vmul.f32 %v1922, %v816
      %v1997 = vmul.f32 %v1923, %v817
      %v1998 = vmul.f32 %v1924, %v818
      %v1999 = vmul.f32 %v1925, %v819
      %v2000 = vmul.f32 %v1926, %v820
      %v2001 = vmul.f32 %v1927, %v821
      %v2002 = vmul.f32 %v1928, %v822
      %v2003 = vmul.f32 %v1929, %v823
      %v2004 = vmul.f32 %v1930, %v824
      %v2005 = vmul.f32 %v1931, %v825
      %v2006 = vmul.f32 %v1932, %v826
      %v2007 = vmul.f32 %v1933, %v827
      %v2008 = vmul.f32 %v1934, %v828
      %v2009 = vmul.f32 %v1935, %v829
      %v2010 = vmul.f32 %v1936, %v830
      %v2011 = vmul.f32 %v1937, %v831
      %v2012 = vmul.f32 %v1938, %v832
      %v2013 = vmul.f32 %v1939, %v833
      %v2014 = vmul.f32 %v1940, %v834
      %v2015 = vadd.f32 %v1983, %v1984
      %v2016 = vadd.f32 %v2015, %v1985
      %v2017 = vadd.f32 %v2016, %v1986
      %v2018 = vadd.f32 %v2017, %v1987
      %v2019 = vadd.f32 %v2018, %v1988
      %v2020 = vadd.f32 %v2019, %v1989
      %v2021 = vadd.f32 %v2020, %v1990
      %v2022 = vadd.f32 %v2021, %v1991
      %v2023 = vadd.f32 %v2022, %v1992
      %v2024 = vadd.f32 %v2023, %v1993
      %v2025 = vadd.f32 %v2024, %v1994
      %v2026 = vadd.f32 %v2025, %v1995
      %v2027 = vadd.f32 %v2026, %v1996
      %v2028 = vadd.f32 %v2027, %v1997
      %v2029 = vadd.f32 %v2028, %v1998
      %v2030 = vadd.f32 %v2029, %v1999
      %v2031 = vadd.f32 %v2030, %v2000
      %v2032 = vadd.f32 %v2031, %v2001
      %v2033 = vadd.f32 %v2032, %v2002
      %v2034 = vadd.f32 %v2033, %v2003
      %v2035 = vadd.f32 %v2034, %v2004
      %v2036 = vadd.f32 %v2035, %v2005
      %v2037 = vadd.f32 %v2036, %v2006
      %v2038 = vadd.f32 %v2037, %v2007
      %v2039 = vadd.f32 %v2038, %v2008
      %v2040 = vadd.f32 %v2039, %v2009
      %v2041 = vadd.f32 %v2040, %v2010
      %v2042 = vadd.f32 %v2041, %v2011
      %v2043 = vadd.f32 %v2042, %v2012
      %v2044 = vadd.f32 %v2043, %v2013
      %v2045 = vadd.f32 %v2044, %v2014
      %2046 = vadd.xlane.f32.xlu0 %v2045
      %v2047 = vpop.xlane.xlu0 %2046
      %v2048 = vrot.slane %v2047, 4
      %v2049 = vadd.f32 %v2047, %v2048
      %v2050 = vrot.slane %v2049, 2
      %v2051 = vadd.f32 %v2049, %v2050
      %v2052 = vrot.slane %v2051, 1
      %v2053 = vadd.f32 %v2051, %v2052
      %s2054 = vtos %v2053
      %s2055 = ssub.f32 %s1982, %s2054
      %v2056 = vstv %s2055
      %vm2057 = vcmask 0
      %2058 = vst.msk [vmem:[%s252] sm:$0x1] %vm2057, %v2056
      %vm2059 = vcmp.eq.f32.partialorder %v803, %v837
      %vm2060 = vcmp.eq.f32.partialorder %v804, %v837
      %vm2061 = vcmp.eq.f32.partialorder %v805, %v840
      %vm2062 = vcmp.eq.f32.partialorder %v806, %v840
      %vm2063 = vcmp.eq.f32.partialorder %v807, %v843
      %vm2064 = vcmp.eq.f32.partialorder %v808, %v843
      %vm2065 = vcmp.eq.f32.partialorder %v809, %v846
      %vm2066 = vcmp.eq.f32.partialorder %v810, %v846
      %vm2067 = vcmp.eq.f32.partialorder %v811, %v849
      %vm2068 = vcmp.eq.f32.partialorder %v812, %v849
      %vm2069 = vcmp.eq.f32.partialorder %v813, %v852
      %vm2070 = vcmp.eq.f32.partialorder %v814, %v852
      %vm2071 = vcmp.eq.f32.partialorder %v815, %v855
      %vm2072 = vcmp.eq.f32.partialorder %v816, %v855
      %vm2073 = vcmp.eq.f32.partialorder %v817, %v858
      %vm2074 = vcmp.eq.f32.partialorder %v818, %v858
      %vm2075 = vcmp.eq.f32.partialorder %v819, %v861
      %vm2076 = vcmp.eq.f32.partialorder %v820, %v861
      %vm2077 = vcmp.eq.f32.partialorder %v821, %v864
      %vm2078 = vcmp.eq.f32.partialorder %v822, %v864
      %vm2079 = vcmp.eq.f32.partialorder %v823, %v867
      %vm2080 = vcmp.eq.f32.partialorder %v824, %v867
      %vm2081 = vcmp.eq.f32.partialorder %v825, %v870
      %vm2082 = vcmp.eq.f32.partialorder %v826, %v870
      %vm2083 = vcmp.eq.f32.partialorder %v827, %v873
      %vm2084 = vcmp.eq.f32.partialorder %v828, %v873
      %vm2085 = vcmp.eq.f32.partialorder %v829, %v876
      %vm2086 = vcmp.eq.f32.partialorder %v830, %v876
      %vm2087 = vcmp.eq.f32.partialorder %v831, %v879
      %vm2088 = vcmp.eq.f32.partialorder %v832, %v879
      %vm2089 = vcmp.eq.f32.partialorder %v833, %v882
      %vm2090 = vcmp.eq.f32.partialorder %v834, %v882
      %v2091 = vsel %vm2059, %v261, 256
      %v2092 = vsel %vm2060, %v262, 256
      %v2093 = vsel %vm2061, %v261, 256
      %v2094 = vsel %vm2062, %v262, 256
      %v2095 = vsel %vm2063, %v261, 256
      %v2096 = vsel %vm2064, %v262, 256
      %v2097 = vsel %vm2065, %v261, 256
      %v2098 = vsel %vm2066, %v262, 256
      %v2099 = vsel %vm2067, %v261, 256
      %v2100 = vsel %vm2068, %v262, 256
      %v2101 = vsel %vm2069, %v261, 256
      %v2102 = vsel %vm2070, %v262, 256
      %v2103 = vsel %vm2071, %v261, 256
      %v2104 = vsel %vm2072, %v262, 256
      %v2105 = vsel %vm2073, %v261, 256
      %v2106 = vsel %vm2074, %v262, 256
      %v2107 = vsel %vm2075, %v261, 256
      %v2108 = vsel %vm2076, %v262, 256
      %v2109 = vsel %vm2077, %v261, 256
      %v2110 = vsel %vm2078, %v262, 256
      %v2111 = vsel %vm2079, %v261, 256
      %v2112 = vsel %vm2080, %v262, 256
      %v2113 = vsel %vm2081, %v261, 256
      %v2114 = vsel %vm2082, %v262, 256
      %v2115 = vsel %vm2083, %v261, 256
      %v2116 = vsel %vm2084, %v262, 256
      %v2117 = vsel %vm2085, %v261, 256
      %v2118 = vsel %vm2086, %v262, 256
      %v2119 = vsel %vm2087, %v261, 256
      %v2120 = vsel %vm2088, %v262, 256
      %v2121 = vsel %vm2089, %v261, 256
      %v2122 = vsel %vm2090, %v262, 256
      %vm2123 = vcmp.lt.s32.totalorder %v2091, %v2092
      %v2124 = vsel %vm2123, %v2091, %v2092
      %v2125 = vand.u32 %v2124, 65535
      %v2126 = vshra.s32 %v2124, 16
      %v2127 = vcvt.s32.f32 %v2125
      %v2128 = vcvt.s32.f32 %v2126
      %2129 = vmin.xlane.f32.xlu0 %v2128
      %v2130 = vpop.xlane.xlu0 %2129
      %vm2131 = vcmp.eq.f32.partialorder %v2128, %v2130
      %v2132 = vsel %vm2131, %v2127, inf
      %2133 = vmin.xlane.f32.xlu0 %v2132
      %v2134 = vpop.xlane.xlu0 %2133
      %v2135 = vcvt.f32.s32 %v2134
      %v2136 = vcvt.f32.s32 %v2130
      %v2137 = vshll.u32 %v2136, 16
      %v2138 = vadd.s32 %v2137, %v2135
      %vm2139 = vcmp.lt.s32.totalorder %v2093, %v2094
      %v2140 = vsel %vm2139, %v2093, %v2094
      %v2141 = vand.u32 %v2140, 65535
      %v2142 = vshra.s32 %v2140, 16
      %v2143 = vcvt.s32.f32 %v2141
      %v2144 = vcvt.s32.f32 %v2142
      %2145 = vmin.xlane.f32.xlu0 %v2144
      %v2146 = vpop.xlane.xlu0 %2145
      %vm2147 = vcmp.eq.f32.partialorder %v2144, %v2146
      %v2148 = vsel %vm2147, %v2143, inf
      %2149 = vmin.xlane.f32.xlu0 %v2148
      %v2150 = vpop.xlane.xlu0 %2149
      %v2151 = vcvt.f32.s32 %v2150
      %v2152 = vcvt.f32.s32 %v2146
      %v2153 = vshll.u32 %v2152, 16
      %v2154 = vadd.s32 %v2153, %v2151
      %vm2155 = vcmp.lt.s32.totalorder %v2095, %v2096
      %v2156 = vsel %vm2155, %v2095, %v2096
      %v2157 = vand.u32 %v2156, 65535
      %v2158 = vshra.s32 %v2156, 16
      %v2159 = vcvt.s32.f32 %v2157
      %v2160 = vcvt.s32.f32 %v2158
      %2161 = vmin.xlane.f32.xlu0 %v2160
      %v2162 = vpop.xlane.xlu0 %2161
      %vm2163 = vcmp.eq.f32.partialorder %v2160, %v2162
      %v2164 = vsel %vm2163, %v2159, inf
      %2165 = vmin.xlane.f32.xlu0 %v2164
      %v2166 = vpop.xlane.xlu0 %2165
      %v2167 = vcvt.f32.s32 %v2166
      %v2168 = vcvt.f32.s32 %v2162
      %v2169 = vshll.u32 %v2168, 16
      %v2170 = vadd.s32 %v2169, %v2167
      %vm2171 = vcmp.lt.s32.totalorder %v2097, %v2098
      %v2172 = vsel %vm2171, %v2097, %v2098
      %v2173 = vand.u32 %v2172, 65535
      %v2174 = vshra.s32 %v2172, 16
      %v2175 = vcvt.s32.f32 %v2173
      %v2176 = vcvt.s32.f32 %v2174
      %2177 = vmin.xlane.f32.xlu0 %v2176
      %v2178 = vpop.xlane.xlu0 %2177
      %vm2179 = vcmp.eq.f32.partialorder %v2176, %v2178
      %v2180 = vsel %vm2179, %v2175, inf
      %2181 = vmin.xlane.f32.xlu0 %v2180
      %v2182 = vpop.xlane.xlu0 %2181
      %v2183 = vcvt.f32.s32 %v2182
      %v2184 = vcvt.f32.s32 %v2178
      %v2185 = vshll.u32 %v2184, 16
      %v2186 = vadd.s32 %v2185, %v2183
      %vm2187 = vcmp.lt.s32.totalorder %v2099, %v2100
      %v2188 = vsel %vm2187, %v2099, %v2100
      %v2189 = vand.u32 %v2188, 65535
      %v2190 = vshra.s32 %v2188, 16
      %v2191 = vcvt.s32.f32 %v2189
      %v2192 = vcvt.s32.f32 %v2190
      %2193 = vmin.xlane.f32.xlu0 %v2192
      %v2194 = vpop.xlane.xlu0 %2193
      %vm2195 = vcmp.eq.f32.partialorder %v2192, %v2194
      %v2196 = vsel %vm2195, %v2191, inf
      %2197 = vmin.xlane.f32.xlu0 %v2196
      %v2198 = vpop.xlane.xlu0 %2197
      %v2199 = vcvt.f32.s32 %v2198
      %v2200 = vcvt.f32.s32 %v2194
      %v2201 = vshll.u32 %v2200, 16
      %v2202 = vadd.s32 %v2201, %v2199
      %vm2203 = vcmp.lt.s32.totalorder %v2101, %v2102
      %v2204 = vsel %vm2203, %v2101, %v2102
      %v2205 = vand.u32 %v2204, 65535
      %v2206 = vshra.s32 %v2204, 16
      %v2207 = vcvt.s32.f32 %v2205
      %v2208 = vcvt.s32.f32 %v2206
      %2209 = vmin.xlane.f32.xlu0 %v2208
      %v2210 = vpop.xlane.xlu0 %2209
      %vm2211 = vcmp.eq.f32.partialorder %v2208, %v2210
      %v2212 = vsel %vm2211, %v2207, inf
      %2213 = vmin.xlane.f32.xlu0 %v2212
      %v2214 = vpop.xlane.xlu0 %2213
      %v2215 = vcvt.f32.s32 %v2214
      %v2216 = vcvt.f32.s32 %v2210
      %v2217 = vshll.u32 %v2216, 16
      %v2218 = vadd.s32 %v2217, %v2215
      %vm2219 = vcmp.lt.s32.totalorder %v2103, %v2104
      %v2220 = vsel %vm2219, %v2103, %v2104
      %v2221 = vand.u32 %v2220, 65535
      %v2222 = vshra.s32 %v2220, 16
      %v2223 = vcvt.s32.f32 %v2221
      %v2224 = vcvt.s32.f32 %v2222
      %2225 = vmin.xlane.f32.xlu0 %v2224
      %v2226 = vpop.xlane.xlu0 %2225
      %vm2227 = vcmp.eq.f32.partialorder %v2224, %v2226
      %v2228 = vsel %vm2227, %v2223, inf
      %2229 = vmin.xlane.f32.xlu0 %v2228
      %v2230 = vpop.xlane.xlu0 %2229
      %v2231 = vcvt.f32.s32 %v2230
      %v2232 = vcvt.f32.s32 %v2226
      %v2233 = vshll.u32 %v2232, 16
      %v2234 = vadd.s32 %v2233, %v2231
      %vm2235 = vcmp.lt.s32.totalorder %v2105, %v2106
      %v2236 = vsel %vm2235, %v2105, %v2106
      %v2237 = vand.u32 %v2236, 65535
      %v2238 = vshra.s32 %v2236, 16
      %v2239 = vcvt.s32.f32 %v2237
      %v2240 = vcvt.s32.f32 %v2238
      %2241 = vmin.xlane.f32.xlu0 %v2240
      %v2242 = vpop.xlane.xlu0 %2241
      %vm2243 = vcmp.eq.f32.partialorder %v2240, %v2242
      %v2244 = vsel %vm2243, %v2239, inf
      %2245 = vmin.xlane.f32.xlu0 %v2244
      %v2246 = vpop.xlane.xlu0 %2245
      %v2247 = vcvt.f32.s32 %v2246
      %v2248 = vcvt.f32.s32 %v2242
      %v2249 = vshll.u32 %v2248, 16
      %v2250 = vadd.s32 %v2249, %v2247
      %vm2251 = vcmp.lt.s32.totalorder %v2107, %v2108
      %v2252 = vsel %vm2251, %v2107, %v2108
      %v2253 = vand.u32 %v2252, 65535
      %v2254 = vshra.s32 %v2252, 16
      %v2255 = vcvt.s32.f32 %v2253
      %v2256 = vcvt.s32.f32 %v2254
      %2257 = vmin.xlane.f32.xlu0 %v2256
      %v2258 = vpop.xlane.xlu0 %2257
      %vm2259 = vcmp.eq.f32.partialorder %v2256, %v2258
      %v2260 = vsel %vm2259, %v2255, inf
      %2261 = vmin.xlane.f32.xlu0 %v2260
      %v2262 = vpop.xlane.xlu0 %2261
      %v2263 = vcvt.f32.s32 %v2262
      %v2264 = vcvt.f32.s32 %v2258
      %v2265 = vshll.u32 %v2264, 16
      %v2266 = vadd.s32 %v2265, %v2263
      %vm2267 = vcmp.lt.s32.totalorder %v2109, %v2110
      %v2268 = vsel %vm2267, %v2109, %v2110
      %v2269 = vand.u32 %v2268, 65535
      %v2270 = vshra.s32 %v2268, 16
      %v2271 = vcvt.s32.f32 %v2269
      %v2272 = vcvt.s32.f32 %v2270
      %2273 = vmin.xlane.f32.xlu0 %v2272
      %v2274 = vpop.xlane.xlu0 %2273
      %vm2275 = vcmp.eq.f32.partialorder %v2272, %v2274
      %v2276 = vsel %vm2275, %v2271, inf
      %2277 = vmin.xlane.f32.xlu0 %v2276
      %v2278 = vpop.xlane.xlu0 %2277
      %v2279 = vcvt.f32.s32 %v2278
      %v2280 = vcvt.f32.s32 %v2274
      %v2281 = vshll.u32 %v2280, 16
      %v2282 = vadd.s32 %v2281, %v2279
      %vm2283 = vcmp.lt.s32.totalorder %v2111, %v2112
      %v2284 = vsel %vm2283, %v2111, %v2112
      %v2285 = vand.u32 %v2284, 65535
      %v2286 = vshra.s32 %v2284, 16
      %v2287 = vcvt.s32.f32 %v2285
      %v2288 = vcvt.s32.f32 %v2286
      %2289 = vmin.xlane.f32.xlu0 %v2288
      %v2290 = vpop.xlane.xlu0 %2289
      %vm2291 = vcmp.eq.f32.partialorder %v2288, %v2290
      %v2292 = vsel %vm2291, %v2287, inf
      %2293 = vmin.xlane.f32.xlu0 %v2292
      %v2294 = vpop.xlane.xlu0 %2293
      %v2295 = vcvt.f32.s32 %v2294
      %v2296 = vcvt.f32.s32 %v2290
      %v2297 = vshll.u32 %v2296, 16
      %v2298 = vadd.s32 %v2297, %v2295
      %vm2299 = vcmp.lt.s32.totalorder %v2113, %v2114
      %v2300 = vsel %vm2299, %v2113, %v2114
      %v2301 = vand.u32 %v2300, 65535
      %v2302 = vshra.s32 %v2300, 16
      %v2303 = vcvt.s32.f32 %v2301
      %v2304 = vcvt.s32.f32 %v2302
      %2305 = vmin.xlane.f32.xlu0 %v2304
      %v2306 = vpop.xlane.xlu0 %2305
      %vm2307 = vcmp.eq.f32.partialorder %v2304, %v2306
      %v2308 = vsel %vm2307, %v2303, inf
      %2309 = vmin.xlane.f32.xlu0 %v2308
      %v2310 = vpop.xlane.xlu0 %2309
      %v2311 = vcvt.f32.s32 %v2310
      %v2312 = vcvt.f32.s32 %v2306
      %v2313 = vshll.u32 %v2312, 16
      %v2314 = vadd.s32 %v2313, %v2311
      %vm2315 = vcmp.lt.s32.totalorder %v2115, %v2116
      %v2316 = vsel %vm2315, %v2115, %v2116
      %v2317 = vand.u32 %v2316, 65535
      %v2318 = vshra.s32 %v2316, 16
      %v2319 = vcvt.s32.f32 %v2317
      %v2320 = vcvt.s32.f32 %v2318
      %2321 = vmin.xlane.f32.xlu0 %v2320
      %v2322 = vpop.xlane.xlu0 %2321
      %vm2323 = vcmp.eq.f32.partialorder %v2320, %v2322
      %v2324 = vsel %vm2323, %v2319, inf
      %2325 = vmin.xlane.f32.xlu0 %v2324
      %v2326 = vpop.xlane.xlu0 %2325
      %v2327 = vcvt.f32.s32 %v2326
      %v2328 = vcvt.f32.s32 %v2322
      %v2329 = vshll.u32 %v2328, 16
      %v2330 = vadd.s32 %v2329, %v2327
      %vm2331 = vcmp.lt.s32.totalorder %v2117, %v2118
      %v2332 = vsel %vm2331, %v2117, %v2118
      %v2333 = vand.u32 %v2332, 65535
      %v2334 = vshra.s32 %v2332, 16
      %v2335 = vcvt.s32.f32 %v2333
      %v2336 = vcvt.s32.f32 %v2334
      %2337 = vmin.xlane.f32.xlu0 %v2336
      %v2338 = vpop.xlane.xlu0 %2337
      %vm2339 = vcmp.eq.f32.partialorder %v2336, %v2338
      %v2340 = vsel %vm2339, %v2335, inf
      %2341 = vmin.xlane.f32.xlu0 %v2340
      %v2342 = vpop.xlane.xlu0 %2341
      %v2343 = vcvt.f32.s32 %v2342
      %v2344 = vcvt.f32.s32 %v2338
      %v2345 = vshll.u32 %v2344, 16
      %v2346 = vadd.s32 %v2345, %v2343
      %vm2347 = vcmp.lt.s32.totalorder %v2119, %v2120
      %v2348 = vsel %vm2347, %v2119, %v2120
      %v2349 = vand.u32 %v2348, 65535
      %v2350 = vshra.s32 %v2348, 16
      %v2351 = vcvt.s32.f32 %v2349
      %v2352 = vcvt.s32.f32 %v2350
      %2353 = vmin.xlane.f32.xlu0 %v2352
      %v2354 = vpop.xlane.xlu0 %2353
      %vm2355 = vcmp.eq.f32.partialorder %v2352, %v2354
      %v2356 = vsel %vm2355, %v2351, inf
      %2357 = vmin.xlane.f32.xlu0 %v2356
      %v2358 = vpop.xlane.xlu0 %2357
      %v2359 = vcvt.f32.s32 %v2358
      %v2360 = vcvt.f32.s32 %v2354
      %v2361 = vshll.u32 %v2360, 16
      %v2362 = vadd.s32 %v2361, %v2359
      %vm2363 = vcmp.lt.s32.totalorder %v2121, %v2122
      %v2364 = vsel %vm2363, %v2121, %v2122
      %v2365 = vand.u32 %v2364, 65535
      %v2366 = vshra.s32 %v2364, 16
      %v2367 = vcvt.s32.f32 %v2365
      %v2368 = vcvt.s32.f32 %v2366
      %2369 = vmin.xlane.f32.xlu0 %v2368
      %v2370 = vpop.xlane.xlu0 %2369
      %vm2371 = vcmp.eq.f32.partialorder %v2368, %v2370
      %v2372 = vsel %vm2371, %v2367, inf
      %2373 = vmin.xlane.f32.xlu0 %v2372
      %v2374 = vpop.xlane.xlu0 %2373
      %v2375 = vcvt.f32.s32 %v2374
      %v2376 = vcvt.f32.s32 %v2370
      %v2377 = vshll.u32 %v2376, 16
      %v2378 = vadd.s32 %v2377, %v2375
      %vm2379 = vcmp.eq.s32.totalorder %v2138, %v489
      %vm2380 = vcmp.eq.s32.totalorder %v2154, %v490
      %vm2381 = vcmp.eq.s32.totalorder %v2170, %v491
      %vm2382 = vcmp.eq.s32.totalorder %v2186, %v492
      %vm2383 = vcmp.eq.s32.totalorder %v2202, %v493
      %vm2384 = vcmp.eq.s32.totalorder %v2218, %v494
      %vm2385 = vcmp.eq.s32.totalorder %v2234, %v495
      %vm2386 = vcmp.eq.s32.totalorder %v2250, %v496
      %vm2387 = vcmp.eq.s32.totalorder %v2266, %v497
      %vm2388 = vcmp.eq.s32.totalorder %v2282, %v498
      %vm2389 = vcmp.eq.s32.totalorder %v2298, %v499
      %vm2390 = vcmp.eq.s32.totalorder %v2314, %v500
      %vm2391 = vcmp.eq.s32.totalorder %v2330, %v501
      %vm2392 = vcmp.eq.s32.totalorder %v2346, %v502
      %vm2393 = vcmp.eq.s32.totalorder %v2362, %v503
      %vm2394 = vcmp.eq.s32.totalorder %v2378, %v504
      %v2395 = vsel %vm2379, 1, 0
      %v2396 = vsel %vm2380, 1, 0
      %v2397 = vsel %vm2381, 1, 0
      %v2398 = vsel %vm2382, 1, 0
      %v2399 = vsel %vm2383, 1, 0
      %v2400 = vsel %vm2384, 1, 0
      %v2401 = vsel %vm2385, 1, 0
      %v2402 = vsel %vm2386, 1, 0
      %v2403 = vsel %vm2387, 1, 0
      %v2404 = vsel %vm2388, 1, 0
      %v2405 = vsel %vm2389, 1, 0
      %v2406 = vsel %vm2390, 1, 0
      %v2407 = vsel %vm2391, 1, 0
      %v2408 = vsel %vm2392, 1, 0
      %v2409 = vsel %vm2393, 1, 0
      %v2410 = vsel %vm2394, 1, 0
      %v2411 = vcvt.s32.f32 %v2395
      %v2412 = vcvt.s32.f32 %v2396
      %v2413 = vcvt.s32.f32 %v2397
      %v2414 = vcvt.s32.f32 %v2398
      %v2415 = vcvt.s32.f32 %v2399
      %v2416 = vcvt.s32.f32 %v2400
      %v2417 = vcvt.s32.f32 %v2401
      %v2418 = vcvt.s32.f32 %v2402
      %v2419 = vcvt.s32.f32 %v2403
      %v2420 = vcvt.s32.f32 %v2404
      %v2421 = vcvt.s32.f32 %v2405
      %v2422 = vcvt.s32.f32 %v2406
      %v2423 = vcvt.s32.f32 %v2407
      %v2424 = vcvt.s32.f32 %v2408
      %v2425 = vcvt.s32.f32 %v2409
      %v2426 = vcvt.s32.f32 %v2410
      %2427 = vst.msk [vmem:[%s257] sm:$0xff] %vm1941, %v2411
      %2428 = vst.msk [vmem:[%s257 + $0x8] sm:$0xff] %vm1941, %v2412
      %2429 = vst.msk [vmem:[%s257 + $0x10] sm:$0xff] %vm1941, %v2413
      %2430 = vst.msk [vmem:[%s257 + $0x18] sm:$0xff] %vm1941, %v2414
      %2431 = vst.msk [vmem:[%s257 + $0x20] sm:$0xff] %vm1941, %v2415
      %2432 = vst.msk [vmem:[%s257 + $0x28] sm:$0xff] %vm1941, %v2416
      %2433 = vst.msk [vmem:[%s257 + $0x30] sm:$0xff] %vm1941, %v2417
      %2434 = vst.msk [vmem:[%s257 + $0x38] sm:$0xff] %vm1941, %v2418
      %2435 = vst.msk [vmem:[%s257 + $0x40] sm:$0xff] %vm1941, %v2419
      %2436 = vst.msk [vmem:[%s257 + $0x48] sm:$0xff] %vm1941, %v2420
      %2437 = vst.msk [vmem:[%s257 + $0x50] sm:$0xff] %vm1941, %v2421
      %2438 = vst.msk [vmem:[%s257 + $0x58] sm:$0xff] %vm1941, %v2422
      %2439 = vst.msk [vmem:[%s257 + $0x60] sm:$0xff] %vm1941, %v2423
      %2440 = vst.msk [vmem:[%s257 + $0x68] sm:$0xff] %vm1941, %v2424
      %2441 = vst.msk [vmem:[%s257 + $0x70] sm:$0xff] %vm1941, %v2425
      %2442 = vst.msk [vmem:[%s257 + $0x78] sm:$0xff] %vm1941, %v2426
      %p2443 = scmp.lt.s32.totalorder %s17, 1
      %s2444 = scalar_select %p2443, %s17, 1
      %s2445 = scalar_lea.vmem %s4, %s2444
      %s2446 = smul.u32 16, %s17
      %p2447 = scmp.lt.s32.totalorder %s2446, 31
      %s2448 = scalar_select %p2447, %s2446, 31
      %s2449 = smul.addr %s2448, 8
      %s2450 = scalar_lea.vmem %s5, %s2449
      // Predicated region
      $region37: #{tpu_custom_call.1} parent=35 // pred_check
        %p2451 = pneg %p129
      $region38: #{tpu_custom_call.1} parent=35 // pred_check_branch
        %2453 = sbr.rel (%p2451) target = $region40
      $region39: #{tpu_custom_call.1} parent=35 // pred_region
        _
      $region40: #{tpu_custom_call.1} parent=35 // pred_fallthru
        _
      // Predicated region
      $region41: #{tpu_custom_call.1} parent=35 // pred_check
        %p2454 = pneg %p155
      $region42: #{tpu_custom_call.1} parent=35 // pred_check_branch
        %2456 = sbr.rel (%p2454) target = $region44
      $region43: #{tpu_custom_call.1} parent=35 // pred_region
        %s2457 = smul.u32 16, %s17
      $region44: #{tpu_custom_call.1} parent=35 // pred_fallthru
        _
    $region36: #{tpu_custom_call.1} parent=5 // pred_fallthru
      _
    %p2458 = scmp.le.s32.totalorder 2, %s12
    // Predicated region
    $region45: #{tpu_custom_call.1} parent=5 // pred_check
      %p2459 = pneg %p2458
    $region46: #{tpu_custom_call.1} parent=5 // pred_check_branch
      %2461 = sbr.rel (%p2459) target = $region48
    $region47: #{tpu_custom_call.1} parent=5 // pred_region
      %s2462 = ssub.s32 %s12, 2
      // Predicated region
      $region49: #{tpu_custom_call.1} parent=47 // pred_check
        %p2463 = pneg %p135
      $region50: #{tpu_custom_call.1} parent=47 // pred_check_branch
        %2465 = sbr.rel (%p2463) target = $region52
      $region51: #{tpu_custom_call.1} parent=47 // pred_region
        %p2466 = scmp.lt.s32.totalorder %s18, 1
        %s2467 = scalar_select %p2466, %s18, 1
        %s2468 = scalar_lea.vmem %s4, %s2467
      $region52: #{tpu_custom_call.1} parent=47 // pred_fallthru
        _
      // Predicated region
      $region53: #{tpu_custom_call.1} parent=47 // pred_check
        %p2469 = pneg %p161
      $region54: #{tpu_custom_call.1} parent=47 // pred_check_branch
        %2471 = sbr.rel (%p2469) target = $region56
      $region55: #{tpu_custom_call.1} parent=47 // pred_region
        %s2472 = smul.u32 16, %s18
        %p2473 = scmp.lt.s32.totalorder %s2472, 31
        %s2474 = scalar_select %p2473, %s2472, 31
        %s2475 = smul.addr %s2474, 8
        %s2476 = scalar_lea.vmem %s5, %s2475
      $region56: #{tpu_custom_call.1} parent=47 // pred_fallthru
        _
    $region48: #{tpu_custom_call.1} parent=5 // pred_fallthru
      _
  $region6: #{tpu_custom_call.1} parent=0 // loop_footer
    %s16 = sadd.s32 1, %s12
  $region7: #{tpu_custom_call.1} parent=0 // loop_footer_branch
    %11 = sbr.rel target = $region3
  $region8: #{tpu_custom_call.1} parent=0 // loop_exit
    _

</llo_original>
